<compile_context>
chip_gen: v7x
topology: tpu7x:2x2x1
jax: 0.10.0
libtpu: 0.0.40
codegen_flags: <defaults>
</compile_context>

<pallas_src>
import functools
import math

import jax
import jax.numpy as jnp
from jax.experimental import pallas as pl
from jax.experimental.pallas import tpu as pltpu

# ------------------------- small ViT configuration -------------------------
IMG, PATCH, IN_CH = 32, 8, 3
DIM, HEADS, DEPTH = 64, 4, 2
MLP_HIDDEN = DIM * 4
R, ALPHA = 4, 4                       # LoRA rank / alpha
NUM_CLASSES = 10
HEAD_DIM = DIM // HEADS
NUM_PATCHES = (IMG // PATCH) ** 2     # 16
NUM_TOKENS = NUM_PATCHES + 1          # 17 (cls + patches)
PATCH_DIM = IN_CH * PATCH * PATCH     # 192
LORA_SCALE = ALPHA // R               # integer division, as in _LoRA_qkv_timm
NPAD = 32                             # token rows padded for bf16 sublane packing
NCLS_PAD = 128                        # classifier lanes padded to full vreg width
BIAS_COLS = 256                       # packed per-block bias tile width
LN_EPS = 1e-6
ATTN_SCALE = HEAD_DIM ** -0.5


# ------------------------------ fused kernel --------------------------------
def _fused_vit_kernel(G, xp_ref, pw_ref, ebias_ref, bb_ref,
                      qkvw_ref, projw_ref, fc1w_ref, fc2w_ref,
                      fin_ref, hw_ref, o_ref):
    f32, bf16 = jnp.float32, jnp.bfloat16

    def mm(a, b):
        # bf16 MXU operands, f32 accumulation.
        return jnp.dot(a.astype(bf16), b.astype(bf16),
                       preferred_element_type=f32)

    def ln(x, g, b):
        # var = E[x^2] - mu^2 -> the two lane reductions are independent.
        mu = jnp.mean(x, axis=-1, keepdims=True)
        ms = jnp.mean(x * x, axis=-1, keepdims=True)
        return (x - mu) * jax.lax.rsqrt(ms - mu * mu + LN_EPS) * g + b

    # ---- patch embedding; cls token / pos / patch bias folded into ebias ----
    x = mm(xp_ref[...], pw_ref[...]) + ebias_ref[...]        # (G*NPAD, DIM) f32

    # additive key mask for the padded token rows (kept in f32)
    key_ids = jax.lax.broadcasted_iota(jnp.int32, (1, NPAD), 1)
    neg_bias = jnp.where(key_ids >= NUM_TOKENS, -1e30, 0.0).astype(f32)

    # ---- transformer blocks (LoRA already folded into qkv weights) ----
    for d in range(DEPTH):
        pb = bb_ref[d]                                        # (8, 256) f32
        n1g, n1b = pb[0:1, :DIM], pb[1:2, :DIM]
        qkvb = pb[2:3, :3 * DIM]
        projb = pb[3:4, :DIM]
        n2g, n2b = pb[4:5, :DIM], pb[5:6, :DIM]
        fc1b = pb[6:7, :MLP_HIDDEN]
        fc2b = pb[7:8, :DIM]
        pw_d = projw_ref[d]                                   # (DIM, DIM) bf16

        h = ln(x, n1g, n1b)
        qkv = mm(h, qkvw_ref[d]) + qkvb                       # (G*NPAD, 3*DIM)

        deltas = []
        for g in range(G):
            qkv_g = qkv[g * NPAD:(g + 1) * NPAD, :]           # sublane slice
            # one K transpose per image per layer (instead of one per head)
            kT_g = jnp.transpose(qkv_g[:, DIM:2 * DIM])       # (DIM, NPAD)
            delta_g = None
            for hh in range(HEADS):
                lo = hh * HEAD_DIM
                q_h = qkv_g[:, lo:lo + HEAD_DIM]              # (NPAD, Dh)
                kT_h = kT_g[lo:lo + HEAD_DIM, :]              # (Dh, NPAD)
                v_h = qkv_g[:, 2 * DIM + lo:2 * DIM + lo + HEAD_DIM]
                s = mm(q_h, kT_h) * ATTN_SCALE + neg_bias     # (NPAD, NPAD) f32
                s = s - jnp.max(s, axis=-1, keepdims=True)
                p = jnp.exp(s)
                p = p * pl.reciprocal(jnp.sum(p, axis=-1, keepdims=True),
                                      approx=True)
                # accumulate the head directly into the projection output
                contrib = mm(mm(p, v_h), pw_d[lo:lo + HEAD_DIM, :])
                delta_g = contrib if delta_g is None else delta_g + contrib
            deltas.append(delta_g)
        attn = deltas[0] if G == 1 else jnp.concatenate(deltas, axis=0)
        x = x + attn + projb

        h2 = ln(x, n2g, n2b)
        h2 = jax.nn.gelu(mm(h2, fc1w_ref[d]) + fc1b, approximate=True)
        x = x + mm(h2, fc2w_ref[d]) + fc2b

    # ---- final norm + classifier head on the cls rows (row g*NPAD) ----
    fin = fin_ref[...]                                        # (8, 128) f32
    ng, nb, hb = fin[0:1, :DIM], fin[1:2, :DIM], fin[2:3, :]
    xn = ln(x, ng, nb)
    slabs = [xn[g * NPAD:g * NPAD + 8, :] for g in range(G)]
    xcls = slabs[0] if G == 1 else jnp.concatenate(slabs, axis=0)   # (G*8, DIM)
    o_ref[...] = (mm(xcls, hw_ref[...]) + hb).astype(o_ref.dtype)


# --------------------------- parameter construction --------------------------
def init_params(key):
    def normal(k, shape, std=0.02):
        return std * jax.random.normal(k, shape, dtype=jnp.float32)

    keys = jax.random.split(key, 8 + DEPTH)
    params = {
        "patch_w": normal(keys[0], (PATCH_DIM, DIM)),
        "patch_b": jnp.zeros((DIM,), jnp.float32),
        "cls_token": normal(keys[1], (1, 1, DIM)),
        "pos_embed": normal(keys[2], (1, NUM_TOKENS, DIM)),
        "norm_g": jnp.ones((DIM,), jnp.float32),
        "norm_b": jnp.zeros((DIM,), jnp.float32),
        "head_w": normal(keys[3], (DIM, NUM_CLASSES)),
        "head_b": jnp.zeros((NUM_CLASSES,), jnp.float32),
        "blocks": [],
    }
    lora_bound = 1.0 / math.sqrt(DIM)   # kaiming_uniform_(a=sqrt(5)), fan_in=DIM
    for li in range(DEPTH):
        bk = jax.random.split(keys[8 + li], 8)
        blk = {
            "norm1_g": jnp.ones((DIM,), jnp.float32),
            "norm1_b": jnp.zeros((DIM,), jnp.float32),
            "qkv_w": normal(bk[0], (DIM, 3 * DIM)),
            "qkv_b": jnp.zeros((3 * DIM,), jnp.float32),
            "a_q": jax.random.uniform(bk[1], (DIM, R), jnp.float32,
                                      -lora_bound, lora_bound),
            "b_q": jnp.zeros((R, DIM), jnp.float32),   # zero-init (reset_parameters)
            "a_v": jax.random.uniform(bk[2], (DIM, R), jnp.float32,
                                      -lora_bound, lora_bound),
            "b_v": jnp.zeros((R, DIM), jnp.float32),
            "proj_w": normal(bk[3], (DIM, DIM)),
            "proj_b": jnp.zeros((DIM,), jnp.float32),
            "norm2_g": jnp.ones((DIM,), jnp.float32),
            "norm2_b": jnp.zeros((DIM,), jnp.float32),
            "fc1_w": normal(bk[4], (DIM, MLP_HIDDEN)),
            "fc1_b": jnp.zeros((MLP_HIDDEN,), jnp.float32),
            "fc2_w": normal(bk[5], (MLP_HIDDEN, DIM)),
            "fc2_b": jnp.zeros((DIM,), jnp.float32),
        }
        params["blocks"].append(blk)
    return params


# --------------------------------- forward ----------------------------------
def _pick_group(B):
    # ~8 images (256 token rows) per grid step to fill the MXU, but prefer an
    # even number of grid steps so both v7x TensorCores stay busy.
    candidates = [g for g in (8, 4, 2, 1) if B % g == 0]
    for g in candidates:
        if (B // g) % 2 == 0:
            return g
    return candidates[0]


def lora_vit_forward(params, x):
    # x: (B, C, H, W) NCHW, like the PyTorch module.
    B = x.shape[0]
    bf16, f32 = jnp.bfloat16, jnp.float32
    G = _pick_group(B)
    n_steps = B // G
    M = G * NPAD

    # Patch extraction (layout only): stride-P conv == per-patch linear on the
    # (C, ph, pw)-flattened patch, matching Conv2d weight flattening order.
    xp = (x.reshape(B, IN_CH, IMG // PATCH, PATCH, IMG // PATCH, PATCH)
            .transpose(0, 2, 4, 1, 3, 5)
            .reshape(B, NUM_PATCHES, PATCH_DIM))
    # pre-pad token rows (row 0 = cls slot, rows 17..31 masked) + pre-cast bf16
    xp_pad = jnp.pad(xp, ((0, 0), (1, NPAD - 1 - NUM_PATCHES), (0, 0)))
    xp_pad = xp_pad.astype(bf16).reshape(n_steps, M, PATCH_DIM)

    blocks = params["blocks"]

    # Fold LoRA into the qkv weight: W_eff = W + (alpha//r)*[A_q@B_q | 0 | A_v@B_v]
    # -- identical to _LoRA_qkv_timm.forward (B matrices are zero-initialized).
    qkv_w_eff = jnp.stack([
        blk["qkv_w"] + jnp.concatenate(
            [LORA_SCALE * (blk["a_q"] @ blk["b_q"]),
             jnp.zeros((DIM, DIM), f32),
             LORA_SCALE * (blk["a_v"] @ blk["b_v"])], axis=1)
        for blk in blocks]).astype(bf16)

    proj_w = jnp.stack([blk["proj_w"] for blk in blocks]).astype(bf16)
    fc1_w = jnp.stack([blk["fc1_w"] for blk in blocks]).astype(bf16)
    fc2_w = jnp.stack([blk["fc2_w"] for blk in blocks]).astype(bf16)

    # pack the 8 small per-block vectors into one (DEPTH, 8, 256) f32 tile
    def row(v):
        return jnp.pad(v, (0, BIAS_COLS - v.shape[0]))
    blk_bias = jnp.stack([
        jnp.stack([row(blk["norm1_g"]), row(blk["norm1_b"]), row(blk["qkv_b"]),
                   row(blk["proj_b"]), row(blk["norm2_g"]), row(blk["norm2_b"]),
                   row(blk["fc1_b"]), row(blk["fc2_b"])])
        for blk in blocks])

    # cls token + pos embed + patch bias folded into one additive (M, DIM) bias
    pos = params["pos_embed"][0]                               # (17, DIM)
    ebias = jnp.zeros((NPAD, DIM), f32)
    ebias = ebias.at[0].set(params["cls_token"].reshape(DIM) + pos[0])
    ebias = ebias.at[1:NUM_TOKENS].set(pos[1:] + params["patch_b"][None, :])
    ebias = jnp.tile(ebias, (G, 1))                            # (M, DIM)

    # final norm gamma/beta + head bias packed into one (8, 128) f32 tile
    fin = jnp.zeros((8, NCLS_PAD), f32)
    fin = fin.at[0, :DIM].set(params["norm_g"])
    fin = fin.at[1, :DIM].set(params["norm_b"])
    fin = fin.at[2, :NUM_CLASSES].set(params["head_b"])

    patch_w = params["patch_w"].astype(bf16)
    head_w = jnp.pad(params["head_w"],
                     ((0, 0), (0, NCLS_PAD - NUM_CLASSES))).astype(bf16)

    full2 = lambda b: (0, 0)
    full3 = lambda b: (0, 0, 0)

    out = pl.pallas_call(
        functools.partial(_fused_vit_kernel, G),
        out_shape=jax.ShapeDtypeStruct((n_steps, G * 8, NCLS_PAD), jnp.float32),
        grid=(n_steps,),
        in_specs=[
            pl.BlockSpec((None, M, PATCH_DIM), lambda b: (b, 0, 0)),
            pl.BlockSpec((PATCH_DIM, DIM), full2),
            pl.BlockSpec((M, DIM), full2),
            pl.BlockSpec((DEPTH, 8, BIAS_COLS), full3),
            pl.BlockSpec((DEPTH, DIM, 3 * DIM), full3),
            pl.BlockSpec((DEPTH, DIM, DIM), full3),
            pl.BlockSpec((DEPTH, DIM, MLP_HIDDEN), full3),
            pl.BlockSpec((DEPTH, MLP_HIDDEN, DIM), full3),
            pl.BlockSpec((8, NCLS_PAD), full2),
            pl.BlockSpec((DIM, NCLS_PAD), full2),
        ],
        out_specs=pl.BlockSpec((None, G * 8, NCLS_PAD), lambda b: (b, 0, 0)),
        compiler_params=pltpu.CompilerParams(
            dimension_semantics=("parallel",)),   # shards groups across TCs on v7x
    )(xp_pad, patch_w, ebias, blk_bias,
      qkv_w_eff, proj_w, fc1_w, fc2_w, fin, head_w)

    # row 0 of each image's 8-row slab holds the cls-token logits.
    logits = out.reshape(n_steps, G, 8, NCLS_PAD)[:, :, 0, :NUM_CLASSES]
    return logits.reshape(B, NUM_CLASSES)


# ----------------------------------- main ------------------------------------
if __name__ == "__main__":
    key = jax.random.PRNGKey(0)
    k_params, k_x = jax.random.split(key)
    params = init_params(k_params)
    x = jax.random.normal(k_x, (2, IN_CH, IMG, IMG), dtype=jnp.float32)

    logits = jax.jit(lora_vit_forward)(params, x)
    jax.block_until_ready(logits)
    assert logits.shape == (2, NUM_CLASSES)
    assert bool(jnp.all(jnp.isfinite(logits)))
    print("KERNEL_OK")
</pallas_src>

<mosaic_0001>
module attributes {stable_mosaic.version = 11 : i64} {
  func.func @_fused_vit_kernel(%arg0: i32, %arg1: memref<1x32x192xbf16, #tpu.memory_space<vmem>>, %arg2: memref<192x64xbf16, #tpu.memory_space<vmem>>, %arg3: memref<32x64xf32, #tpu.memory_space<vmem>>, %arg4: memref<2x8x256xf32, #tpu.memory_space<vmem>>, %arg5: memref<2x64x192xbf16, #tpu.memory_space<vmem>>, %arg6: memref<2x64x64xbf16, #tpu.memory_space<vmem>>, %arg7: memref<2x64x256xbf16, #tpu.memory_space<vmem>>, %arg8: memref<2x256x64xbf16, #tpu.memory_space<vmem>>, %arg9: memref<8x128xf32, #tpu.memory_space<vmem>>, %arg10: memref<64x128xbf16, #tpu.memory_space<vmem>>, %arg11: memref<1x8x128xf32, #tpu.memory_space<vmem>>) attributes {dimension_semantics = [#tpu.dimension_semantics<parallel>], iteration_bounds = array<i64: 2>, scalar_prefetch = 0 : i64, scratch_operands = 0 : i64, tpu.core_type = #tpu.core_type<tc>, window_params = [{transform_indices = @transform_0, window_bounds = array<i64: 1, 32, 192>}, {pipeline_mode = #tpu.pipeline_mode<synchronous>, transform_indices = @transform_1, window_bounds = array<i64: 192, 64>}, {pipeline_mode = #tpu.pipeline_mode<synchronous>, transform_indices = @transform_2, window_bounds = array<i64: 32, 64>}, {pipeline_mode = #tpu.pipeline_mode<synchronous>, transform_indices = @transform_3, window_bounds = array<i64: 2, 8, 256>}, {pipeline_mode = #tpu.pipeline_mode<synchronous>, transform_indices = @transform_4, window_bounds = array<i64: 2, 64, 192>}, {pipeline_mode = #tpu.pipeline_mode<synchronous>, transform_indices = @transform_5, window_bounds = array<i64: 2, 64, 64>}, {pipeline_mode = #tpu.pipeline_mode<synchronous>, transform_indices = @transform_6, window_bounds = array<i64: 2, 64, 256>}, {pipeline_mode = #tpu.pipeline_mode<synchronous>, transform_indices = @transform_7, window_bounds = array<i64: 2, 256, 64>}, {pipeline_mode = #tpu.pipeline_mode<synchronous>, transform_indices = @transform_8, window_bounds = array<i64: 8, 128>}, {pipeline_mode = #tpu.pipeline_mode<synchronous>, transform_indices = @transform_9, window_bounds = array<i64: 64, 128>}, {transform_indices = @transform_10, window_bounds = array<i64: 1, 8, 128>}]} {
    %c0 = arith.constant 0 : index
    %c0_0 = arith.constant 0 : index
    %c0_1 = arith.constant 0 : index
    %0 = vector.load %arg1[%c0, %c0_0, %c0_1] : memref<1x32x192xbf16, #tpu.memory_space<vmem>>, vector<1x32x192xbf16>
    %1 = vector.shape_cast %0 : vector<1x32x192xbf16> to vector<32x192xbf16>
    %c0_2 = arith.constant 0 : index
    %c0_3 = arith.constant 0 : index
    %2 = vector.load %arg2[%c0_2, %c0_3] : memref<192x64xbf16, #tpu.memory_space<vmem>>, vector<192x64xbf16>
    %cst = arith.constant dense<0.000000e+00> : vector<32x64xf32>
    %3 = tpu.matmul %1, %2, %cst {dimension_numbers = #tpu.dot_dimension_numbers<[1], [0], [0], [1], [0, 0, 1, 1], [], []>} : vector<32x192xbf16>, vector<192x64xbf16>, vector<32x64xf32> -> vector<32x64xf32>
    %c0_4 = arith.constant 0 : index
    %c0_5 = arith.constant 0 : index
    %4 = vector.load %arg3[%c0_4, %c0_5] : memref<32x64xf32, #tpu.memory_space<vmem>>, vector<32x64xf32>
    %5 = arith.addf %3, %4 : vector<32x64xf32>
    %6 = tpu.iota {dimensions = array<i32: 1>} : vector<1x32xi32>
    %c17_i32 = arith.constant 17 : i32
    %7 = vector.broadcast %c17_i32 : i32 to vector<1x32xi32>
    %8 = arith.cmpi sge, %6, %7 : vector<1x32xi32>
    %cst_6 = arith.constant -1.000000e+30 : f32
    %cst_7 = arith.constant 0.000000e+00 : f32
    %9 = vector.broadcast %cst_6 : f32 to vector<1x32xf32>
    %10 = vector.broadcast %cst_7 : f32 to vector<1x32xf32>
    %11 = arith.select %8, %9, %10 : vector<1x32xi1>, vector<1x32xf32>
    %c0_8 = arith.constant 0 : index
    %c0_9 = arith.constant 0 : index
    %c0_10 = arith.constant 0 : index
    %12 = vector.load %arg4[%c0_8, %c0_9, %c0_10] : memref<2x8x256xf32, #tpu.memory_space<vmem>>, vector<1x8x256xf32>
    %13 = vector.shape_cast %12 : vector<1x8x256xf32> to vector<8x256xf32>
    %14 = vector.extract_strided_slice %13 {offsets = [0, 0], sizes = [1, 64], strides = [1, 1]} : vector<8x256xf32> to vector<1x64xf32>
    %15 = vector.extract_strided_slice %13 {offsets = [1, 0], sizes = [1, 64], strides = [1, 1]} : vector<8x256xf32> to vector<1x64xf32>
    %16 = vector.extract_strided_slice %13 {offsets = [2, 0], sizes = [1, 192], strides = [1, 1]} : vector<8x256xf32> to vector<1x192xf32>
    %17 = vector.extract_strided_slice %13 {offsets = [3, 0], sizes = [1, 64], strides = [1, 1]} : vector<8x256xf32> to vector<1x64xf32>
    %18 = vector.extract_strided_slice %13 {offsets = [4, 0], sizes = [1, 64], strides = [1, 1]} : vector<8x256xf32> to vector<1x64xf32>
    %19 = vector.extract_strided_slice %13 {offsets = [5, 0], sizes = [1, 64], strides = [1, 1]} : vector<8x256xf32> to vector<1x64xf32>
    %20 = vector.extract_strided_slice %13 {offsets = [6, 0], sizes = [1, 256], strides = [1, 1]} : vector<8x256xf32> to vector<1x256xf32>
    %21 = vector.extract_strided_slice %13 {offsets = [7, 0], sizes = [1, 64], strides = [1, 1]} : vector<8x256xf32> to vector<1x64xf32>
    %c0_11 = arith.constant 0 : index
    %c0_12 = arith.constant 0 : index
    %c0_13 = arith.constant 0 : index
    %22 = vector.load %arg6[%c0_11, %c0_12, %c0_13] : memref<2x64x64xbf16, #tpu.memory_space<vmem>>, vector<1x64x64xbf16>
    %23 = vector.shape_cast %22 : vector<1x64x64xbf16> to vector<64x64xbf16>
    %cst_14 = arith.constant dense<0.000000e+00> : vector<32xf32>
    %24 = vector.multi_reduction <add>, %5, %cst_14 [1] : vector<32x64xf32> to vector<32xf32>
    %25 = vector.shape_cast %24 : vector<32xf32> to vector<32x1xf32>
    %cst_15 = arith.constant 6.400000e+01 : f32
    %26 = vector.broadcast %cst_15 : f32 to vector<32x1xf32>
    %27 = arith.divf %25, %26 : vector<32x1xf32>
    %28 = arith.mulf %5, %5 : vector<32x64xf32>
    %cst_16 = arith.constant dense<0.000000e+00> : vector<32xf32>
    %29 = vector.multi_reduction <add>, %28, %cst_16 [1] : vector<32x64xf32> to vector<32xf32>
    %30 = vector.shape_cast %29 : vector<32xf32> to vector<32x1xf32>
    %cst_17 = arith.constant 6.400000e+01 : f32
    %31 = vector.broadcast %cst_17 : f32 to vector<32x1xf32>
    %32 = arith.divf %30, %31 : vector<32x1xf32>
    %33 = vector.broadcast %27 : vector<32x1xf32> to vector<32x64xf32>
    %34 = arith.subf %5, %33 : vector<32x64xf32>
    %35 = arith.mulf %27, %27 : vector<32x1xf32>
    %36 = arith.subf %32, %35 : vector<32x1xf32>
    %cst_18 = arith.constant 9.99999997E-7 : f32
    %37 = vector.broadcast %cst_18 : f32 to vector<32x1xf32>
    %38 = arith.addf %36, %37 : vector<32x1xf32>
    %39 = math.rsqrt %38 : vector<32x1xf32>
    %40 = vector.broadcast %39 : vector<32x1xf32> to vector<32x64xf32>
    %41 = arith.mulf %34, %40 : vector<32x64xf32>
    %42 = vector.broadcast %14 : vector<1x64xf32> to vector<32x64xf32>
    %43 = arith.mulf %41, %42 : vector<32x64xf32>
    %44 = vector.broadcast %15 : vector<1x64xf32> to vector<32x64xf32>
    %45 = arith.addf %43, %44 : vector<32x64xf32>
    %c0_19 = arith.constant 0 : index
    %c0_20 = arith.constant 0 : index
    %c0_21 = arith.constant 0 : index
    %46 = vector.load %arg5[%c0_19, %c0_20, %c0_21] : memref<2x64x192xbf16, #tpu.memory_space<vmem>>, vector<1x64x192xbf16>
    %47 = vector.shape_cast %46 : vector<1x64x192xbf16> to vector<64x192xbf16>
    %48 = arith.truncf %45 : vector<32x64xf32> to vector<32x64xbf16>
    %cst_22 = arith.constant dense<0.000000e+00> : vector<32x192xf32>
    %49 = tpu.matmul %48, %47, %cst_22 {dimension_numbers = #tpu.dot_dimension_numbers<[1], [0], [0], [1], [0, 0, 1, 1], [], []>} : vector<32x64xbf16>, vector<64x192xbf16>, vector<32x192xf32> -> vector<32x192xf32>
    %50 = vector.broadcast %16 : vector<1x192xf32> to vector<32x192xf32>
    %51 = arith.addf %49, %50 : vector<32x192xf32>
    %52 = vector.extract_strided_slice %51 {offsets = [0, 64], sizes = [32, 64], strides = [1, 1]} : vector<32x192xf32> to vector<32x64xf32>
    %53 = tpu.transpose %52, [1, 0] : vector<32x64xf32> -> vector<64x32xf32>
    %54 = vector.extract_strided_slice %51 {offsets = [0, 0], sizes = [32, 16], strides = [1, 1]} : vector<32x192xf32> to vector<32x16xf32>
    %55 = vector.extract_strided_slice %53 {offsets = [0, 0], sizes = [16, 32], strides = [1, 1]} : vector<64x32xf32> to vector<16x32xf32>
    %56 = vector.extract_strided_slice %51 {offsets = [0, 128], sizes = [32, 16], strides = [1, 1]} : vector<32x192xf32> to vector<32x16xf32>
    %57 = arith.truncf %54 : vector<32x16xf32> to vector<32x16xbf16>
    %58 = arith.truncf %55 : vector<16x32xf32> to vector<16x32xbf16>
    %cst_23 = arith.constant dense<0.000000e+00> : vector<32x32xf32>
    %59 = tpu.matmul %57, %58, %cst_23 {dimension_numbers = #tpu.dot_dimension_numbers<[1], [0], [0], [1], [0, 0, 1, 1], [], []>} : vector<32x16xbf16>, vector<16x32xbf16>, vector<32x32xf32> -> vector<32x32xf32>
    %cst_24 = arith.constant 2.500000e-01 : f32
    %60 = vector.broadcast %cst_24 : f32 to vector<32x32xf32>
    %61 = arith.mulf %59, %60 : vector<32x32xf32>
    %62 = vector.broadcast %11 : vector<1x32xf32> to vector<32x32xf32>
    %63 = arith.addf %61, %62 : vector<32x32xf32>
    %cst_25 = arith.constant dense<0xFF800000> : vector<32xf32>
    %64 = vector.multi_reduction <maximumf>, %63, %cst_25 [1] : vector<32x32xf32> to vector<32xf32>
    %65 = vector.shape_cast %64 : vector<32xf32> to vector<32x1xf32>
    %66 = vector.broadcast %65 : vector<32x1xf32> to vector<32x32xf32>
    %67 = arith.subf %63, %66 : vector<32x32xf32>
    %68 = math.exp %67 : vector<32x32xf32>
    %cst_26 = arith.constant dense<0.000000e+00> : vector<32xf32>
    %69 = vector.multi_reduction <add>, %68, %cst_26 [1] : vector<32x32xf32> to vector<32xf32>
    %70 = vector.shape_cast %69 : vector<32xf32> to vector<32x1xf32>
    %71 = tpu.reciprocal %70 {approx = true} : vector<32x1xf32> -> vector<32x1xf32>
    %72 = vector.broadcast %71 : vector<32x1xf32> to vector<32x32xf32>
    %73 = arith.mulf %68, %72 : vector<32x32xf32>
    %74 = arith.truncf %73 : vector<32x32xf32> to vector<32x32xbf16>
    %75 = arith.truncf %56 : vector<32x16xf32> to vector<32x16xbf16>
    %cst_27 = arith.constant dense<0.000000e+00> : vector<32x16xf32>
    %76 = tpu.matmul %74, %75, %cst_27 {dimension_numbers = #tpu.dot_dimension_numbers<[1], [0], [0], [1], [0, 0, 1, 1], [], []>} : vector<32x32xbf16>, vector<32x16xbf16>, vector<32x16xf32> -> vector<32x16xf32>
    %77 = vector.extract_strided_slice %23 {offsets = [0, 0], sizes = [16, 64], strides = [1, 1]} : vector<64x64xbf16> to vector<16x64xbf16>
    %78 = arith.truncf %76 : vector<32x16xf32> to vector<32x16xbf16>
    %cst_28 = arith.constant dense<0.000000e+00> : vector<32x64xf32>
    %79 = tpu.matmul %78, %77, %cst_28 {dimension_numbers = #tpu.dot_dimension_numbers<[1], [0], [0], [1], [0, 0, 1, 1], [], []>} : vector<32x16xbf16>, vector<16x64xbf16>, vector<32x64xf32> -> vector<32x64xf32>
    %80 = vector.extract_strided_slice %51 {offsets = [0, 16], sizes = [32, 16], strides = [1, 1]} : vector<32x192xf32> to vector<32x16xf32>
    %81 = vector.extract_strided_slice %53 {offsets = [16, 0], sizes = [16, 32], strides = [1, 1]} : vector<64x32xf32> to vector<16x32xf32>
    %82 = vector.extract_strided_slice %51 {offsets = [0, 144], sizes = [32, 16], strides = [1, 1]} : vector<32x192xf32> to vector<32x16xf32>
    %83 = arith.truncf %80 : vector<32x16xf32> to vector<32x16xbf16>
    %84 = arith.truncf %81 : vector<16x32xf32> to vector<16x32xbf16>
    %cst_29 = arith.constant dense<0.000000e+00> : vector<32x32xf32>
    %85 = tpu.matmul %83, %84, %cst_29 {dimension_numbers = #tpu.dot_dimension_numbers<[1], [0], [0], [1], [0, 0, 1, 1], [], []>} : vector<32x16xbf16>, vector<16x32xbf16>, vector<32x32xf32> -> vector<32x32xf32>
    %cst_30 = arith.constant 2.500000e-01 : f32
    %86 = vector.broadcast %cst_30 : f32 to vector<32x32xf32>
    %87 = arith.mulf %85, %86 : vector<32x32xf32>
    %88 = vector.broadcast %11 : vector<1x32xf32> to vector<32x32xf32>
    %89 = arith.addf %87, %88 : vector<32x32xf32>
    %cst_31 = arith.constant dense<0xFF800000> : vector<32xf32>
    %90 = vector.multi_reduction <maximumf>, %89, %cst_31 [1] : vector<32x32xf32> to vector<32xf32>
    %91 = vector.shape_cast %90 : vector<32xf32> to vector<32x1xf32>
    %92 = vector.broadcast %91 : vector<32x1xf32> to vector<32x32xf32>
    %93 = arith.subf %89, %92 : vector<32x32xf32>
    %94 = math.exp %93 : vector<32x32xf32>
    %cst_32 = arith.constant dense<0.000000e+00> : vector<32xf32>
    %95 = vector.multi_reduction <add>, %94, %cst_32 [1] : vector<32x32xf32> to vector<32xf32>
    %96 = vector.shape_cast %95 : vector<32xf32> to vector<32x1xf32>
    %97 = tpu.reciprocal %96 {approx = true} : vector<32x1xf32> -> vector<32x1xf32>
    %98 = vector.broadcast %97 : vector<32x1xf32> to vector<32x32xf32>
    %99 = arith.mulf %94, %98 : vector<32x32xf32>
    %100 = arith.truncf %99 : vector<32x32xf32> to vector<32x32xbf16>
    %101 = arith.truncf %82 : vector<32x16xf32> to vector<32x16xbf16>
    %cst_33 = arith.constant dense<0.000000e+00> : vector<32x16xf32>
    %102 = tpu.matmul %100, %101, %cst_33 {dimension_numbers = #tpu.dot_dimension_numbers<[1], [0], [0], [1], [0, 0, 1, 1], [], []>} : vector<32x32xbf16>, vector<32x16xbf16>, vector<32x16xf32> -> vector<32x16xf32>
    %103 = vector.extract_strided_slice %23 {offsets = [16, 0], sizes = [16, 64], strides = [1, 1]} : vector<64x64xbf16> to vector<16x64xbf16>
    %104 = arith.truncf %102 : vector<32x16xf32> to vector<32x16xbf16>
    %cst_34 = arith.constant dense<0.000000e+00> : vector<32x64xf32>
    %105 = tpu.matmul %104, %103, %cst_34 {dimension_numbers = #tpu.dot_dimension_numbers<[1], [0], [0], [1], [0, 0, 1, 1], [], []>} : vector<32x16xbf16>, vector<16x64xbf16>, vector<32x64xf32> -> vector<32x64xf32>
    %106 = arith.addf %79, %105 : vector<32x64xf32>
    %107 = vector.extract_strided_slice %51 {offsets = [0, 32], sizes = [32, 16], strides = [1, 1]} : vector<32x192xf32> to vector<32x16xf32>
    %108 = vector.extract_strided_slice %53 {offsets = [32, 0], sizes = [16, 32], strides = [1, 1]} : vector<64x32xf32> to vector<16x32xf32>
    %109 = vector.extract_strided_slice %51 {offsets = [0, 160], sizes = [32, 16], strides = [1, 1]} : vector<32x192xf32> to vector<32x16xf32>
    %110 = arith.truncf %107 : vector<32x16xf32> to vector<32x16xbf16>
    %111 = arith.truncf %108 : vector<16x32xf32> to vector<16x32xbf16>
    %cst_35 = arith.constant dense<0.000000e+00> : vector<32x32xf32>
    %112 = tpu.matmul %110, %111, %cst_35 {dimension_numbers = #tpu.dot_dimension_numbers<[1], [0], [0], [1], [0, 0, 1, 1], [], []>} : vector<32x16xbf16>, vector<16x32xbf16>, vector<32x32xf32> -> vector<32x32xf32>
    %cst_36 = arith.constant 2.500000e-01 : f32
    %113 = vector.broadcast %cst_36 : f32 to vector<32x32xf32>
    %114 = arith.mulf %112, %113 : vector<32x32xf32>
    %115 = vector.broadcast %11 : vector<1x32xf32> to vector<32x32xf32>
    %116 = arith.addf %114, %115 : vector<32x32xf32>
    %cst_37 = arith.constant dense<0xFF800000> : vector<32xf32>
    %117 = vector.multi_reduction <maximumf>, %116, %cst_37 [1] : vector<32x32xf32> to vector<32xf32>
    %118 = vector.shape_cast %117 : vector<32xf32> to vector<32x1xf32>
    %119 = vector.broadcast %118 : vector<32x1xf32> to vector<32x32xf32>
    %120 = arith.subf %116, %119 : vector<32x32xf32>
    %121 = math.exp %120 : vector<32x32xf32>
    %cst_38 = arith.constant dense<0.000000e+00> : vector<32xf32>
    %122 = vector.multi_reduction <add>, %121, %cst_38 [1] : vector<32x32xf32> to vector<32xf32>
    %123 = vector.shape_cast %122 : vector<32xf32> to vector<32x1xf32>
    %124 = tpu.reciprocal %123 {approx = true} : vector<32x1xf32> -> vector<32x1xf32>
    %125 = vector.broadcast %124 : vector<32x1xf32> to vector<32x32xf32>
    %126 = arith.mulf %121, %125 : vector<32x32xf32>
    %127 = arith.truncf %126 : vector<32x32xf32> to vector<32x32xbf16>
    %128 = arith.truncf %109 : vector<32x16xf32> to vector<32x16xbf16>
    %cst_39 = arith.constant dense<0.000000e+00> : vector<32x16xf32>
    %129 = tpu.matmul %127, %128, %cst_39 {dimension_numbers = #tpu.dot_dimension_numbers<[1], [0], [0], [1], [0, 0, 1, 1], [], []>} : vector<32x32xbf16>, vector<32x16xbf16>, vector<32x16xf32> -> vector<32x16xf32>
    %130 = vector.extract_strided_slice %23 {offsets = [32, 0], sizes = [16, 64], strides = [1, 1]} : vector<64x64xbf16> to vector<16x64xbf16>
    %131 = arith.truncf %129 : vector<32x16xf32> to vector<32x16xbf16>
    %cst_40 = arith.constant dense<0.000000e+00> : vector<32x64xf32>
    %132 = tpu.matmul %131, %130, %cst_40 {dimension_numbers = #tpu.dot_dimension_numbers<[1], [0], [0], [1], [0, 0, 1, 1], [], []>} : vector<32x16xbf16>, vector<16x64xbf16>, vector<32x64xf32> -> vector<32x64xf32>
    %133 = arith.addf %106, %132 : vector<32x64xf32>
    %134 = vector.extract_strided_slice %51 {offsets = [0, 48], sizes = [32, 16], strides = [1, 1]} : vector<32x192xf32> to vector<32x16xf32>
    %135 = vector.extract_strided_slice %53 {offsets = [48, 0], sizes = [16, 32], strides = [1, 1]} : vector<64x32xf32> to vector<16x32xf32>
    %136 = vector.extract_strided_slice %51 {offsets = [0, 176], sizes = [32, 16], strides = [1, 1]} : vector<32x192xf32> to vector<32x16xf32>
    %137 = arith.truncf %134 : vector<32x16xf32> to vector<32x16xbf16>
    %138 = arith.truncf %135 : vector<16x32xf32> to vector<16x32xbf16>
    %cst_41 = arith.constant dense<0.000000e+00> : vector<32x32xf32>
    %139 = tpu.matmul %137, %138, %cst_41 {dimension_numbers = #tpu.dot_dimension_numbers<[1], [0], [0], [1], [0, 0, 1, 1], [], []>} : vector<32x16xbf16>, vector<16x32xbf16>, vector<32x32xf32> -> vector<32x32xf32>
    %cst_42 = arith.constant 2.500000e-01 : f32
    %140 = vector.broadcast %cst_42 : f32 to vector<32x32xf32>
    %141 = arith.mulf %139, %140 : vector<32x32xf32>
    %142 = vector.broadcast %11 : vector<1x32xf32> to vector<32x32xf32>
    %143 = arith.addf %141, %142 : vector<32x32xf32>
    %cst_43 = arith.constant dense<0xFF800000> : vector<32xf32>
    %144 = vector.multi_reduction <maximumf>, %143, %cst_43 [1] : vector<32x32xf32> to vector<32xf32>
    %145 = vector.shape_cast %144 : vector<32xf32> to vector<32x1xf32>
    %146 = vector.broadcast %145 : vector<32x1xf32> to vector<32x32xf32>
    %147 = arith.subf %143, %146 : vector<32x32xf32>
    %148 = math.exp %147 : vector<32x32xf32>
    %cst_44 = arith.constant dense<0.000000e+00> : vector<32xf32>
    %149 = vector.multi_reduction <add>, %148, %cst_44 [1] : vector<32x32xf32> to vector<32xf32>
    %150 = vector.shape_cast %149 : vector<32xf32> to vector<32x1xf32>
    %151 = tpu.reciprocal %150 {approx = true} : vector<32x1xf32> -> vector<32x1xf32>
    %152 = vector.broadcast %151 : vector<32x1xf32> to vector<32x32xf32>
    %153 = arith.mulf %148, %152 : vector<32x32xf32>
    %154 = arith.truncf %153 : vector<32x32xf32> to vector<32x32xbf16>
    %155 = arith.truncf %136 : vector<32x16xf32> to vector<32x16xbf16>
    %cst_45 = arith.constant dense<0.000000e+00> : vector<32x16xf32>
    %156 = tpu.matmul %154, %155, %cst_45 {dimension_numbers = #tpu.dot_dimension_numbers<[1], [0], [0], [1], [0, 0, 1, 1], [], []>} : vector<32x32xbf16>, vector<32x16xbf16>, vector<32x16xf32> -> vector<32x16xf32>
    %157 = vector.extract_strided_slice %23 {offsets = [48, 0], sizes = [16, 64], strides = [1, 1]} : vector<64x64xbf16> to vector<16x64xbf16>
    %158 = arith.truncf %156 : vector<32x16xf32> to vector<32x16xbf16>
    %cst_46 = arith.constant dense<0.000000e+00> : vector<32x64xf32>
    %159 = tpu.matmul %158, %157, %cst_46 {dimension_numbers = #tpu.dot_dimension_numbers<[1], [0], [0], [1], [0, 0, 1, 1], [], []>} : vector<32x16xbf16>, vector<16x64xbf16>, vector<32x64xf32> -> vector<32x64xf32>
    %160 = arith.addf %133, %159 : vector<32x64xf32>
    %161 = arith.addf %5, %160 : vector<32x64xf32>
    %162 = vector.broadcast %17 : vector<1x64xf32> to vector<32x64xf32>
    %163 = arith.addf %161, %162 : vector<32x64xf32>
    %cst_47 = arith.constant dense<0.000000e+00> : vector<32xf32>
    %164 = vector.multi_reduction <add>, %163, %cst_47 [1] : vector<32x64xf32> to vector<32xf32>
    %165 = vector.shape_cast %164 : vector<32xf32> to vector<32x1xf32>
    %cst_48 = arith.constant 6.400000e+01 : f32
    %166 = vector.broadcast %cst_48 : f32 to vector<32x1xf32>
    %167 = arith.divf %165, %166 : vector<32x1xf32>
    %168 = arith.mulf %163, %163 : vector<32x64xf32>
    %cst_49 = arith.constant dense<0.000000e+00> : vector<32xf32>
    %169 = vector.multi_reduction <add>, %168, %cst_49 [1] : vector<32x64xf32> to vector<32xf32>
    %170 = vector.shape_cast %169 : vector<32xf32> to vector<32x1xf32>
    %cst_50 = arith.constant 6.400000e+01 : f32
    %171 = vector.broadcast %cst_50 : f32 to vector<32x1xf32>
    %172 = arith.divf %170, %171 : vector<32x1xf32>
    %173 = vector.broadcast %167 : vector<32x1xf32> to vector<32x64xf32>
    %174 = arith.subf %163, %173 : vector<32x64xf32>
    %175 = arith.mulf %167, %167 : vector<32x1xf32>
    %176 = arith.subf %172, %175 : vector<32x1xf32>
    %cst_51 = arith.constant 9.99999997E-7 : f32
    %177 = vector.broadcast %cst_51 : f32 to vector<32x1xf32>
    %178 = arith.addf %176, %177 : vector<32x1xf32>
    %179 = math.rsqrt %178 : vector<32x1xf32>
    %180 = vector.broadcast %179 : vector<32x1xf32> to vector<32x64xf32>
    %181 = arith.mulf %174, %180 : vector<32x64xf32>
    %182 = vector.broadcast %18 : vector<1x64xf32> to vector<32x64xf32>
    %183 = arith.mulf %181, %182 : vector<32x64xf32>
    %184 = vector.broadcast %19 : vector<1x64xf32> to vector<32x64xf32>
    %185 = arith.addf %183, %184 : vector<32x64xf32>
    %c0_52 = arith.constant 0 : index
    %c0_53 = arith.constant 0 : index
    %c0_54 = arith.constant 0 : index
    %186 = vector.load %arg7[%c0_52, %c0_53, %c0_54] : memref<2x64x256xbf16, #tpu.memory_space<vmem>>, vector<1x64x256xbf16>
    %187 = vector.shape_cast %186 : vector<1x64x256xbf16> to vector<64x256xbf16>
    %188 = arith.truncf %185 : vector<32x64xf32> to vector<32x64xbf16>
    %cst_55 = arith.constant dense<0.000000e+00> : vector<32x256xf32>
    %189 = tpu.matmul %188, %187, %cst_55 {dimension_numbers = #tpu.dot_dimension_numbers<[1], [0], [0], [1], [0, 0, 1, 1], [], []>} : vector<32x64xbf16>, vector<64x256xbf16>, vector<32x256xf32> -> vector<32x256xf32>
    %190 = vector.broadcast %20 : vector<1x256xf32> to vector<32x256xf32>
    %191 = arith.addf %189, %190 : vector<32x256xf32>
    %192 = arith.mulf %191, %191 : vector<32x256xf32>
    %193 = arith.mulf %191, %192 : vector<32x256xf32>
    %cst_56 = arith.constant 4.471500e-02 : f32
    %194 = vector.broadcast %cst_56 : f32 to vector<32x256xf32>
    %195 = arith.mulf %194, %193 : vector<32x256xf32>
    %196 = arith.addf %191, %195 : vector<32x256xf32>
    %cst_57 = arith.constant 0.797884583 : f32
    %197 = vector.broadcast %cst_57 : f32 to vector<32x256xf32>
    %198 = arith.mulf %197, %196 : vector<32x256xf32>
    %199 = math.tanh %198 : vector<32x256xf32>
    %cst_58 = arith.constant 1.000000e+00 : f32
    %200 = vector.broadcast %cst_58 : f32 to vector<32x256xf32>
    %201 = arith.addf %200, %199 : vector<32x256xf32>
    %cst_59 = arith.constant 5.000000e-01 : f32
    %202 = vector.broadcast %cst_59 : f32 to vector<32x256xf32>
    %203 = arith.mulf %202, %201 : vector<32x256xf32>
    %204 = arith.mulf %191, %203 : vector<32x256xf32>
    %c0_60 = arith.constant 0 : index
    %c0_61 = arith.constant 0 : index
    %c0_62 = arith.constant 0 : index
    %205 = vector.load %arg8[%c0_60, %c0_61, %c0_62] : memref<2x256x64xbf16, #tpu.memory_space<vmem>>, vector<1x256x64xbf16>
    %206 = vector.shape_cast %205 : vector<1x256x64xbf16> to vector<256x64xbf16>
    %207 = arith.truncf %204 : vector<32x256xf32> to vector<32x256xbf16>
    %cst_63 = arith.constant dense<0.000000e+00> : vector<32x64xf32>
    %208 = tpu.matmul %207, %206, %cst_63 {dimension_numbers = #tpu.dot_dimension_numbers<[1], [0], [0], [1], [0, 0, 1, 1], [], []>} : vector<32x256xbf16>, vector<256x64xbf16>, vector<32x64xf32> -> vector<32x64xf32>
    %209 = arith.addf %163, %208 : vector<32x64xf32>
    %210 = vector.broadcast %21 : vector<1x64xf32> to vector<32x64xf32>
    %211 = arith.addf %209, %210 : vector<32x64xf32>
    %c1 = arith.constant 1 : index
    %c0_64 = arith.constant 0 : index
    %c0_65 = arith.constant 0 : index
    %212 = vector.load %arg4[%c1, %c0_64, %c0_65] : memref<2x8x256xf32, #tpu.memory_space<vmem>>, vector<1x8x256xf32>
    %213 = vector.shape_cast %212 : vector<1x8x256xf32> to vector<8x256xf32>
    %214 = vector.extract_strided_slice %213 {offsets = [0, 0], sizes = [1, 64], strides = [1, 1]} : vector<8x256xf32> to vector<1x64xf32>
    %215 = vector.extract_strided_slice %213 {offsets = [1, 0], sizes = [1, 64], strides = [1, 1]} : vector<8x256xf32> to vector<1x64xf32>
    %216 = vector.extract_strided_slice %213 {offsets = [2, 0], sizes = [1, 192], strides = [1, 1]} : vector<8x256xf32> to vector<1x192xf32>
    %217 = vector.extract_strided_slice %213 {offsets = [3, 0], sizes = [1, 64], strides = [1, 1]} : vector<8x256xf32> to vector<1x64xf32>
    %218 = vector.extract_strided_slice %213 {offsets = [4, 0], sizes = [1, 64], strides = [1, 1]} : vector<8x256xf32> to vector<1x64xf32>
    %219 = vector.extract_strided_slice %213 {offsets = [5, 0], sizes = [1, 64], strides = [1, 1]} : vector<8x256xf32> to vector<1x64xf32>
    %220 = vector.extract_strided_slice %213 {offsets = [6, 0], sizes = [1, 256], strides = [1, 1]} : vector<8x256xf32> to vector<1x256xf32>
    %221 = vector.extract_strided_slice %213 {offsets = [7, 0], sizes = [1, 64], strides = [1, 1]} : vector<8x256xf32> to vector<1x64xf32>
    %c1_66 = arith.constant 1 : index
    %c0_67 = arith.constant 0 : index
    %c0_68 = arith.constant 0 : index
    %222 = vector.load %arg6[%c1_66, %c0_67, %c0_68] : memref<2x64x64xbf16, #tpu.memory_space<vmem>>, vector<1x64x64xbf16>
    %223 = vector.shape_cast %222 : vector<1x64x64xbf16> to vector<64x64xbf16>
    %cst_69 = arith.constant dense<0.000000e+00> : vector<32xf32>
    %224 = vector.multi_reduction <add>, %211, %cst_69 [1] : vector<32x64xf32> to vector<32xf32>
    %225 = vector.shape_cast %224 : vector<32xf32> to vector<32x1xf32>
    %cst_70 = arith.constant 6.400000e+01 : f32
    %226 = vector.broadcast %cst_70 : f32 to vector<32x1xf32>
    %227 = arith.divf %225, %226 : vector<32x1xf32>
    %228 = arith.mulf %211, %211 : vector<32x64xf32>
    %cst_71 = arith.constant dense<0.000000e+00> : vector<32xf32>
    %229 = vector.multi_reduction <add>, %228, %cst_71 [1] : vector<32x64xf32> to vector<32xf32>
    %230 = vector.shape_cast %229 : vector<32xf32> to vector<32x1xf32>
    %cst_72 = arith.constant 6.400000e+01 : f32
    %231 = vector.broadcast %cst_72 : f32 to vector<32x1xf32>
    %232 = arith.divf %230, %231 : vector<32x1xf32>
    %233 = vector.broadcast %227 : vector<32x1xf32> to vector<32x64xf32>
    %234 = arith.subf %211, %233 : vector<32x64xf32>
    %235 = arith.mulf %227, %227 : vector<32x1xf32>
    %236 = arith.subf %232, %235 : vector<32x1xf32>
    %cst_73 = arith.constant 9.99999997E-7 : f32
    %237 = vector.broadcast %cst_73 : f32 to vector<32x1xf32>
    %238 = arith.addf %236, %237 : vector<32x1xf32>
    %239 = math.rsqrt %238 : vector<32x1xf32>
    %240 = vector.broadcast %239 : vector<32x1xf32> to vector<32x64xf32>
    %241 = arith.mulf %234, %240 : vector<32x64xf32>
    %242 = vector.broadcast %214 : vector<1x64xf32> to vector<32x64xf32>
    %243 = arith.mulf %241, %242 : vector<32x64xf32>
    %244 = vector.broadcast %215 : vector<1x64xf32> to vector<32x64xf32>
    %245 = arith.addf %243, %244 : vector<32x64xf32>
    %c1_74 = arith.constant 1 : index
    %c0_75 = arith.constant 0 : index
    %c0_76 = arith.constant 0 : index
    %246 = vector.load %arg5[%c1_74, %c0_75, %c0_76] : memref<2x64x192xbf16, #tpu.memory_space<vmem>>, vector<1x64x192xbf16>
    %247 = vector.shape_cast %246 : vector<1x64x192xbf16> to vector<64x192xbf16>
    %248 = arith.truncf %245 : vector<32x64xf32> to vector<32x64xbf16>
    %cst_77 = arith.constant dense<0.000000e+00> : vector<32x192xf32>
    %249 = tpu.matmul %248, %247, %cst_77 {dimension_numbers = #tpu.dot_dimension_numbers<[1], [0], [0], [1], [0, 0, 1, 1], [], []>} : vector<32x64xbf16>, vector<64x192xbf16>, vector<32x192xf32> -> vector<32x192xf32>
    %250 = vector.broadcast %216 : vector<1x192xf32> to vector<32x192xf32>
    %251 = arith.addf %249, %250 : vector<32x192xf32>
    %252 = vector.extract_strided_slice %251 {offsets = [0, 64], sizes = [32, 64], strides = [1, 1]} : vector<32x192xf32> to vector<32x64xf32>
    %253 = tpu.transpose %252, [1, 0] : vector<32x64xf32> -> vector<64x32xf32>
    %254 = vector.extract_strided_slice %251 {offsets = [0, 0], sizes = [32, 16], strides = [1, 1]} : vector<32x192xf32> to vector<32x16xf32>
    %255 = vector.extract_strided_slice %253 {offsets = [0, 0], sizes = [16, 32], strides = [1, 1]} : vector<64x32xf32> to vector<16x32xf32>
    %256 = vector.extract_strided_slice %251 {offsets = [0, 128], sizes = [32, 16], strides = [1, 1]} : vector<32x192xf32> to vector<32x16xf32>
    %257 = arith.truncf %254 : vector<32x16xf32> to vector<32x16xbf16>
    %258 = arith.truncf %255 : vector<16x32xf32> to vector<16x32xbf16>
    %cst_78 = arith.constant dense<0.000000e+00> : vector<32x32xf32>
    %259 = tpu.matmul %257, %258, %cst_78 {dimension_numbers = #tpu.dot_dimension_numbers<[1], [0], [0], [1], [0, 0, 1, 1], [], []>} : vector<32x16xbf16>, vector<16x32xbf16>, vector<32x32xf32> -> vector<32x32xf32>
    %cst_79 = arith.constant 2.500000e-01 : f32
    %260 = vector.broadcast %cst_79 : f32 to vector<32x32xf32>
    %261 = arith.mulf %259, %260 : vector<32x32xf32>
    %262 = vector.broadcast %11 : vector<1x32xf32> to vector<32x32xf32>
    %263 = arith.addf %261, %262 : vector<32x32xf32>
    %cst_80 = arith.constant dense<0xFF800000> : vector<32xf32>
    %264 = vector.multi_reduction <maximumf>, %263, %cst_80 [1] : vector<32x32xf32> to vector<32xf32>
    %265 = vector.shape_cast %264 : vector<32xf32> to vector<32x1xf32>
    %266 = vector.broadcast %265 : vector<32x1xf32> to vector<32x32xf32>
    %267 = arith.subf %263, %266 : vector<32x32xf32>
    %268 = math.exp %267 : vector<32x32xf32>
    %cst_81 = arith.constant dense<0.000000e+00> : vector<32xf32>
    %269 = vector.multi_reduction <add>, %268, %cst_81 [1] : vector<32x32xf32> to vector<32xf32>
    %270 = vector.shape_cast %269 : vector<32xf32> to vector<32x1xf32>
    %271 = tpu.reciprocal %270 {approx = true} : vector<32x1xf32> -> vector<32x1xf32>
    %272 = vector.broadcast %271 : vector<32x1xf32> to vector<32x32xf32>
    %273 = arith.mulf %268, %272 : vector<32x32xf32>
    %274 = arith.truncf %273 : vector<32x32xf32> to vector<32x32xbf16>
    %275 = arith.truncf %256 : vector<32x16xf32> to vector<32x16xbf16>
    %cst_82 = arith.constant dense<0.000000e+00> : vector<32x16xf32>
    %276 = tpu.matmul %274, %275, %cst_82 {dimension_numbers = #tpu.dot_dimension_numbers<[1], [0], [0], [1], [0, 0, 1, 1], [], []>} : vector<32x32xbf16>, vector<32x16xbf16>, vector<32x16xf32> -> vector<32x16xf32>
    %277 = vector.extract_strided_slice %223 {offsets = [0, 0], sizes = [16, 64], strides = [1, 1]} : vector<64x64xbf16> to vector<16x64xbf16>
    %278 = arith.truncf %276 : vector<32x16xf32> to vector<32x16xbf16>
    %cst_83 = arith.constant dense<0.000000e+00> : vector<32x64xf32>
    %279 = tpu.matmul %278, %277, %cst_83 {dimension_numbers = #tpu.dot_dimension_numbers<[1], [0], [0], [1], [0, 0, 1, 1], [], []>} : vector<32x16xbf16>, vector<16x64xbf16>, vector<32x64xf32> -> vector<32x64xf32>
    %280 = vector.extract_strided_slice %251 {offsets = [0, 16], sizes = [32, 16], strides = [1, 1]} : vector<32x192xf32> to vector<32x16xf32>
    %281 = vector.extract_strided_slice %253 {offsets = [16, 0], sizes = [16, 32], strides = [1, 1]} : vector<64x32xf32> to vector<16x32xf32>
    %282 = vector.extract_strided_slice %251 {offsets = [0, 144], sizes = [32, 16], strides = [1, 1]} : vector<32x192xf32> to vector<32x16xf32>
    %283 = arith.truncf %280 : vector<32x16xf32> to vector<32x16xbf16>
    %284 = arith.truncf %281 : vector<16x32xf32> to vector<16x32xbf16>
    %cst_84 = arith.constant dense<0.000000e+00> : vector<32x32xf32>
    %285 = tpu.matmul %283, %284, %cst_84 {dimension_numbers = #tpu.dot_dimension_numbers<[1], [0], [0], [1], [0, 0, 1, 1], [], []>} : vector<32x16xbf16>, vector<16x32xbf16>, vector<32x32xf32> -> vector<32x32xf32>
    %cst_85 = arith.constant 2.500000e-01 : f32
    %286 = vector.broadcast %cst_85 : f32 to vector<32x32xf32>
    %287 = arith.mulf %285, %286 : vector<32x32xf32>
    %288 = vector.broadcast %11 : vector<1x32xf32> to vector<32x32xf32>
    %289 = arith.addf %287, %288 : vector<32x32xf32>
    %cst_86 = arith.constant dense<0xFF800000> : vector<32xf32>
    %290 = vector.multi_reduction <maximumf>, %289, %cst_86 [1] : vector<32x32xf32> to vector<32xf32>
    %291 = vector.shape_cast %290 : vector<32xf32> to vector<32x1xf32>
    %292 = vector.broadcast %291 : vector<32x1xf32> to vector<32x32xf32>
    %293 = arith.subf %289, %292 : vector<32x32xf32>
    %294 = math.exp %293 : vector<32x32xf32>
    %cst_87 = arith.constant dense<0.000000e+00> : vector<32xf32>
    %295 = vector.multi_reduction <add>, %294, %cst_87 [1] : vector<32x32xf32> to vector<32xf32>
    %296 = vector.shape_cast %295 : vector<32xf32> to vector<32x1xf32>
    %297 = tpu.reciprocal %296 {approx = true} : vector<32x1xf32> -> vector<32x1xf32>
    %298 = vector.broadcast %297 : vector<32x1xf32> to vector<32x32xf32>
    %299 = arith.mulf %294, %298 : vector<32x32xf32>
    %300 = arith.truncf %299 : vector<32x32xf32> to vector<32x32xbf16>
    %301 = arith.truncf %282 : vector<32x16xf32> to vector<32x16xbf16>
    %cst_88 = arith.constant dense<0.000000e+00> : vector<32x16xf32>
    %302 = tpu.matmul %300, %301, %cst_88 {dimension_numbers = #tpu.dot_dimension_numbers<[1], [0], [0], [1], [0, 0, 1, 1], [], []>} : vector<32x32xbf16>, vector<32x16xbf16>, vector<32x16xf32> -> vector<32x16xf32>
    %303 = vector.extract_strided_slice %223 {offsets = [16, 0], sizes = [16, 64], strides = [1, 1]} : vector<64x64xbf16> to vector<16x64xbf16>
    %304 = arith.truncf %302 : vector<32x16xf32> to vector<32x16xbf16>
    %cst_89 = arith.constant dense<0.000000e+00> : vector<32x64xf32>
    %305 = tpu.matmul %304, %303, %cst_89 {dimension_numbers = #tpu.dot_dimension_numbers<[1], [0], [0], [1], [0, 0, 1, 1], [], []>} : vector<32x16xbf16>, vector<16x64xbf16>, vector<32x64xf32> -> vector<32x64xf32>
    %306 = arith.addf %279, %305 : vector<32x64xf32>
    %307 = vector.extract_strided_slice %251 {offsets = [0, 32], sizes = [32, 16], strides = [1, 1]} : vector<32x192xf32> to vector<32x16xf32>
    %308 = vector.extract_strided_slice %253 {offsets = [32, 0], sizes = [16, 32], strides = [1, 1]} : vector<64x32xf32> to vector<16x32xf32>
    %309 = vector.extract_strided_slice %251 {offsets = [0, 160], sizes = [32, 16], strides = [1, 1]} : vector<32x192xf32> to vector<32x16xf32>
    %310 = arith.truncf %307 : vector<32x16xf32> to vector<32x16xbf16>
    %311 = arith.truncf %308 : vector<16x32xf32> to vector<16x32xbf16>
    %cst_90 = arith.constant dense<0.000000e+00> : vector<32x32xf32>
    %312 = tpu.matmul %310, %311, %cst_90 {dimension_numbers = #tpu.dot_dimension_numbers<[1], [0], [0], [1], [0, 0, 1, 1], [], []>} : vector<32x16xbf16>, vector<16x32xbf16>, vector<32x32xf32> -> vector<32x32xf32>
    %cst_91 = arith.constant 2.500000e-01 : f32
    %313 = vector.broadcast %cst_91 : f32 to vector<32x32xf32>
    %314 = arith.mulf %312, %313 : vector<32x32xf32>
    %315 = vector.broadcast %11 : vector<1x32xf32> to vector<32x32xf32>
    %316 = arith.addf %314, %315 : vector<32x32xf32>
    %cst_92 = arith.constant dense<0xFF800000> : vector<32xf32>
    %317 = vector.multi_reduction <maximumf>, %316, %cst_92 [1] : vector<32x32xf32> to vector<32xf32>
    %318 = vector.shape_cast %317 : vector<32xf32> to vector<32x1xf32>
    %319 = vector.broadcast %318 : vector<32x1xf32> to vector<32x32xf32>
    %320 = arith.subf %316, %319 : vector<32x32xf32>
    %321 = math.exp %320 : vector<32x32xf32>
    %cst_93 = arith.constant dense<0.000000e+00> : vector<32xf32>
    %322 = vector.multi_reduction <add>, %321, %cst_93 [1] : vector<32x32xf32> to vector<32xf32>
    %323 = vector.shape_cast %322 : vector<32xf32> to vector<32x1xf32>
    %324 = tpu.reciprocal %323 {approx = true} : vector<32x1xf32> -> vector<32x1xf32>
    %325 = vector.broadcast %324 : vector<32x1xf32> to vector<32x32xf32>
    %326 = arith.mulf %321, %325 : vector<32x32xf32>
    %327 = arith.truncf %326 : vector<32x32xf32> to vector<32x32xbf16>
    %328 = arith.truncf %309 : vector<32x16xf32> to vector<32x16xbf16>
    %cst_94 = arith.constant dense<0.000000e+00> : vector<32x16xf32>
    %329 = tpu.matmul %327, %328, %cst_94 {dimension_numbers = #tpu.dot_dimension_numbers<[1], [0], [0], [1], [0, 0, 1, 1], [], []>} : vector<32x32xbf16>, vector<32x16xbf16>, vector<32x16xf32> -> vector<32x16xf32>
    %330 = vector.extract_strided_slice %223 {offsets = [32, 0], sizes = [16, 64], strides = [1, 1]} : vector<64x64xbf16> to vector<16x64xbf16>
    %331 = arith.truncf %329 : vector<32x16xf32> to vector<32x16xbf16>
    %cst_95 = arith.constant dense<0.000000e+00> : vector<32x64xf32>
    %332 = tpu.matmul %331, %330, %cst_95 {dimension_numbers = #tpu.dot_dimension_numbers<[1], [0], [0], [1], [0, 0, 1, 1], [], []>} : vector<32x16xbf16>, vector<16x64xbf16>, vector<32x64xf32> -> vector<32x64xf32>
    %333 = arith.addf %306, %332 : vector<32x64xf32>
    %334 = vector.extract_strided_slice %251 {offsets = [0, 48], sizes = [32, 16], strides = [1, 1]} : vector<32x192xf32> to vector<32x16xf32>
    %335 = vector.extract_strided_slice %253 {offsets = [48, 0], sizes = [16, 32], strides = [1, 1]} : vector<64x32xf32> to vector<16x32xf32>
    %336 = vector.extract_strided_slice %251 {offsets = [0, 176], sizes = [32, 16], strides = [1, 1]} : vector<32x192xf32> to vector<32x16xf32>
    %337 = arith.truncf %334 : vector<32x16xf32> to vector<32x16xbf16>
    %338 = arith.truncf %335 : vector<16x32xf32> to vector<16x32xbf16>
    %cst_96 = arith.constant dense<0.000000e+00> : vector<32x32xf32>
    %339 = tpu.matmul %337, %338, %cst_96 {dimension_numbers = #tpu.dot_dimension_numbers<[1], [0], [0], [1], [0, 0, 1, 1], [], []>} : vector<32x16xbf16>, vector<16x32xbf16>, vector<32x32xf32> -> vector<32x32xf32>
    %cst_97 = arith.constant 2.500000e-01 : f32
    %340 = vector.broadcast %cst_97 : f32 to vector<32x32xf32>
    %341 = arith.mulf %339, %340 : vector<32x32xf32>
    %342 = vector.broadcast %11 : vector<1x32xf32> to vector<32x32xf32>
    %343 = arith.addf %341, %342 : vector<32x32xf32>
    %cst_98 = arith.constant dense<0xFF800000> : vector<32xf32>
    %344 = vector.multi_reduction <maximumf>, %343, %cst_98 [1] : vector<32x32xf32> to vector<32xf32>
    %345 = vector.shape_cast %344 : vector<32xf32> to vector<32x1xf32>
    %346 = vector.broadcast %345 : vector<32x1xf32> to vector<32x32xf32>
    %347 = arith.subf %343, %346 : vector<32x32xf32>
    %348 = math.exp %347 : vector<32x32xf32>
    %cst_99 = arith.constant dense<0.000000e+00> : vector<32xf32>
    %349 = vector.multi_reduction <add>, %348, %cst_99 [1] : vector<32x32xf32> to vector<32xf32>
    %350 = vector.shape_cast %349 : vector<32xf32> to vector<32x1xf32>
    %351 = tpu.reciprocal %350 {approx = true} : vector<32x1xf32> -> vector<32x1xf32>
    %352 = vector.broadcast %351 : vector<32x1xf32> to vector<32x32xf32>
    %353 = arith.mulf %348, %352 : vector<32x32xf32>
    %354 = arith.truncf %353 : vector<32x32xf32> to vector<32x32xbf16>
    %355 = arith.truncf %336 : vector<32x16xf32> to vector<32x16xbf16>
    %cst_100 = arith.constant dense<0.000000e+00> : vector<32x16xf32>
    %356 = tpu.matmul %354, %355, %cst_100 {dimension_numbers = #tpu.dot_dimension_numbers<[1], [0], [0], [1], [0, 0, 1, 1], [], []>} : vector<32x32xbf16>, vector<32x16xbf16>, vector<32x16xf32> -> vector<32x16xf32>
    %357 = vector.extract_strided_slice %223 {offsets = [48, 0], sizes = [16, 64], strides = [1, 1]} : vector<64x64xbf16> to vector<16x64xbf16>
    %358 = arith.truncf %356 : vector<32x16xf32> to vector<32x16xbf16>
    %cst_101 = arith.constant dense<0.000000e+00> : vector<32x64xf32>
    %359 = tpu.matmul %358, %357, %cst_101 {dimension_numbers = #tpu.dot_dimension_numbers<[1], [0], [0], [1], [0, 0, 1, 1], [], []>} : vector<32x16xbf16>, vector<16x64xbf16>, vector<32x64xf32> -> vector<32x64xf32>
    %360 = arith.addf %333, %359 : vector<32x64xf32>
    %361 = arith.addf %211, %360 : vector<32x64xf32>
    %362 = vector.broadcast %217 : vector<1x64xf32> to vector<32x64xf32>
    %363 = arith.addf %361, %362 : vector<32x64xf32>
    %cst_102 = arith.constant dense<0.000000e+00> : vector<32xf32>
    %364 = vector.multi_reduction <add>, %363, %cst_102 [1] : vector<32x64xf32> to vector<32xf32>
    %365 = vector.shape_cast %364 : vector<32xf32> to vector<32x1xf32>
    %cst_103 = arith.constant 6.400000e+01 : f32
    %366 = vector.broadcast %cst_103 : f32 to vector<32x1xf32>
    %367 = arith.divf %365, %366 : vector<32x1xf32>
    %368 = arith.mulf %363, %363 : vector<32x64xf32>
    %cst_104 = arith.constant dense<0.000000e+00> : vector<32xf32>
    %369 = vector.multi_reduction <add>, %368, %cst_104 [1] : vector<32x64xf32> to vector<32xf32>
    %370 = vector.shape_cast %369 : vector<32xf32> to vector<32x1xf32>
    %cst_105 = arith.constant 6.400000e+01 : f32
    %371 = vector.broadcast %cst_105 : f32 to vector<32x1xf32>
    %372 = arith.divf %370, %371 : vector<32x1xf32>
    %373 = vector.broadcast %367 : vector<32x1xf32> to vector<32x64xf32>
    %374 = arith.subf %363, %373 : vector<32x64xf32>
    %375 = arith.mulf %367, %367 : vector<32x1xf32>
    %376 = arith.subf %372, %375 : vector<32x1xf32>
    %cst_106 = arith.constant 9.99999997E-7 : f32
    %377 = vector.broadcast %cst_106 : f32 to vector<32x1xf32>
    %378 = arith.addf %376, %377 : vector<32x1xf32>
    %379 = math.rsqrt %378 : vector<32x1xf32>
    %380 = vector.broadcast %379 : vector<32x1xf32> to vector<32x64xf32>
    %381 = arith.mulf %374, %380 : vector<32x64xf32>
    %382 = vector.broadcast %218 : vector<1x64xf32> to vector<32x64xf32>
    %383 = arith.mulf %381, %382 : vector<32x64xf32>
    %384 = vector.broadcast %219 : vector<1x64xf32> to vector<32x64xf32>
    %385 = arith.addf %383, %384 : vector<32x64xf32>
    %c1_107 = arith.constant 1 : index
    %c0_108 = arith.constant 0 : index
    %c0_109 = arith.constant 0 : index
    %386 = vector.load %arg7[%c1_107, %c0_108, %c0_109] : memref<2x64x256xbf16, #tpu.memory_space<vmem>>, vector<1x64x256xbf16>
    %387 = vector.shape_cast %386 : vector<1x64x256xbf16> to vector<64x256xbf16>
    %388 = arith.truncf %385 : vector<32x64xf32> to vector<32x64xbf16>
    %cst_110 = arith.constant dense<0.000000e+00> : vector<32x256xf32>
    %389 = tpu.matmul %388, %387, %cst_110 {dimension_numbers = #tpu.dot_dimension_numbers<[1], [0], [0], [1], [0, 0, 1, 1], [], []>} : vector<32x64xbf16>, vector<64x256xbf16>, vector<32x256xf32> -> vector<32x256xf32>
    %390 = vector.broadcast %220 : vector<1x256xf32> to vector<32x256xf32>
    %391 = arith.addf %389, %390 : vector<32x256xf32>
    %392 = arith.mulf %391, %391 : vector<32x256xf32>
    %393 = arith.mulf %391, %392 : vector<32x256xf32>
    %cst_111 = arith.constant 4.471500e-02 : f32
    %394 = vector.broadcast %cst_111 : f32 to vector<32x256xf32>
    %395 = arith.mulf %394, %393 : vector<32x256xf32>
    %396 = arith.addf %391, %395 : vector<32x256xf32>
    %cst_112 = arith.constant 0.797884583 : f32
    %397 = vector.broadcast %cst_112 : f32 to vector<32x256xf32>
    %398 = arith.mulf %397, %396 : vector<32x256xf32>
    %399 = math.tanh %398 : vector<32x256xf32>
    %cst_113 = arith.constant 1.000000e+00 : f32
    %400 = vector.broadcast %cst_113 : f32 to vector<32x256xf32>
    %401 = arith.addf %400, %399 : vector<32x256xf32>
    %cst_114 = arith.constant 5.000000e-01 : f32
    %402 = vector.broadcast %cst_114 : f32 to vector<32x256xf32>
    %403 = arith.mulf %402, %401 : vector<32x256xf32>
    %404 = arith.mulf %391, %403 : vector<32x256xf32>
    %c1_115 = arith.constant 1 : index
    %c0_116 = arith.constant 0 : index
    %c0_117 = arith.constant 0 : index
    %405 = vector.load %arg8[%c1_115, %c0_116, %c0_117] : memref<2x256x64xbf16, #tpu.memory_space<vmem>>, vector<1x256x64xbf16>
    %406 = vector.shape_cast %405 : vector<1x256x64xbf16> to vector<256x64xbf16>
    %407 = arith.truncf %404 : vector<32x256xf32> to vector<32x256xbf16>
    %cst_118 = arith.constant dense<0.000000e+00> : vector<32x64xf32>
    %408 = tpu.matmul %407, %406, %cst_118 {dimension_numbers = #tpu.dot_dimension_numbers<[1], [0], [0], [1], [0, 0, 1, 1], [], []>} : vector<32x256xbf16>, vector<256x64xbf16>, vector<32x64xf32> -> vector<32x64xf32>
    %409 = arith.addf %363, %408 : vector<32x64xf32>
    %410 = vector.broadcast %221 : vector<1x64xf32> to vector<32x64xf32>
    %411 = arith.addf %409, %410 : vector<32x64xf32>
    %c0_119 = arith.constant 0 : index
    %c0_120 = arith.constant 0 : index
    %412 = vector.load %arg9[%c0_119, %c0_120] : memref<8x128xf32, #tpu.memory_space<vmem>>, vector<8x128xf32>
    %413 = vector.extract_strided_slice %412 {offsets = [0, 0], sizes = [1, 64], strides = [1, 1]} : vector<8x128xf32> to vector<1x64xf32>
    %414 = vector.extract_strided_slice %412 {offsets = [1, 0], sizes = [1, 64], strides = [1, 1]} : vector<8x128xf32> to vector<1x64xf32>
    %415 = vector.extract_strided_slice %412 {offsets = [2, 0], sizes = [1, 128], strides = [1, 1]} : vector<8x128xf32> to vector<1x128xf32>
    %cst_121 = arith.constant dense<0.000000e+00> : vector<32xf32>
    %416 = vector.multi_reduction <add>, %411, %cst_121 [1] : vector<32x64xf32> to vector<32xf32>
    %417 = vector.shape_cast %416 : vector<32xf32> to vector<32x1xf32>
    %cst_122 = arith.constant 6.400000e+01 : f32
    %418 = vector.broadcast %cst_122 : f32 to vector<32x1xf32>
    %419 = arith.divf %417, %418 : vector<32x1xf32>
    %420 = arith.mulf %411, %411 : vector<32x64xf32>
    %cst_123 = arith.constant dense<0.000000e+00> : vector<32xf32>
    %421 = vector.multi_reduction <add>, %420, %cst_123 [1] : vector<32x64xf32> to vector<32xf32>
    %422 = vector.shape_cast %421 : vector<32xf32> to vector<32x1xf32>
    %cst_124 = arith.constant 6.400000e+01 : f32
    %423 = vector.broadcast %cst_124 : f32 to vector<32x1xf32>
    %424 = arith.divf %422, %423 : vector<32x1xf32>
    %425 = vector.broadcast %419 : vector<32x1xf32> to vector<32x64xf32>
    %426 = arith.subf %411, %425 : vector<32x64xf32>
    %427 = arith.mulf %419, %419 : vector<32x1xf32>
    %428 = arith.subf %424, %427 : vector<32x1xf32>
    %cst_125 = arith.constant 9.99999997E-7 : f32
    %429 = vector.broadcast %cst_125 : f32 to vector<32x1xf32>
    %430 = arith.addf %428, %429 : vector<32x1xf32>
    %431 = math.rsqrt %430 : vector<32x1xf32>
    %432 = vector.broadcast %431 : vector<32x1xf32> to vector<32x64xf32>
    %433 = arith.mulf %426, %432 : vector<32x64xf32>
    %434 = vector.broadcast %413 : vector<1x64xf32> to vector<32x64xf32>
    %435 = arith.mulf %433, %434 : vector<32x64xf32>
    %436 = vector.broadcast %414 : vector<1x64xf32> to vector<32x64xf32>
    %437 = arith.addf %435, %436 : vector<32x64xf32>
    %438 = vector.extract_strided_slice %437 {offsets = [0, 0], sizes = [8, 64], strides = [1, 1]} : vector<32x64xf32> to vector<8x64xf32>
    %c0_126 = arith.constant 0 : index
    %c0_127 = arith.constant 0 : index
    %439 = vector.load %arg10[%c0_126, %c0_127] : memref<64x128xbf16, #tpu.memory_space<vmem>>, vector<64x128xbf16>
    %440 = arith.truncf %438 : vector<8x64xf32> to vector<8x64xbf16>
    %cst_128 = arith.constant dense<0.000000e+00> : vector<8x128xf32>
    %441 = tpu.matmul %440, %439, %cst_128 {dimension_numbers = #tpu.dot_dimension_numbers<[1], [0], [0], [1], [0, 0, 1, 1], [], []>} : vector<8x64xbf16>, vector<64x128xbf16>, vector<8x128xf32> -> vector<8x128xf32>
    %442 = vector.broadcast %415 : vector<1x128xf32> to vector<8x128xf32>
    %443 = arith.addf %441, %442 : vector<8x128xf32>
    %c0_129 = arith.constant 0 : index
    %c0_130 = arith.constant 0 : index
    %c0_131 = arith.constant 0 : index
    %444 = vector.load %arg11[%c0_129, %c0_130, %c0_131] : memref<1x8x128xf32, #tpu.memory_space<vmem>>, vector<1x8x128xf32>
    %445 = vector.shape_cast %444 : vector<1x8x128xf32> to vector<8x128xf32>
    %446 = vector.shape_cast %443 : vector<8x128xf32> to vector<1x8x128xf32>
    tpu.vector_store %arg11[%c0_129, %c0_130, %c0_131], %446 {strides = array<i32>} : memref<1x8x128xf32, #tpu.memory_space<vmem>>, vector<1x8x128xf32>,
    return
  }
  func.func @transform_0(%arg0: i32) -> (i32, i32, i32) {
    %c0_i32 = arith.constant 0 : i32
    %c0_i32_0 = arith.constant 0 : i32
    %c0_i32_1 = arith.constant 0 : i32
    return %arg0, %c0_i32, %c0_i32_0 : i32, i32, i32
  }
  func.func @transform_1(%arg0: i32) -> (i32, i32) {
    %c0_i32 = arith.constant 0 : i32
    %c0_i32_0 = arith.constant 0 : i32
    %c0_i32_1 = arith.constant 0 : i32
    return %c0_i32, %c0_i32_0 : i32, i32
  }
  func.func @transform_2(%arg0: i32) -> (i32, i32) {
    %c0_i32 = arith.constant 0 : i32
    %c0_i32_0 = arith.constant 0 : i32
    %c0_i32_1 = arith.constant 0 : i32
    return %c0_i32, %c0_i32_0 : i32, i32
  }
  func.func @transform_3(%arg0: i32) -> (i32, i32, i32) {
    %c0_i32 = arith.constant 0 : i32
    %c0_i32_0 = arith.constant 0 : i32
    %c0_i32_1 = arith.constant 0 : i32
    %c0_i32_2 = arith.constant 0 : i32
    return %c0_i32, %c0_i32_0, %c0_i32_1 : i32, i32, i32
  }
  func.func @transform_4(%arg0: i32) -> (i32, i32, i32) {
    %c0_i32 = arith.constant 0 : i32
    %c0_i32_0 = arith.constant 0 : i32
    %c0_i32_1 = arith.constant 0 : i32
    %c0_i32_2 = arith.constant 0 : i32
    return %c0_i32, %c0_i32_0, %c0_i32_1 : i32, i32, i32
  }
  func.func @transform_5(%arg0: i32) -> (i32, i32, i32) {
    %c0_i32 = arith.constant 0 : i32
    %c0_i32_0 = arith.constant 0 : i32
    %c0_i32_1 = arith.constant 0 : i32
    %c0_i32_2 = arith.constant 0 : i32
    return %c0_i32, %c0_i32_0, %c0_i32_1 : i32, i32, i32
  }
  func.func @transform_6(%arg0: i32) -> (i32, i32, i32) {
    %c0_i32 = arith.constant 0 : i32
    %c0_i32_0 = arith.constant 0 : i32
    %c0_i32_1 = arith.constant 0 : i32
    %c0_i32_2 = arith.constant 0 : i32
    return %c0_i32, %c0_i32_0, %c0_i32_1 : i32, i32, i32
  }
  func.func @transform_7(%arg0: i32) -> (i32, i32, i32) {
    %c0_i32 = arith.constant 0 : i32
    %c0_i32_0 = arith.constant 0 : i32
    %c0_i32_1 = arith.constant 0 : i32
    %c0_i32_2 = arith.constant 0 : i32
    return %c0_i32, %c0_i32_0, %c0_i32_1 : i32, i32, i32
  }
  func.func @transform_8(%arg0: i32) -> (i32, i32) {
    %c0_i32 = arith.constant 0 : i32
    %c0_i32_0 = arith.constant 0 : i32
    %c0_i32_1 = arith.constant 0 : i32
    return %c0_i32, %c0_i32_0 : i32, i32
  }
  func.func @transform_9(%arg0: i32) -> (i32, i32) {
    %c0_i32 = arith.constant 0 : i32
    %c0_i32_0 = arith.constant 0 : i32
    %c0_i32_1 = arith.constant 0 : i32
    return %c0_i32, %c0_i32_0 : i32, i32
  }
  func.func @transform_10(%arg0: i32) -> (i32, i32, i32) {
    %c0_i32 = arith.constant 0 : i32
    %c0_i32_0 = arith.constant 0 : i32
    %c0_i32_1 = arith.constant 0 : i32
    return %arg0, %c0_i32, %c0_i32_0 : i32, i32, i32
  }
}

</mosaic_0001>

<llo_original>
// kernel: lora_vit_forward.1
$region0: #{lora_vit_forward.1}
  #allocation0 [shape = 'u32[]', space=smem, size = 0x4, offset = 0x4, fixed_abs, tag = 'smem constant byte address 0x4 - core index']
  #allocation1 [shape = 'u32[144,128]{1,0:T(1,128)}', space=vmem, size = 0x12000, scoped, tag = 'internal scratch']
  %s0 = inlined_call_operand.vmem [shape: bf16[2,32,192], index: 0, kind: input, shape index: {}]
  %s1 = inlined_call_operand.vmem [shape: bf16[192,64], index: 1, kind: input, shape index: {}]
  %s2 = inlined_call_operand.vmem [shape: f32[32,64], index: 2, kind: input, shape index: {}]
  %s3 = inlined_call_operand.vmem [shape: f32[2,8,256], index: 3, kind: input, shape index: {}]
  %s4 = inlined_call_operand.vmem [shape: bf16[2,64,192], index: 4, kind: input, shape index: {}]
  %s5 = inlined_call_operand.vmem [shape: bf16[2,64,64], index: 5, kind: input, shape index: {}]
  %s6 = inlined_call_operand.vmem [shape: bf16[2,64,256], index: 6, kind: input, shape index: {}]
  %s7 = inlined_call_operand.vmem [shape: bf16[2,256,64], index: 7, kind: input, shape index: {}]
  %s8 = inlined_call_operand.vmem [shape: f32[8,128], index: 8, kind: input, shape index: {}]
  %s9 = inlined_call_operand.vmem [shape: bf16[64,128], index: 9, kind: input, shape index: {}]
  %s10 = inlined_call_operand.vmem [shape: f32[2,8,128], index: 10, kind: output, shape index: {}]
  %s11 = sld [smem:[#allocation0]]
  $region73: #{lora_vit_forward.1} parent=0
    _
  %s13 = ssub.s32 1, %s11
  %s14 = scalar_select 0, %s13, %s11
  loop: start=0, step=1, limit=4
  $region2: #{lora_vit_forward.1} parent=0 // loop_pre_header
    _
  $region3: #{lora_vit_forward.1} parent=0 // loop_header
    %s16 = sphi 0, %s20
    %p17 = scmp.ge.s32.totalorder %s16, 4
    %s26 = sphi 0, %s28
    %s29 = sphi 0, %s26
    %s30 = sphi 0, %s29
    %s46 = sphi 0, %s30
    %s50 = sphi 0, %s50
    %s52 = sphi 0, %s50
    %s53 = sphi 0, %s52
    %s67 = sphi 0, %s53
    %s71 = sphi 0, %s71
    %s73 = sphi 0, %s71
    %s74 = sphi 0, %s73
    %s88 = sphi 0, %s74
    %s92 = sphi 0, %s92
    %s94 = sphi 0, %s92
    %s95 = sphi 0, %s94
    %s109 = sphi 0, %s95
    %s113 = sphi 0, %s113
    %s115 = sphi 0, %s113
    %s116 = sphi 0, %s115
    %s130 = sphi 0, %s116
    %s134 = sphi 0, %s134
    %s136 = sphi 0, %s134
    %s137 = sphi 0, %s136
    %s151 = sphi 0, %s137
    %s155 = sphi 0, %s155
    %s157 = sphi 0, %s155
    %s158 = sphi 0, %s157
    %s172 = sphi 0, %s158
    %s176 = sphi 0, %s176
    %s178 = sphi 0, %s176
    %s179 = sphi 0, %s178
    %s193 = sphi 0, %s179
    %s197 = sphi 0, %s197
    %s199 = sphi 0, %s197
    %s200 = sphi 0, %s199
    %s214 = sphi 0, %s200
    %s218 = sphi 0, %s218
    %s220 = sphi 0, %s218
    %s221 = sphi 0, %s220
    %s235 = sphi 0, %s221
    %s241 = sphi 0, %s243
    %s244 = sphi 0, %s241
    %s245 = sphi 0, %s244
    %s261 = sphi 0, %s245
  $region4: #{lora_vit_forward.1} parent=0 // loop_header_branch
    %19 = sbr.rel (%p17) target = $region8
  $region5: #{lora_vit_forward.1} parent=0 // loop_body
    %s21 = ssub.s32 %s16, 1
    %s22 = ssub.s32 %s16, 2
    %s23 = sadd.s32 %s16, 1
    %s24 = ssub.s32 %s16, %s23
    %p25 = scmp.eq.s32.totalorder %s24, 0
    %s27 = sadd.s32 %s26, 1
    %s28 = scalar_select %p25, %s26, %s27
    %p31 = pneg %p25
    %p32 = scmp.eq.s32.totalorder %s16, 1
    %p33 = por %p31, %p32
    %p34 = scmp.ne.s32.totalorder %s26, %s29
    %p35 = scmp.eq.s32.totalorder %s16, 0
    %p36 = por %p34, %p35
    %p37 = scmp.ne.s32.totalorder %s26, %s29
    %p38 = scmp.eq.s32.totalorder %s21, 1
    %p39 = por %p37, %p38
    %p40 = scmp.ne.s32.totalorder %s29, %s30
    %p41 = scmp.eq.s32.totalorder %s21, 0
    %p42 = por %p40, %p41
    %p43 = scmp.ne.s32.totalorder %s29, %s30
    %p44 = scmp.eq.s32.totalorder %s22, 1
    %p45 = por %p43, %p44
    %p47 = scmp.ne.s32.totalorder %s30, %s46
    %p48 = scmp.eq.s32.totalorder %s22, 0
    %p49 = por %p47, %p48
    %s51 = sadd.s32 %s50, 1
    %p54 = scmp.eq.s32.totalorder %s16, 1
    %p55 = scmp.ne.s32.totalorder %s50, %s52
    %p56 = scmp.eq.s32.totalorder %s16, 0
    %p57 = por %p55, %p56
    %p58 = scmp.ne.s32.totalorder %s50, %s52
    %p59 = scmp.eq.s32.totalorder %s21, 1
    %p60 = por %p58, %p59
    %p61 = scmp.ne.s32.totalorder %s52, %s53
    %p62 = scmp.eq.s32.totalorder %s21, 0
    %p63 = por %p61, %p62
    %p64 = scmp.ne.s32.totalorder %s52, %s53
    %p65 = scmp.eq.s32.totalorder %s22, 1
    %p66 = por %p64, %p65
    %p68 = scmp.ne.s32.totalorder %s53, %s67
    %p69 = scmp.eq.s32.totalorder %s22, 0
    %p70 = por %p68, %p69
    %s72 = sadd.s32 %s71, 1
    %p75 = scmp.eq.s32.totalorder %s16, 1
    %p76 = scmp.ne.s32.totalorder %s71, %s73
    %p77 = scmp.eq.s32.totalorder %s16, 0
    %p78 = por %p76, %p77
    %p79 = scmp.ne.s32.totalorder %s71, %s73
    %p80 = scmp.eq.s32.totalorder %s21, 1
    %p81 = por %p79, %p80
    %p82 = scmp.ne.s32.totalorder %s73, %s74
    %p83 = scmp.eq.s32.totalorder %s21, 0
    %p84 = por %p82, %p83
    %p85 = scmp.ne.s32.totalorder %s73, %s74
    %p86 = scmp.eq.s32.totalorder %s22, 1
    %p87 = por %p85, %p86
    %p89 = scmp.ne.s32.totalorder %s74, %s88
    %p90 = scmp.eq.s32.totalorder %s22, 0
    %p91 = por %p89, %p90
    %s93 = sadd.s32 %s92, 1
    %p96 = scmp.eq.s32.totalorder %s16, 1
    %p97 = scmp.ne.s32.totalorder %s92, %s94
    %p98 = scmp.eq.s32.totalorder %s16, 0
    %p99 = por %p97, %p98
    %p100 = scmp.ne.s32.totalorder %s92, %s94
    %p101 = scmp.eq.s32.totalorder %s21, 1
    %p102 = por %p100, %p101
    %p103 = scmp.ne.s32.totalorder %s94, %s95
    %p104 = scmp.eq.s32.totalorder %s21, 0
    %p105 = por %p103, %p104
    %p106 = scmp.ne.s32.totalorder %s94, %s95
    %p107 = scmp.eq.s32.totalorder %s22, 1
    %p108 = por %p106, %p107
    %p110 = scmp.ne.s32.totalorder %s95, %s109
    %p111 = scmp.eq.s32.totalorder %s22, 0
    %p112 = por %p110, %p111
    %s114 = sadd.s32 %s113, 1
    %p117 = scmp.eq.s32.totalorder %s16, 1
    %p118 = scmp.ne.s32.totalorder %s113, %s115
    %p119 = scmp.eq.s32.totalorder %s16, 0
    %p120 = por %p118, %p119
    %p121 = scmp.ne.s32.totalorder %s113, %s115
    %p122 = scmp.eq.s32.totalorder %s21, 1
    %p123 = por %p121, %p122
    %p124 = scmp.ne.s32.totalorder %s115, %s116
    %p125 = scmp.eq.s32.totalorder %s21, 0
    %p126 = por %p124, %p125
    %p127 = scmp.ne.s32.totalorder %s115, %s116
    %p128 = scmp.eq.s32.totalorder %s22, 1
    %p129 = por %p127, %p128
    %p131 = scmp.ne.s32.totalorder %s116, %s130
    %p132 = scmp.eq.s32.totalorder %s22, 0
    %p133 = por %p131, %p132
    %s135 = sadd.s32 %s134, 1
    %p138 = scmp.eq.s32.totalorder %s16, 1
    %p139 = scmp.ne.s32.totalorder %s134, %s136
    %p140 = scmp.eq.s32.totalorder %s16, 0
    %p141 = por %p139, %p140
    %p142 = scmp.ne.s32.totalorder %s134, %s136
    %p143 = scmp.eq.s32.totalorder %s21, 1
    %p144 = por %p142, %p143
    %p145 = scmp.ne.s32.totalorder %s136, %s137
    %p146 = scmp.eq.s32.totalorder %s21, 0
    %p147 = por %p145, %p146
    %p148 = scmp.ne.s32.totalorder %s136, %s137
    %p149 = scmp.eq.s32.totalorder %s22, 1
    %p150 = por %p148, %p149
    %p152 = scmp.ne.s32.totalorder %s137, %s151
    %p153 = scmp.eq.s32.totalorder %s22, 0
    %p154 = por %p152, %p153
    %s156 = sadd.s32 %s155, 1
    %p159 = scmp.eq.s32.totalorder %s16, 1
    %p160 = scmp.ne.s32.totalorder %s155, %s157
    %p161 = scmp.eq.s32.totalorder %s16, 0
    %p162 = por %p160, %p161
    %p163 = scmp.ne.s32.totalorder %s155, %s157
    %p164 = scmp.eq.s32.totalorder %s21, 1
    %p165 = por %p163, %p164
    %p166 = scmp.ne.s32.totalorder %s157, %s158
    %p167 = scmp.eq.s32.totalorder %s21, 0
    %p168 = por %p166, %p167
    %p169 = scmp.ne.s32.totalorder %s157, %s158
    %p170 = scmp.eq.s32.totalorder %s22, 1
    %p171 = por %p169, %p170
    %p173 = scmp.ne.s32.totalorder %s158, %s172
    %p174 = scmp.eq.s32.totalorder %s22, 0
    %p175 = por %p173, %p174
    %s177 = sadd.s32 %s176, 1
    %p180 = scmp.eq.s32.totalorder %s16, 1
    %p181 = scmp.ne.s32.totalorder %s176, %s178
    %p182 = scmp.eq.s32.totalorder %s16, 0
    %p183 = por %p181, %p182
    %p184 = scmp.ne.s32.totalorder %s176, %s178
    %p185 = scmp.eq.s32.totalorder %s21, 1
    %p186 = por %p184, %p185
    %p187 = scmp.ne.s32.totalorder %s178, %s179
    %p188 = scmp.eq.s32.totalorder %s21, 0
    %p189 = por %p187, %p188
    %p190 = scmp.ne.s32.totalorder %s178, %s179
    %p191 = scmp.eq.s32.totalorder %s22, 1
    %p192 = por %p190, %p191
    %p194 = scmp.ne.s32.totalorder %s179, %s193
    %p195 = scmp.eq.s32.totalorder %s22, 0
    %p196 = por %p194, %p195
    %s198 = sadd.s32 %s197, 1
    %p201 = scmp.eq.s32.totalorder %s16, 1
    %p202 = scmp.ne.s32.totalorder %s197, %s199
    %p203 = scmp.eq.s32.totalorder %s16, 0
    %p204 = por %p202, %p203
    %p205 = scmp.ne.s32.totalorder %s197, %s199
    %p206 = scmp.eq.s32.totalorder %s21, 1
    %p207 = por %p205, %p206
    %p208 = scmp.ne.s32.totalorder %s199, %s200
    %p209 = scmp.eq.s32.totalorder %s21, 0
    %p210 = por %p208, %p209
    %p211 = scmp.ne.s32.totalorder %s199, %s200
    %p212 = scmp.eq.s32.totalorder %s22, 1
    %p213 = por %p211, %p212
    %p215 = scmp.ne.s32.totalorder %s200, %s214
    %p216 = scmp.eq.s32.totalorder %s22, 0
    %p217 = por %p215, %p216
    %s219 = sadd.s32 %s218, 1
    %p222 = scmp.eq.s32.totalorder %s16, 1
    %p223 = scmp.ne.s32.totalorder %s218, %s220
    %p224 = scmp.eq.s32.totalorder %s16, 0
    %p225 = por %p223, %p224
    %p226 = scmp.ne.s32.totalorder %s218, %s220
    %p227 = scmp.eq.s32.totalorder %s21, 1
    %p228 = por %p226, %p227
    %p229 = scmp.ne.s32.totalorder %s220, %s221
    %p230 = scmp.eq.s32.totalorder %s21, 0
    %p231 = por %p229, %p230
    %p232 = scmp.ne.s32.totalorder %s220, %s221
    %p233 = scmp.eq.s32.totalorder %s22, 1
    %p234 = por %p232, %p233
    %p236 = scmp.ne.s32.totalorder %s221, %s235
    %p237 = scmp.eq.s32.totalorder %s22, 0
    %p238 = por %p236, %p237
    %s239 = ssub.s32 %s16, %s23
    %p240 = scmp.eq.s32.totalorder %s239, 0
    %s242 = sadd.s32 %s241, 1
    %s243 = scalar_select %p240, %s241, %s242
    %p246 = pneg %p240
    %p247 = scmp.eq.s32.totalorder %s16, 1
    %p248 = por %p246, %p247
    %p249 = scmp.ne.s32.totalorder %s241, %s244
    %p250 = scmp.eq.s32.totalorder %s16, 0
    %p251 = por %p249, %p250
    %p252 = scmp.ne.s32.totalorder %s241, %s244
    %p253 = scmp.eq.s32.totalorder %s21, 1
    %p254 = por %p252, %p253
    %p255 = scmp.ne.s32.totalorder %s244, %s245
    %p256 = scmp.eq.s32.totalorder %s21, 0
    %p257 = por %p255, %p256
    %p258 = scmp.ne.s32.totalorder %s244, %s245
    %p259 = scmp.eq.s32.totalorder %s22, 1
    %p260 = por %p258, %p259
    %p262 = scmp.ne.s32.totalorder %s245, %s261
    %p263 = scmp.eq.s32.totalorder %s22, 0
    %p264 = por %p262, %p263
    %p265 = scmp.le.s32.totalorder 1, %s16
    %p266 = scmp.lt.s32.totalorder %s16, 3
    %p267 = pnand %p265, %p266
    %p268 = pneg %p267
    // Predicated region
    $region9: #{lora_vit_forward.1} parent=5 // pred_check
      _
    $region10: #{lora_vit_forward.1} parent=5 // pred_check_branch
      %270 = sbr.rel (%p267) target = $region12
    $region11: #{lora_vit_forward.1} parent=5 // pred_region
      %s271 = ssub.s32 %s16, 1
      // Predicated region
      $region13: #{lora_vit_forward.1} parent=11 // pred_check
        %p272 = pneg %p63
      $region14: #{lora_vit_forward.1} parent=11 // pred_check_branch
        %274 = sbr.rel (%p272) target = $region16
      $region15: #{lora_vit_forward.1} parent=11 // pred_region
        _
      $region16: #{lora_vit_forward.1} parent=11 // pred_fallthru
        _
      // Predicated region
      $region17: #{lora_vit_forward.1} parent=11 // pred_check
        %p275 = pneg %p84
      $region18: #{lora_vit_forward.1} parent=11 // pred_check_branch
        %277 = sbr.rel (%p275) target = $region20
      $region19: #{lora_vit_forward.1} parent=11 // pred_region
        _
      $region20: #{lora_vit_forward.1} parent=11 // pred_fallthru
        _
      // Predicated region
      $region21: #{lora_vit_forward.1} parent=11 // pred_check
        %p278 = pneg %p105
      $region22: #{lora_vit_forward.1} parent=11 // pred_check_branch
        %280 = sbr.rel (%p278) target = $region24
      $region23: #{lora_vit_forward.1} parent=11 // pred_region
        _
      $region24: #{lora_vit_forward.1} parent=11 // pred_fallthru
        _
      // Predicated region
      $region25: #{lora_vit_forward.1} parent=11 // pred_check
        %p281 = pneg %p126
      $region26: #{lora_vit_forward.1} parent=11 // pred_check_branch
        %283 = sbr.rel (%p281) target = $region28
      $region27: #{lora_vit_forward.1} parent=11 // pred_region
        _
      $region28: #{lora_vit_forward.1} parent=11 // pred_fallthru
        _
      // Predicated region
      $region29: #{lora_vit_forward.1} parent=11 // pred_check
        %p284 = pneg %p147
      $region30: #{lora_vit_forward.1} parent=11 // pred_check_branch
        %286 = sbr.rel (%p284) target = $region32
      $region31: #{lora_vit_forward.1} parent=11 // pred_region
        _
      $region32: #{lora_vit_forward.1} parent=11 // pred_fallthru
        _
      // Predicated region
      $region33: #{lora_vit_forward.1} parent=11 // pred_check
        %p287 = pneg %p168
      $region34: #{lora_vit_forward.1} parent=11 // pred_check_branch
        %289 = sbr.rel (%p287) target = $region36
      $region35: #{lora_vit_forward.1} parent=11 // pred_region
        _
      $region36: #{lora_vit_forward.1} parent=11 // pred_fallthru
        _
      // Predicated region
      $region37: #{lora_vit_forward.1} parent=11 // pred_check
        %p290 = pneg %p189
      $region38: #{lora_vit_forward.1} parent=11 // pred_check_branch
        %292 = sbr.rel (%p290) target = $region40
      $region39: #{lora_vit_forward.1} parent=11 // pred_region
        _
      $region40: #{lora_vit_forward.1} parent=11 // pred_fallthru
        _
      // Predicated region
      $region41: #{lora_vit_forward.1} parent=11 // pred_check
        %p293 = pneg %p210
      $region42: #{lora_vit_forward.1} parent=11 // pred_check_branch
        %295 = sbr.rel (%p293) target = $region44
      $region43: #{lora_vit_forward.1} parent=11 // pred_region
        _
      $region44: #{lora_vit_forward.1} parent=11 // pred_fallthru
        _
      // Predicated region
      $region45: #{lora_vit_forward.1} parent=11 // pred_check
        %p296 = pneg %p231
      $region46: #{lora_vit_forward.1} parent=11 // pred_check_branch
        %298 = sbr.rel (%p296) target = $region48
      $region47: #{lora_vit_forward.1} parent=11 // pred_region
        _
      $region48: #{lora_vit_forward.1} parent=11 // pred_fallthru
        _
    $region12: #{lora_vit_forward.1} parent=5 // pred_fallthru
      _
    %p299 = scmp.lt.s32.totalorder %s16, 2
    // Predicated region
    $region49: #{lora_vit_forward.1} parent=5 // pred_check
      %p300 = pneg %p299
    $region50: #{lora_vit_forward.1} parent=5 // pred_check_branch
      %302 = sbr.rel (%p300) target = $region52
    $region51: #{lora_vit_forward.1} parent=5 // pred_region
      // Predicated region
      $region53: #{lora_vit_forward.1} parent=51 // pred_check
        %p303 = pneg %p36
      $region54: #{lora_vit_forward.1} parent=51 // pred_check_branch
        %305 = sbr.rel (%p303) target = $region56
      $region55: #{lora_vit_forward.1} parent=51 // pred_region
        %p306 = scmp.lt.s32.totalorder %s16, 1
        %s307 = scalar_select %p306, %s16, 1
        %s308 = smul.addr %s307, 8
        %s309 = smul.addr %s308, 4
        %s310 = scalar_lea.vmem %s0, %s309
      $region56: #{lora_vit_forward.1} parent=51 // pred_fallthru
        _
    $region52: #{lora_vit_forward.1} parent=5 // pred_fallthru
      _
    %p311 = scmp.le.s32.totalorder 1, %s16
    %p312 = scmp.lt.s32.totalorder %s16, 3
    %p313 = pnand %p311, %p312
    %p314 = pneg %p313
    // Predicated region
    $region57: #{lora_vit_forward.1} parent=5 // pred_check
      _
    $region58: #{lora_vit_forward.1} parent=5 // pred_check_branch
      %316 = sbr.rel (%p313) target = $region60
    $region59: #{lora_vit_forward.1} parent=5 // pred_region
      %s317 = ssub.s32 %s16, 1
      %p318 = scmp.lt.s32.totalorder %s21, 1
      %s319 = scalar_select %p318, %s21, 1
      %s320 = smul.addr %s319, 8
      %s321 = smul.addr %s320, 4
      %s322 = scalar_lea.vmem %s0, %s321
      %p323 = pneg %p42
      %p324 = pneg %p39
      %p325 = pneg %p63
      %p326 = pneg %p60
      %p327 = pneg %p84
      %p328 = pneg %p81
      %p329 = pneg %p105
      %p330 = pneg %p102
      %p331 = pneg %p126
      %p332 = pneg %p123
      %p333 = pneg %p147
      %p334 = pneg %p144
      %p335 = pneg %p168
      %p336 = pneg %p165
      %p337 = pneg %p189
      %p338 = pneg %p186
      %p339 = pneg %p210
      %p340 = pneg %p207
      %p341 = pneg %p231
      %p342 = pneg %p228
      %p343 = pneg %p257
      %p344 = pneg %p254
      %p345 = scmp.lt.s32.totalorder %s21, 1
      %s346 = scalar_select %p345, %s21, 1
      %s347 = smul.addr %s346, 8
      %s348 = scalar_lea.vmem %s10, %s347
      %p349 = scmp.lt.s32.totalorder %s21, 1
      %s350 = scalar_select %p349, %s21, 1
      %s351 = smul.addr %s350, 8
      %s352 = smul.addr %s351, 4
      %s353 = scalar_lea.vmem %s0, %s352
      %p354 = scmp.lt.s32.totalorder %s21, 1
      %s355 = scalar_select %p354, %s21, 1
      %s356 = smul.addr %s355, 8
      %s357 = scalar_lea.vmem %s10, %s356
      %v359 = vld [vmem:[%s353] sm:$0xff]
      %v360 = vld [vmem:[%s353 + $0x8] sm:$0xff]
      %v361 = vld [vmem:[%s353 + $0x10] sm:$0xff]
      %v362 = vld [vmem:[%s353 + $0x18] sm:$0xff]
      %v363 = vld [vmem:[%s1] sm:$0xf]
      %v364 = vld [vmem:[%s1 + $0x4] sm:$0xf]
      %v365 = vld [vmem:[%s1 + $0x8] sm:$0xf]
      %v366 = vld [vmem:[%s1 + $0xc] sm:$0xf]
      %v367 = vld [vmem:[%s1 + $0x10] sm:$0xf]
      %v368 = vld [vmem:[%s1 + $0x14] sm:$0xf]
      %v369 = vld [vmem:[%s1 + $0x18] sm:$0xf]
      %v370 = vld [vmem:[%s1 + $0x1c] sm:$0xf]
      %v371 = vld [vmem:[%s1 + $0x20] sm:$0xf]
      %v372 = vld [vmem:[%s1 + $0x24] sm:$0xf]
      %v373 = vld [vmem:[%s1 + $0x28] sm:$0xf]
      %v374 = vld [vmem:[%s1 + $0x2c] sm:$0xf]
      %v375 = vld [vmem:[%s1 + $0x30] sm:$0xf]
      %v376 = vld [vmem:[%s1 + $0x34] sm:$0xf]
      %v377 = vld [vmem:[%s1 + $0x38] sm:$0xf]
      %v378 = vld [vmem:[%s1 + $0x3c] sm:$0xf]
      %v379 = vld [vmem:[%s1 + $0x40] sm:$0xf]
      %v380 = vld [vmem:[%s1 + $0x44] sm:$0xf]
      %v381 = vld [vmem:[%s1 + $0x48] sm:$0xf]
      %v382 = vld [vmem:[%s1 + $0x4c] sm:$0xf]
      %v383 = vld [vmem:[%s1 + $0x50] sm:$0xf]
      %v384 = vld [vmem:[%s1 + $0x54] sm:$0xf]
      %v385 = vld [vmem:[%s1 + $0x58] sm:$0xf]
      %v386 = vld [vmem:[%s1 + $0x5c] sm:$0xf]
      %v387 = vld [vmem:[%s2] sm:$0xff]
      %v388 = vld [vmem:[%s2 + $0x8] sm:$0xff]
      %v389 = vld [vmem:[%s2 + $0x10] sm:$0xff]
      %v390 = vld [vmem:[%s2 + $0x18] sm:$0xff]
      %v395 = vunpack.c.l.b16 %v359
      %v396 = vunpack.c.h.b16 %v359
      %v397 = vunpack.c.l.b16 %v360
      %v398 = vunpack.c.h.b16 %v360
      %v399 = vunpack.c.l.b16 %v361
      %v400 = vunpack.c.h.b16 %v361
      %v401 = vunpack.c.l.b16 %v362
      %v402 = vunpack.c.h.b16 %v362
      %v403 = vpack.c.b16 %v397, %v395
      %v404 = vpack.c.b16 %v398, %v396
      %v405 = vpack.c.b16 %v401, %v399
      %v406 = vpack.c.b16 %v402, %v400
      %v433 = vunpack.c.l.b16 %v363
      %v434 = vunpack.c.l.b16 %v364
      %v435 = vunpack.c.l.b16 %v365
      %v436 = vunpack.c.l.b16 %v366
      %v437 = vunpack.c.l.b16 %v367
      %v438 = vunpack.c.l.b16 %v368
      %v439 = vunpack.c.l.b16 %v369
      %v440 = vunpack.c.l.b16 %v370
      %v441 = vunpack.c.l.b16 %v371
      %v442 = vunpack.c.l.b16 %v372
      %v443 = vunpack.c.l.b16 %v373
      %v444 = vunpack.c.l.b16 %v374
      %v445 = vunpack.c.l.b16 %v375
      %v446 = vunpack.c.l.b16 %v376
      %v447 = vunpack.c.l.b16 %v377
      %v448 = vunpack.c.l.b16 %v378
      %v449 = vunpack.c.l.b16 %v379
      %v450 = vunpack.c.l.b16 %v380
      %v451 = vunpack.c.l.b16 %v381
      %v452 = vunpack.c.l.b16 %v382
      %v453 = vunpack.c.l.b16 %v383
      %v454 = vunpack.c.l.b16 %v384
      %v455 = vunpack.c.l.b16 %v385
      %v456 = vunpack.c.l.b16 %v386
      %v457 = vpack.c.b16 %v434, %v433
      %v458 = vpack.c.b16 %v436, %v435
      %v459 = vpack.c.b16 %v438, %v437
      %v460 = vpack.c.b16 %v440, %v439
      %v461 = vpack.c.b16 %v442, %v441
      %v462 = vpack.c.b16 %v444, %v443
      %v463 = vpack.c.b16 %v446, %v445
      %v464 = vpack.c.b16 %v448, %v447
      %v465 = vpack.c.b16 %v450, %v449
      %v466 = vpack.c.b16 %v452, %v451
      %v467 = vpack.c.b16 %v454, %v453
      %v468 = vpack.c.b16 %v456, %v455
      %vm481 = vcmask 523264
      %v483 = vsel %vm481, %v404, 0
      %v486 = vsel %vm481, %v406, 0
      %488 = vmatprep.subr.bf16.mxu0 0
      %489 = vmatpush1.bf16.msra.mxu0 %v457
      %490 = vmatprep.subr.bf16.mxu0 0
      %491 = vmatpush1.bf16.msra.mxu0 %v458
      %492 = vmatprep.subr.bf16.mxu0 0
      %493 = vmatpush1.bf16.msra.mxu0 %v459
      %494 = vmatprep.subr.bf16.mxu0 0
      %495 = vmatpush1.bf16.msra.mxu0 %v460
      %496 = vmatprep.subr.bf16.mxu0 0
      %497 = vmatpush1.bf16.msra.mxu0 %v461
      %498 = vmatprep.subr.bf16.mxu0 0
      %499 = vmatpush1.bf16.msra.mxu0 %v462
      %500 = vmatprep.subr.bf16.mxu0 0
      %501 = vmatpush1.bf16.msra.mxu0 %v463
      %502 = vmatprep.subr.bf16.mxu0 0
      %503 = vmatpush1.bf16.msra.mxu0 %v464
      %504 = vmatprep.subr.bf16.mxu0 0
      %505 = vmatpush1.bf16.msra.mxu0 %v465
      %506 = vmatprep.subr.bf16.mxu0 0
      %507 = vmatpush1.bf16.msra.mxu0 %v466
      %508 = vmatprep.subr.bf16.mxu0 0
      %509 = vmatpush1.bf16.msra.mxu0 %v467
      %510 = vmatprep.subr.bf16.mxu0 0
      %511 = vmatpush1.bf16.msra.mxu0 %v468
      %512 = vmatprep.subr.bf16.mxu0 0
      %513 = vmatpush1.bf16.msra.mxu0 0
      %514 = vmatprep.subr.bf16.mxu0 0
      %515 = vmatpush1.bf16.msra.mxu0 0
      %516 = vmatprep.subr.bf16.mxu0 0
      %517 = vmatpush1.bf16.msra.mxu0 0
      %518 = vmatprep.subr.bf16.mxu0 0
      %519 = vmatpush1.bf16.msra.mxu0 0
      %520 = vmatprep.mubr.bf16.mxu0 %v483
      %521 = vmatmul.mubr.bf16.gmra.mrb[0].mxu0 %v403
      %v522 = vpop.f32.mrb[0].mxu0
      %v523 = vadd.f32 %v387, %v522
      %v524 = vpop.f32.mrb[0].mxu0
      %v525 = vpop.f32.mrb[0].mxu0
      %v526 = vadd.f32 %v388, %v525
      %v527 = vpop.f32.mrb[0].mxu0
      %528 = vmatprep.mubr.bf16.mxu0 %v486
      %529 = vmatmul.mubr.bf16.gmra.mrb[0].mxu0 %v405
      %v530 = vpop.f32.mrb[0].mxu0
      %v531 = vadd.f32 %v389, %v530
      %v532 = vpop.f32.mrb[0].mxu0
      %v533 = vpop.f32.mrb[0].mxu0
      %v534 = vadd.f32 %v390, %v533
      %v535 = vpop.f32.mrb[0].mxu0
      %536 = vdwg.mxu0
      %v537 = vlaneseq
      %v538 = vand.u32 %v537, 127
      %vm539 = vcmp.ge.s32.totalorder %v538, 17
      %v540 = vsel %vm539, -1e+30, 0.0
      %v541 = vld [vmem:[%s3] sm:$0xff]
      %v542 = vld [vmem:[%s3 + $0x8] sm:$0xff]
      %v543 = vld [vmem:[%s5] sm:$0xf]
      %v544 = vld [vmem:[%s5 + $0x4] sm:$0xf]
      %v545 = vld [vmem:[%s5 + $0x8] sm:$0xf]
      %v546 = vld [vmem:[%s5 + $0xc] sm:$0xf]
      %v547 = vld [vmem:[%s5 + $0x10] sm:$0xf]
      %v548 = vld [vmem:[%s5 + $0x14] sm:$0xf]
      %v549 = vld [vmem:[%s5 + $0x18] sm:$0xf]
      %v550 = vld [vmem:[%s5 + $0x1c] sm:$0xf]
      %v551 = vsel %vm481, %v523, 0.0
      %552 = vadd.xlane.f32.xlu0 %v551
      %v553 = vpop.xlane.xlu0 %552
      %v554 = vsel %vm481, %v526, 0.0
      %555 = vadd.xlane.f32.xlu0 %v554
      %v556 = vpop.xlane.xlu0 %555
      %v557 = vsel %vm481, %v531, 0.0
      %558 = vadd.xlane.f32.xlu0 %v557
      %v559 = vpop.xlane.xlu0 %558
      %v560 = vsel %vm481, %v534, 0.0
      %561 = vadd.xlane.f32.xlu0 %v560
      %v562 = vpop.xlane.xlu0 %561
      %v563 = vrcp.pop 64.0
      %v564 = vmul.f32 %v553, %v563
      %v565 = vmul.f32 %v556, %v563
      %v566 = vmul.f32 %v559, %v563
      %v567 = vmul.f32 %v562, %v563
      %v568 = vmul.f32 %v523, %v523
      %v569 = vmul.f32 %v526, %v526
      %v570 = vmul.f32 %v531, %v531
      %v571 = vmul.f32 %v534, %v534
      %v572 = vsel %vm481, %v568, 0.0
      %573 = vadd.xlane.f32.xlu0 %v572
      %v574 = vpop.xlane.xlu0 %573
      %v575 = vsel %vm481, %v569, 0.0
      %576 = vadd.xlane.f32.xlu0 %v575
      %v577 = vpop.xlane.xlu0 %576
      %v578 = vsel %vm481, %v570, 0.0
      %579 = vadd.xlane.f32.xlu0 %v578
      %v580 = vpop.xlane.xlu0 %579
      %v581 = vsel %vm481, %v571, 0.0
      %582 = vadd.xlane.f32.xlu0 %v581
      %v583 = vpop.xlane.xlu0 %582
      %v584 = vmul.f32 %v574, %v563
      %v585 = vmul.f32 %v577, %v563
      %v586 = vmul.f32 %v580, %v563
      %v587 = vmul.f32 %v583, %v563
      %v588 = vsub.f32 %v523, %v564
      %v589 = vsub.f32 %v526, %v565
      %v590 = vsub.f32 %v531, %v566
      %v591 = vsub.f32 %v534, %v567
      %v592 = vmul.f32 %v564, %v564
      %v593 = vmul.f32 %v565, %v565
      %v594 = vmul.f32 %v566, %v566
      %v595 = vmul.f32 %v567, %v567
      %v596 = vsub.f32 %v584, %v592
      %v597 = vsub.f32 %v585, %v593
      %v598 = vsub.f32 %v586, %v594
      %v599 = vsub.f32 %v587, %v595
      %v600 = vadd.f32 %v596, 1e-06
      %v601 = vadd.f32 %v597, 1e-06
      %v602 = vadd.f32 %v598, 1e-06
      %v603 = vadd.f32 %v599, 1e-06
      %v604 = vrsqrt.pop %v600
      %v605 = vrsqrt.pop %v601
      %v606 = vrsqrt.pop %v602
      %v607 = vrsqrt.pop %v603
      %v608 = vmul.f32 %v588, %v604
      %v609 = vmul.f32 %v589, %v605
      %v610 = vmul.f32 %v590, %v606
      %v611 = vmul.f32 %v591, %v607
      %v612 = vlaneseq
      %v613 = vshrl.u32 %v612, 7
      %v614 = vsub.s32 0, %v613
      %v615 = vrot.slane %v541, %v614
      %v616 = vmul.f32 %v608, %v615
      %v617 = vmul.f32 %v609, %v615
      %v618 = vmul.f32 %v610, %v615
      %v619 = vmul.f32 %v611, %v615
      %v620 = vlaneseq
      %v621 = vshrl.u32 %v620, 7
      %v622 = vsub.s32 1, %v621
      %v623 = vrot.slane %v541, %v622
      %v624 = vadd.f32 %v616, %v623
      %v625 = vadd.f32 %v617, %v623
      %v626 = vadd.f32 %v618, %v623
      %v627 = vadd.f32 %v619, %v623
      %v628 = vld [vmem:[%s4] sm:$0xff]
      %v629 = vld [vmem:[%s4 + $0x8] sm:$0xff]
      %v630 = vld [vmem:[%s4 + $0x10] sm:$0xff]
      %v631 = vld [vmem:[%s4 + $0x18] sm:$0xff]
      %v632 = vld [vmem:[%s4 + $0x20] sm:$0xff]
      %v633 = vld [vmem:[%s4 + $0x28] sm:$0xff]
      %v634 = vld [vmem:[%s4 + $0x30] sm:$0xff]
      %v635 = vld [vmem:[%s4 + $0x38] sm:$0xff]
      %v636 = vpack.c.bf16 %v625, %v624
      %v637 = vpack.c.bf16 %v627, %v626
      %v638 = vlaneseq
      %v639 = vshrl.u32 %v638, 7
      %v640 = vsub.s32 2, %v639
      %v641 = vrot.slane %v541, %v640
      %v642 = vlaneseq
      %v643 = vshrl.u32 %v642, 7
      %v644 = vsub.s32 2, %v643
      %v645 = vrot.slane %v542, %v644
      %v654 = vunpack.c.l.b16 %v628
      %v655 = vunpack.c.h.b16 %v628
      %v656 = vunpack.c.l.b16 %v629
      %v657 = vunpack.c.h.b16 %v629
      %v658 = vunpack.c.l.b16 %v630
      %v659 = vunpack.c.h.b16 %v630
      %v660 = vunpack.c.l.b16 %v631
      %v661 = vunpack.c.h.b16 %v631
      %v662 = vunpack.c.l.b16 %v632
      %v663 = vunpack.c.h.b16 %v632
      %v664 = vunpack.c.l.b16 %v633
      %v665 = vunpack.c.h.b16 %v633
      %v666 = vunpack.c.l.b16 %v634
      %v667 = vunpack.c.h.b16 %v634
      %v668 = vunpack.c.l.b16 %v635
      %v669 = vunpack.c.h.b16 %v635
      %v670 = vpack.c.b16 %v656, %v654
      %v671 = vpack.c.b16 %v657, %v655
      %v672 = vpack.c.b16 %v660, %v658
      %v673 = vpack.c.b16 %v661, %v659
      %v674 = vpack.c.b16 %v664, %v662
      %v675 = vpack.c.b16 %v665, %v663
      %v676 = vpack.c.b16 %v668, %v666
      %v677 = vpack.c.b16 %v669, %v667
      %v687 = vsel %vm481, %v636, 0
      %v690 = vsel %vm481, %v637, 0
      %692 = vmatprep.subr.bf16.mxu0 %v671
      %693 = vmatpush1.bf16.msra.mxu0 %v670
      %694 = vmatprep.subr.bf16.mxu0 %v673
      %695 = vmatpush1.bf16.msra.mxu0 %v672
      %696 = vmatprep.subr.bf16.mxu0 %v675
      %697 = vmatpush1.bf16.msra.mxu0 %v674
      %698 = vmatprep.subr.bf16.mxu0 %v677
      %699 = vmatpush1.bf16.msra.mxu0 %v676
      %700 = vmatprep.subr.bf16.mxu0 0
      %701 = vmatpush1.bf16.msra.mxu0 0
      %702 = vmatprep.subr.bf16.mxu0 0
      %703 = vmatpush1.bf16.msra.mxu0 0
      %704 = vmatprep.subr.bf16.mxu0 0
      %705 = vmatpush1.bf16.msra.mxu0 0
      %706 = vmatprep.subr.bf16.mxu0 0
      %707 = vmatpush1.bf16.msra.mxu0 0
      %708 = vmatprep.subr.bf16.mxu0 0
      %709 = vmatpush1.bf16.msra.mxu0 0
      %710 = vmatprep.subr.bf16.mxu0 0
      %711 = vmatpush1.bf16.msra.mxu0 0
      %712 = vmatprep.subr.bf16.mxu0 0
      %713 = vmatpush1.bf16.msra.mxu0 0
      %714 = vmatprep.subr.bf16.mxu0 0
      %715 = vmatpush1.bf16.msra.mxu0 0
      %716 = vmatprep.subr.bf16.mxu0 0
      %717 = vmatpush1.bf16.msra.mxu0 0
      %718 = vmatprep.subr.bf16.mxu0 0
      %719 = vmatpush1.bf16.msra.mxu0 0
      %720 = vmatprep.subr.bf16.mxu0 0
      %721 = vmatpush1.bf16.msra.mxu0 0
      %722 = vmatprep.subr.bf16.mxu0 0
      %723 = vmatpush1.bf16.msra.mxu0 0
      %724 = vmatprep.mubr.bf16.mxu0 0
      %725 = vmatmul.mubr.bf16.gmra.mrb[0].mxu0 %v687
      %v726 = vpop.f32.mrb[0].mxu0
      %v727 = vadd.f32 %v641, %v726
      %v728 = vpop.f32.mrb[0].mxu0
      %v729 = vadd.f32 %v645, %v728
      %v730 = vpop.f32.mrb[0].mxu0
      %v731 = vadd.f32 %v641, %v730
      %v732 = vpop.f32.mrb[0].mxu0
      %v733 = vadd.f32 %v645, %v732
      %734 = vmatprep.mubr.bf16.mxu0 0
      %735 = vmatmul.mubr.bf16.gmra.mrb[0].mxu0 %v690
      %v736 = vpop.f32.mrb[0].mxu0
      %v737 = vadd.f32 %v641, %v736
      %v738 = vpop.f32.mrb[0].mxu0
      %v739 = vadd.f32 %v645, %v738
      %v740 = vpop.f32.mrb[0].mxu0
      %v741 = vadd.f32 %v641, %v740
      %v742 = vpop.f32.mrb[0].mxu0
      %v743 = vadd.f32 %v645, %v742
      %744 = vdwg.mxu0
      %749 = vrot.lane.b32.xlu0 %v727, 64
      %v750 = vpop.permute.xlu0 %749
      %751 = vrot.lane.b32.xlu0 %v731, 64
      %v752 = vpop.permute.xlu0 %751
      %753 = vrot.lane.b32.xlu0 %v737, 64
      %v754 = vpop.permute.xlu0 %753
      %755 = vrot.lane.b32.xlu0 %v741, 64
      %v756 = vpop.permute.xlu0 %755
      %761 = vxpose.xlu0.b32.start [1/16] %v750, 128
      %762 = vxpose.xlu0.b32.cont [2/16] %v752, 128
      %763 = vxpose.xlu0.b32.cont [3/16] %v754, 128
      %764 = vxpose.xlu0.b32.cont [4/16] %v756, 128
      %765 = vxpose.xlu0.b32.cont [5/16] 0.0, 128
      %766 = vxpose.xlu0.b32.cont [6/16] 0.0, 128
      %767 = vxpose.xlu0.b32.cont [7/16] 0.0, 128
      %768 = vxpose.xlu0.b32.cont [8/16] 0.0, 128
      %769 = vxpose.xlu0.b32.cont [9/16] 0.0, 128
      %770 = vxpose.xlu0.b32.cont [10/16] 0.0, 128
      %771 = vxpose.xlu0.b32.cont [11/16] 0.0, 128
      %772 = vxpose.xlu0.b32.cont [12/16] 0.0, 128
      %773 = vxpose.xlu0.b32.cont [13/16] 0.0, 128
      %774 = vxpose.xlu0.b32.cont [14/16] 0.0, 128
      %775 = vxpose.xlu0.b32.cont [15/16] 0.0, 128
      %776 = vxpose.xlu0.b32.end [16/16] 0.0, 128
      %v777 = vpop.trf.xlu0
      %v778 = vpop.trf.xlu0
      %v779 = vpop.trf.xlu0
      %v780 = vpop.trf.xlu0
      %v781 = vpop.trf.xlu0
      %v782 = vpop.trf.xlu0
      %v783 = vpop.trf.xlu0
      %v784 = vpop.trf.xlu0
      %v785 = vpop.trf.xlu0
      %v786 = vpop.trf.xlu0
      %v787 = vpop.trf.xlu0
      %v788 = vpop.trf.xlu0
      %v789 = vpop.trf.xlu0
      %v790 = vpop.trf.xlu0
      %v791 = vpop.trf.xlu0
      %v792 = vpop.trf.xlu0
      %v793 = vpack.c.bf16 %v731, %v727
      %v794 = vpack.c.bf16 %v741, %v737
      %v795 = vpack.c.bf16 %v778, %v777
      %vm796 = vcmask 130048
      %v798 = vsel %vm796, %v793, 0
      %v801 = vsel %vm796, %v794, 0
      %803 = vmatprep.subr.bf16.mxu0 0
      %804 = vmatpush1.bf16.msra.mxu0 %v795
      %805 = vmatprep.subr.bf16.mxu0 0
      %806 = vmatpush1.bf16.msra.mxu0 0
      %807 = vmatprep.subr.bf16.mxu0 0
      %808 = vmatpush1.bf16.msra.mxu0 0
      %809 = vmatprep.subr.bf16.mxu0 0
      %810 = vmatpush1.bf16.msra.mxu0 0
      %811 = vmatprep.subr.bf16.mxu0 0
      %812 = vmatpush1.bf16.msra.mxu0 0
      %813 = vmatprep.subr.bf16.mxu0 0
      %814 = vmatpush1.bf16.msra.mxu0 0
      %815 = vmatprep.subr.bf16.mxu0 0
      %816 = vmatpush1.bf16.msra.mxu0 0
      %817 = vmatprep.subr.bf16.mxu0 0
      %818 = vmatpush1.bf16.msra.mxu0 0
      %819 = vmatprep.subr.bf16.mxu0 0
      %820 = vmatpush1.bf16.msra.mxu0 0
      %821 = vmatprep.subr.bf16.mxu0 0
      %822 = vmatpush1.bf16.msra.mxu0 0
      %823 = vmatprep.subr.bf16.mxu0 0
      %824 = vmatpush1.bf16.msra.mxu0 0
      %825 = vmatprep.subr.bf16.mxu0 0
      %826 = vmatpush1.bf16.msra.mxu0 0
      %827 = vmatprep.subr.bf16.mxu0 0
      %828 = vmatpush1.bf16.msra.mxu0 0
      %829 = vmatprep.subr.bf16.mxu0 0
      %830 = vmatpush1.bf16.msra.mxu0 0
      %831 = vmatprep.subr.bf16.mxu0 0
      %832 = vmatpush1.bf16.msra.mxu0 0
      %833 = vmatprep.subr.bf16.mxu0 0
      %834 = vmatpush1.bf16.msra.mxu0 0
      %835 = vmatprep.mubr.bf16.mxu0 0
      %836 = vmatmul.mubr.bf16.gmra.mrb[0].mxu0 %v798
      %v837 = vpop.f32.mrb[0].mxu0
      %v838 = vadd.f32 0.0, %v837
      %v839 = vpop.f32.mrb[0].mxu0
      %v840 = vpop.f32.mrb[0].mxu0
      %v841 = vadd.f32 0.0, %v840
      %v842 = vpop.f32.mrb[0].mxu0
      %843 = vmatprep.mubr.bf16.mxu0 0
      %844 = vmatmul.mubr.bf16.gmra.mrb[0].mxu0 %v801
      %v845 = vpop.f32.mrb[0].mxu0
      %v846 = vadd.f32 0.0, %v845
      %v847 = vpop.f32.mrb[0].mxu0
      %v848 = vpop.f32.mrb[0].mxu0
      %v849 = vadd.f32 0.0, %v848
      %v850 = vpop.f32.mrb[0].mxu0
      %851 = vdwg.mxu0
      %v852 = vmul.f32 %v838, 0.25
      %v853 = vmul.f32 %v841, 0.25
      %v854 = vmul.f32 %v846, 0.25
      %v855 = vmul.f32 %v849, 0.25
      %v856 = vadd.f32 %v852, %v540
      %v857 = vadd.f32 %v853, %v540
      %v858 = vadd.f32 %v854, %v540
      %v859 = vadd.f32 %v855, %v540
      %vm860 = vcmask 261120
      %v861 = vsel %vm860, %v856, -inf
      %862 = vmax.xlane.f32.xlu0 %v861
      %v863 = vpop.xlane.xlu0 %862
      %v864 = vsel %vm860, %v857, -inf
      %865 = vmax.xlane.f32.xlu0 %v864
      %v866 = vpop.xlane.xlu0 %865
      %v867 = vsel %vm860, %v858, -inf
      %868 = vmax.xlane.f32.xlu0 %v867
      %v869 = vpop.xlane.xlu0 %868
      %v870 = vsel %vm860, %v859, -inf
      %871 = vmax.xlane.f32.xlu0 %v870
      %v872 = vpop.xlane.xlu0 %871
      %v873 = vsub.f32 %v856, %v863
      %v874 = vsub.f32 %v857, %v866
      %v875 = vsub.f32 %v858, %v869
      %v876 = vsub.f32 %v859, %v872
      %v877 = vmul.f32 %v873, 1.442695
      %v878 = vpow.pop %v877
      %v879 = vmul.f32 %v874, 1.442695
      %v880 = vpow.pop %v879
      %v881 = vmul.f32 %v875, 1.442695
      %v882 = vpow.pop %v881
      %v883 = vmul.f32 %v876, 1.442695
      %v884 = vpow.pop %v883
      %v885 = vsel %vm860, %v878, 0.0
      %886 = vadd.xlane.f32.xlu0 %v885
      %v887 = vpop.xlane.xlu0 %886
      %v888 = vsel %vm860, %v880, 0.0
      %889 = vadd.xlane.f32.xlu0 %v888
      %v890 = vpop.xlane.xlu0 %889
      %v891 = vsel %vm860, %v882, 0.0
      %892 = vadd.xlane.f32.xlu0 %v891
      %v893 = vpop.xlane.xlu0 %892
      %v894 = vsel %vm860, %v884, 0.0
      %895 = vadd.xlane.f32.xlu0 %v894
      %v896 = vpop.xlane.xlu0 %895
      %v897 = vrcp.pop %v887
      %v898 = vrcp.pop %v890
      %v899 = vrcp.pop %v893
      %v900 = vrcp.pop %v896
      %v901 = vmul.f32 %v878, %v897
      %v902 = vmul.f32 %v880, %v898
      %v903 = vmul.f32 %v882, %v899
      %v904 = vmul.f32 %v884, %v900
      %v905 = vpack.c.bf16 %v902, %v901
      %v906 = vpack.c.bf16 %v904, %v903
      %v907 = vpack.c.bf16 %v733, %v729
      %v908 = vpack.c.bf16 %v743, %v739
      %v910 = vsel %vm860, %v905, 0
      %v913 = vsel %vm860, %v906, 0
      %915 = vmatprep.subr.bf16.mxu0 0
      %916 = vmatpush1.bf16.msra.mxu0 %v907
      %917 = vmatprep.subr.bf16.mxu0 0
      %918 = vmatpush1.bf16.msra.mxu0 %v908
      %919 = vmatprep.subr.bf16.mxu0 0
      %920 = vmatpush1.bf16.msra.mxu0 0
      %921 = vmatprep.subr.bf16.mxu0 0
      %922 = vmatpush1.bf16.msra.mxu0 0
      %923 = vmatprep.subr.bf16.mxu0 0
      %924 = vmatpush1.bf16.msra.mxu0 0
      %925 = vmatprep.subr.bf16.mxu0 0
      %926 = vmatpush1.bf16.msra.mxu0 0
      %927 = vmatprep.subr.bf16.mxu0 0
      %928 = vmatpush1.bf16.msra.mxu0 0
      %929 = vmatprep.subr.bf16.mxu0 0
      %930 = vmatpush1.bf16.msra.mxu0 0
      %931 = vmatprep.subr.bf16.mxu0 0
      %932 = vmatpush1.bf16.msra.mxu0 0
      %933 = vmatprep.subr.bf16.mxu0 0
      %934 = vmatpush1.bf16.msra.mxu0 0
      %935 = vmatprep.subr.bf16.mxu0 0
      %936 = vmatpush1.bf16.msra.mxu0 0
      %937 = vmatprep.subr.bf16.mxu0 0
      %938 = vmatpush1.bf16.msra.mxu0 0
      %939 = vmatprep.subr.bf16.mxu0 0
      %940 = vmatpush1.bf16.msra.mxu0 0
      %941 = vmatprep.subr.bf16.mxu0 0
      %942 = vmatpush1.bf16.msra.mxu0 0
      %943 = vmatprep.subr.bf16.mxu0 0
      %944 = vmatpush1.bf16.msra.mxu0 0
      %945 = vmatprep.subr.bf16.mxu0 0
      %946 = vmatpush1.bf16.msra.mxu0 0
      %947 = vmatprep.mubr.bf16.mxu0 0
      %948 = vmatmul.mubr.bf16.gmra.mrb[0].mxu0 %v910
      %v949 = vpop.f32.mrb[0].mxu0
      %v950 = vadd.f32 0.0, %v949
      %v951 = vpop.f32.mrb[0].mxu0
      %v952 = vpop.f32.mrb[0].mxu0
      %v953 = vadd.f32 0.0, %v952
      %v954 = vpop.f32.mrb[0].mxu0
      %955 = vmatprep.mubr.bf16.mxu0 0
      %956 = vmatmul.mubr.bf16.gmra.mrb[0].mxu0 %v913
      %v957 = vpop.f32.mrb[0].mxu0
      %v958 = vadd.f32 0.0, %v957
      %v959 = vpop.f32.mrb[0].mxu0
      %v960 = vpop.f32.mrb[0].mxu0
      %v961 = vadd.f32 0.0, %v960
      %v962 = vpop.f32.mrb[0].mxu0
      %963 = vdwg.mxu0
      %v964 = vpack.c.bf16 %v953, %v950
      %v965 = vpack.c.bf16 %v961, %v958
      %v966 = vpack.c.bf16 %v780, %v779
      %969 = vrot.lane.b32.xlu0 %v793, 112
      %v970 = vpop.permute.xlu0 %969
      %971 = vrot.lane.b32.xlu0 %v794, 112
      %v972 = vpop.permute.xlu0 %971
      %v974 = vsel %vm796, %v970, 0
      %v977 = vsel %vm796, %v972, 0
      %979 = vmatprep.subr.bf16.mxu0 0
      %980 = vmatpush1.bf16.msra.mxu0 %v966
      %981 = vmatprep.subr.bf16.mxu0 0
      %982 = vmatpush1.bf16.msra.mxu0 0
      %983 = vmatprep.subr.bf16.mxu0 0
      %984 = vmatpush1.bf16.msra.mxu0 0
      %985 = vmatprep.subr.bf16.mxu0 0
      %986 = vmatpush1.bf16.msra.mxu0 0
      %987 = vmatprep.subr.bf16.mxu0 0
      %988 = vmatpush1.bf16.msra.mxu0 0
      %989 = vmatprep.subr.bf16.mxu0 0
      %990 = vmatpush1.bf16.msra.mxu0 0
      %991 = vmatprep.subr.bf16.mxu0 0
      %992 = vmatpush1.bf16.msra.mxu0 0
      %993 = vmatprep.subr.bf16.mxu0 0
      %994 = vmatpush1.bf16.msra.mxu0 0
      %995 = vmatprep.subr.bf16.mxu0 0
      %996 = vmatpush1.bf16.msra.mxu0 0
      %997 = vmatprep.subr.bf16.mxu0 0
      %998 = vmatpush1.bf16.msra.mxu0 0
      %999 = vmatprep.subr.bf16.mxu0 0
      %1000 = vmatpush1.bf16.msra.mxu0 0
      %1001 = vmatprep.subr.bf16.mxu0 0
      %1002 = vmatpush1.bf16.msra.mxu0 0
      %1003 = vmatprep.subr.bf16.mxu0 0
      %1004 = vmatpush1.bf16.msra.mxu0 0
      %1005 = vmatprep.subr.bf16.mxu0 0
      %1006 = vmatpush1.bf16.msra.mxu0 0
      %1007 = vmatprep.subr.bf16.mxu0 0
      %1008 = vmatpush1.bf16.msra.mxu0 0
      %1009 = vmatprep.subr.bf16.mxu0 0
      %1010 = vmatpush1.bf16.msra.mxu0 0
      %1011 = vmatprep.mubr.bf16.mxu0 0
      %1012 = vmatmul.mubr.bf16.gmra.mrb[0].mxu0 %v974
      %v1013 = vpop.f32.mrb[0].mxu0
      %v1014 = vadd.f32 0.0, %v1013
      %v1015 = vpop.f32.mrb[0].mxu0
      %v1016 = vpop.f32.mrb[0].mxu0
      %v1017 = vadd.f32 0.0, %v1016
      %v1018 = vpop.f32.mrb[0].mxu0
      %1019 = vmatprep.mubr.bf16.mxu0 0
      %1020 = vmatmul.mubr.bf16.gmra.mrb[0].mxu0 %v977
      %v1021 = vpop.f32.mrb[0].mxu0
      %v1022 = vadd.f32 0.0, %v1021
      %v1023 = vpop.f32.mrb[0].mxu0
      %v1024 = vpop.f32.mrb[0].mxu0
      %v1025 = vadd.f32 0.0, %v1024
      %v1026 = vpop.f32.mrb[0].mxu0
      %1027 = vdwg.mxu0
      %v1028 = vmul.f32 %v1014, 0.25
      %v1029 = vmul.f32 %v1017, 0.25
      %v1030 = vmul.f32 %v1022, 0.25
      %v1031 = vmul.f32 %v1025, 0.25
      %v1032 = vadd.f32 %v1028, %v540
      %v1033 = vadd.f32 %v1029, %v540
      %v1034 = vadd.f32 %v1030, %v540
      %v1035 = vadd.f32 %v1031, %v540
      %v1036 = vsel %vm860, %v1032, -inf
      %1037 = vmax.xlane.f32.xlu0 %v1036
      %v1038 = vpop.xlane.xlu0 %1037
      %v1039 = vsel %vm860, %v1033, -inf
      %1040 = vmax.xlane.f32.xlu0 %v1039
      %v1041 = vpop.xlane.xlu0 %1040
      %v1042 = vsel %vm860, %v1034, -inf
      %1043 = vmax.xlane.f32.xlu0 %v1042
      %v1044 = vpop.xlane.xlu0 %1043
      %v1045 = vsel %vm860, %v1035, -inf
      %1046 = vmax.xlane.f32.xlu0 %v1045
      %v1047 = vpop.xlane.xlu0 %1046
      %v1048 = vsub.f32 %v1032, %v1038
      %v1049 = vsub.f32 %v1033, %v1041
      %v1050 = vsub.f32 %v1034, %v1044
      %v1051 = vsub.f32 %v1035, %v1047
      %v1052 = vmul.f32 %v1048, 1.442695
      %v1053 = vpow.pop %v1052
      %v1054 = vmul.f32 %v1049, 1.442695
      %v1055 = vpow.pop %v1054
      %v1056 = vmul.f32 %v1050, 1.442695
      %v1057 = vpow.pop %v1056
      %v1058 = vmul.f32 %v1051, 1.442695
      %v1059 = vpow.pop %v1058
      %v1060 = vsel %vm860, %v1053, 0.0
      %1061 = vadd.xlane.f32.xlu0 %v1060
      %v1062 = vpop.xlane.xlu0 %1061
      %v1063 = vsel %vm860, %v1055, 0.0
      %1064 = vadd.xlane.f32.xlu0 %v1063
      %v1065 = vpop.xlane.xlu0 %1064
      %v1066 = vsel %vm860, %v1057, 0.0
      %1067 = vadd.xlane.f32.xlu0 %v1066
      %v1068 = vpop.xlane.xlu0 %1067
      %v1069 = vsel %vm860, %v1059, 0.0
      %1070 = vadd.xlane.f32.xlu0 %v1069
      %v1071 = vpop.xlane.xlu0 %1070
      %v1072 = vrcp.pop %v1062
      %v1073 = vrcp.pop %v1065
      %v1074 = vrcp.pop %v1068
      %v1075 = vrcp.pop %v1071
      %v1076 = vmul.f32 %v1053, %v1072
      %v1077 = vmul.f32 %v1055, %v1073
      %v1078 = vmul.f32 %v1057, %v1074
      %v1079 = vmul.f32 %v1059, %v1075
      %v1080 = vpack.c.bf16 %v1077, %v1076
      %v1081 = vpack.c.bf16 %v1079, %v1078
      %1084 = vrot.lane.b32.xlu0 %v907, 112
      %v1085 = vpop.permute.xlu0 %1084
      %1086 = vrot.lane.b32.xlu0 %v908, 112
      %v1087 = vpop.permute.xlu0 %1086
      %v1091 = vsel %vm860, %v1080, 0
      %v1094 = vsel %vm860, %v1081, 0
      %1096 = vmatprep.subr.bf16.mxu0 0
      %1097 = vmatpush1.bf16.msra.mxu0 %v1085
      %1098 = vmatprep.subr.bf16.mxu0 0
      %1099 = vmatpush1.bf16.msra.mxu0 %v1087
      %1100 = vmatprep.subr.bf16.mxu0 0
      %1101 = vmatpush1.bf16.msra.mxu0 0
      %1102 = vmatprep.subr.bf16.mxu0 0
      %1103 = vmatpush1.bf16.msra.mxu0 0
      %1104 = vmatprep.subr.bf16.mxu0 0
      %1105 = vmatpush1.bf16.msra.mxu0 0
      %1106 = vmatprep.subr.bf16.mxu0 0
      %1107 = vmatpush1.bf16.msra.mxu0 0
      %1108 = vmatprep.subr.bf16.mxu0 0
      %1109 = vmatpush1.bf16.msra.mxu0 0
      %1110 = vmatprep.subr.bf16.mxu0 0
      %1111 = vmatpush1.bf16.msra.mxu0 0
      %1112 = vmatprep.subr.bf16.mxu0 0
      %1113 = vmatpush1.bf16.msra.mxu0 0
      %1114 = vmatprep.subr.bf16.mxu0 0
      %1115 = vmatpush1.bf16.msra.mxu0 0
      %1116 = vmatprep.subr.bf16.mxu0 0
      %1117 = vmatpush1.bf16.msra.mxu0 0
      %1118 = vmatprep.subr.bf16.mxu0 0
      %1119 = vmatpush1.bf16.msra.mxu0 0
      %1120 = vmatprep.subr.bf16.mxu0 0
      %1121 = vmatpush1.bf16.msra.mxu0 0
      %1122 = vmatprep.subr.bf16.mxu0 0
      %1123 = vmatpush1.bf16.msra.mxu0 0
      %1124 = vmatprep.subr.bf16.mxu0 0
      %1125 = vmatpush1.bf16.msra.mxu0 0
      %1126 = vmatprep.subr.bf16.mxu0 0
      %1127 = vmatpush1.bf16.msra.mxu0 0
      %1128 = vmatprep.mubr.bf16.mxu0 0
      %1129 = vmatmul.mubr.bf16.gmra.mrb[0].mxu0 %v1091
      %v1130 = vpop.f32.mrb[0].mxu0
      %v1131 = vadd.f32 0.0, %v1130
      %v1132 = vpop.f32.mrb[0].mxu0
      %v1133 = vpop.f32.mrb[0].mxu0
      %v1134 = vadd.f32 0.0, %v1133
      %v1135 = vpop.f32.mrb[0].mxu0
      %1136 = vmatprep.mubr.bf16.mxu0 0
      %1137 = vmatmul.mubr.bf16.gmra.mrb[0].mxu0 %v1094
      %v1138 = vpop.f32.mrb[0].mxu0
      %v1139 = vadd.f32 0.0, %v1138
      %v1140 = vpop.f32.mrb[0].mxu0
      %v1141 = vpop.f32.mrb[0].mxu0
      %v1142 = vadd.f32 0.0, %v1141
      %v1143 = vpop.f32.mrb[0].mxu0
      %1144 = vdwg.mxu0
      %v1145 = vpack.c.bf16 %v1134, %v1131
      %v1146 = vpack.c.bf16 %v1142, %v1139
      %v1149 = vunpack.c.l.b16 %v545
      %v1150 = vunpack.c.l.b16 %v546
      %v1151 = vpack.c.b16 %v1150, %v1149
      %v1154 = vsel %vm796, %v1145, 0
      %v1157 = vsel %vm796, %v1146, 0
      %1159 = vmatprep.subr.bf16.mxu0 0
      %1160 = vmatpush1.bf16.msra.mxu0 %v1151
      %1161 = vmatprep.subr.bf16.mxu0 0
      %1162 = vmatpush1.bf16.msra.mxu0 0
      %1163 = vmatprep.subr.bf16.mxu0 0
      %1164 = vmatpush1.bf16.msra.mxu0 0
      %1165 = vmatprep.subr.bf16.mxu0 0
      %1166 = vmatpush1.bf16.msra.mxu0 0
      %1167 = vmatprep.subr.bf16.mxu0 0
      %1168 = vmatpush1.bf16.msra.mxu0 0
      %1169 = vmatprep.subr.bf16.mxu0 0
      %1170 = vmatpush1.bf16.msra.mxu0 0
      %1171 = vmatprep.subr.bf16.mxu0 0
      %1172 = vmatpush1.bf16.msra.mxu0 0
      %1173 = vmatprep.subr.bf16.mxu0 0
      %1174 = vmatpush1.bf16.msra.mxu0 0
      %1175 = vmatprep.subr.bf16.mxu0 0
      %1176 = vmatpush1.bf16.msra.mxu0 0
      %1177 = vmatprep.subr.bf16.mxu0 0
      %1178 = vmatpush1.bf16.msra.mxu0 0
      %1179 = vmatprep.subr.bf16.mxu0 0
      %1180 = vmatpush1.bf16.msra.mxu0 0
      %1181 = vmatprep.subr.bf16.mxu0 0
      %1182 = vmatpush1.bf16.msra.mxu0 0
      %1183 = vmatprep.subr.bf16.mxu0 0
      %1184 = vmatpush1.bf16.msra.mxu0 0
      %1185 = vmatprep.subr.bf16.mxu0 0
      %1186 = vmatpush1.bf16.msra.mxu0 0
      %1187 = vmatprep.subr.bf16.mxu0 0
      %1188 = vmatpush1.bf16.msra.mxu0 0
      %1189 = vmatprep.subr.bf16.mxu0 0
      %1190 = vmatpush1.bf16.msra.mxu0 0
      %1191 = vmatprep.mubr.bf16.mxu0 0
      %1192 = vmatmul.mubr.bf16.gmra.mrb[0].mxu0 %v1154
      %v1193 = vpop.f32.mrb[0].mxu0
      %v1194 = vadd.f32 0.0, %v1193
      %v1195 = vpop.f32.mrb[0].mxu0
      %v1196 = vpop.f32.mrb[0].mxu0
      %v1197 = vadd.f32 0.0, %v1196
      %v1198 = vpop.f32.mrb[0].mxu0
      %1199 = vmatprep.mubr.bf16.mxu0 0
      %1200 = vmatmul.mubr.bf16.gmra.mrb[0].mxu0 %v1157
      %v1201 = vpop.f32.mrb[0].mxu0
      %v1202 = vadd.f32 0.0, %v1201
      %v1203 = vpop.f32.mrb[0].mxu0
      %v1204 = vpop.f32.mrb[0].mxu0
      %v1205 = vadd.f32 0.0, %v1204
      %v1206 = vpop.f32.mrb[0].mxu0
      %1207 = vdwg.mxu0
      %v1210 = vunpack.c.l.b16 %v543
      %v1211 = vunpack.c.l.b16 %v544
      %v1212 = vpack.c.b16 %v1211, %v1210
      %v1215 = vsel %vm796, %v964, 0
      %v1218 = vsel %vm796, %v965, 0
      %1220 = vmatprep.subr.bf16.mxu0 0
      %1221 = vmatpush1.bf16.msra.mxu0 %v1212
      %1222 = vmatprep.subr.bf16.mxu0 0
      %1223 = vmatpush1.bf16.msra.mxu0 0
      %1224 = vmatprep.subr.bf16.mxu0 0
      %1225 = vmatpush1.bf16.msra.mxu0 0
      %1226 = vmatprep.subr.bf16.mxu0 0
      %1227 = vmatpush1.bf16.msra.mxu0 0
      %1228 = vmatprep.subr.bf16.mxu0 0
      %1229 = vmatpush1.bf16.msra.mxu0 0
      %1230 = vmatprep.subr.bf16.mxu0 0
      %1231 = vmatpush1.bf16.msra.mxu0 0
      %1232 = vmatprep.subr.bf16.mxu0 0
      %1233 = vmatpush1.bf16.msra.mxu0 0
      %1234 = vmatprep.subr.bf16.mxu0 0
      %1235 = vmatpush1.bf16.msra.mxu0 0
      %1236 = vmatprep.subr.bf16.mxu0 0
      %1237 = vmatpush1.bf16.msra.mxu0 0
      %1238 = vmatprep.subr.bf16.mxu0 0
      %1239 = vmatpush1.bf16.msra.mxu0 0
      %1240 = vmatprep.subr.bf16.mxu0 0
      %1241 = vmatpush1.bf16.msra.mxu0 0
      %1242 = vmatprep.subr.bf16.mxu0 0
      %1243 = vmatpush1.bf16.msra.mxu0 0
      %1244 = vmatprep.subr.bf16.mxu0 0
      %1245 = vmatpush1.bf16.msra.mxu0 0
      %1246 = vmatprep.subr.bf16.mxu0 0
      %1247 = vmatpush1.bf16.msra.mxu0 0
      %1248 = vmatprep.subr.bf16.mxu0 0
      %1249 = vmatpush1.bf16.msra.mxu0 0
      %1250 = vmatprep.subr.bf16.mxu0 0
      %1251 = vmatpush1.bf16.msra.mxu0 0
      %1252 = vmatprep.mubr.bf16.mxu0 0
      %1253 = vmatmul.mubr.bf16.gmra.mrb[0].mxu0 %v1215
      %v1254 = vpop.f32.mrb[0].mxu0
      %v1255 = vadd.f32 %v1194, %v1254
      %v1256 = vpop.f32.mrb[0].mxu0
      %v1257 = vpop.f32.mrb[0].mxu0
      %v1258 = vadd.f32 %v1197, %v1257
      %v1259 = vpop.f32.mrb[0].mxu0
      %1260 = vmatprep.mubr.bf16.mxu0 0
      %1261 = vmatmul.mubr.bf16.gmra.mrb[0].mxu0 %v1218
      %v1262 = vpop.f32.mrb[0].mxu0
      %v1263 = vadd.f32 %v1202, %v1262
      %v1264 = vpop.f32.mrb[0].mxu0
      %v1265 = vpop.f32.mrb[0].mxu0
      %v1266 = vadd.f32 %v1205, %v1265
      %v1267 = vpop.f32.mrb[0].mxu0
      %1268 = vdwg.mxu0
      %v1269 = vpack.c.bf16 %v782, %v781
      %1270 = vrot.lane.b32.xlu0 %v793, 96
      %v1271 = vpop.permute.xlu0 %1270
      %1272 = vrot.lane.b32.xlu0 %v794, 96
      %v1273 = vpop.permute.xlu0 %1272
      %v1275 = vsel %vm796, %v1271, 0
      %v1278 = vsel %vm796, %v1273, 0
      %1280 = vmatprep.subr.bf16.mxu0 0
      %1281 = vmatpush1.bf16.msra.mxu0 %v1269
      %1282 = vmatprep.subr.bf16.mxu0 0
      %1283 = vmatpush1.bf16.msra.mxu0 0
      %1284 = vmatprep.subr.bf16.mxu0 0
      %1285 = vmatpush1.bf16.msra.mxu0 0
      %1286 = vmatprep.subr.bf16.mxu0 0
      %1287 = vmatpush1.bf16.msra.mxu0 0
      %1288 = vmatprep.subr.bf16.mxu0 0
      %1289 = vmatpush1.bf16.msra.mxu0 0
      %1290 = vmatprep.subr.bf16.mxu0 0
      %1291 = vmatpush1.bf16.msra.mxu0 0
      %1292 = vmatprep.subr.bf16.mxu0 0
      %1293 = vmatpush1.bf16.msra.mxu0 0
      %1294 = vmatprep.subr.bf16.mxu0 0
      %1295 = vmatpush1.bf16.msra.mxu0 0
      %1296 = vmatprep.subr.bf16.mxu0 0
      %1297 = vmatpush1.bf16.msra.mxu0 0
      %1298 = vmatprep.subr.bf16.mxu0 0
      %1299 = vmatpush1.bf16.msra.mxu0 0
      %1300 = vmatprep.subr.bf16.mxu0 0
      %1301 = vmatpush1.bf16.msra.mxu0 0
      %1302 = vmatprep.subr.bf16.mxu0 0
      %1303 = vmatpush1.bf16.msra.mxu0 0
      %1304 = vmatprep.subr.bf16.mxu0 0
      %1305 = vmatpush1.bf16.msra.mxu0 0
      %1306 = vmatprep.subr.bf16.mxu0 0
      %1307 = vmatpush1.bf16.msra.mxu0 0
      %1308 = vmatprep.subr.bf16.mxu0 0
      %1309 = vmatpush1.bf16.msra.mxu0 0
      %1310 = vmatprep.subr.bf16.mxu0 0
      %1311 = vmatpush1.bf16.msra.mxu0 0
      %1312 = vmatprep.mubr.bf16.mxu0 0
      %1313 = vmatmul.mubr.bf16.gmra.mrb[0].mxu0 %v1275
      %v1314 = vpop.f32.mrb[0].mxu0
      %v1315 = vadd.f32 0.0, %v1314
      %v1316 = vpop.f32.mrb[0].mxu0
      %v1317 = vpop.f32.mrb[0].mxu0
      %v1318 = vadd.f32 0.0, %v1317
      %v1319 = vpop.f32.mrb[0].mxu0
      %1320 = vmatprep.mubr.bf16.mxu0 0
      %1321 = vmatmul.mubr.bf16.gmra.mrb[0].mxu0 %v1278
      %v1322 = vpop.f32.mrb[0].mxu0
      %v1323 = vadd.f32 0.0, %v1322
      %v1324 = vpop.f32.mrb[0].mxu0
      %v1325 = vpop.f32.mrb[0].mxu0
      %v1326 = vadd.f32 0.0, %v1325
      %v1327 = vpop.f32.mrb[0].mxu0
      %1328 = vdwg.mxu0
      %v1329 = vmul.f32 %v1315, 0.25
      %v1330 = vmul.f32 %v1318, 0.25
      %v1331 = vmul.f32 %v1323, 0.25
      %v1332 = vmul.f32 %v1326, 0.25
      %v1333 = vadd.f32 %v1329, %v540
      %v1334 = vadd.f32 %v1330, %v540
      %v1335 = vadd.f32 %v1331, %v540
      %v1336 = vadd.f32 %v1332, %v540
      %v1337 = vsel %vm860, %v1333, -inf
      %1338 = vmax.xlane.f32.xlu0 %v1337
      %v1339 = vpop.xlane.xlu0 %1338
      %v1340 = vsel %vm860, %v1334, -inf
      %1341 = vmax.xlane.f32.xlu0 %v1340
      %v1342 = vpop.xlane.xlu0 %1341
      %v1343 = vsel %vm860, %v1335, -inf
      %1344 = vmax.xlane.f32.xlu0 %v1343
      %v1345 = vpop.xlane.xlu0 %1344
      %v1346 = vsel %vm860, %v1336, -inf
      %1347 = vmax.xlane.f32.xlu0 %v1346
      %v1348 = vpop.xlane.xlu0 %1347
      %v1349 = vsub.f32 %v1333, %v1339
      %v1350 = vsub.f32 %v1334, %v1342
      %v1351 = vsub.f32 %v1335, %v1345
      %v1352 = vsub.f32 %v1336, %v1348
      %v1353 = vmul.f32 %v1349, 1.442695
      %v1354 = vpow.pop %v1353
      %v1355 = vmul.f32 %v1350, 1.442695
      %v1356 = vpow.pop %v1355
      %v1357 = vmul.f32 %v1351, 1.442695
      %v1358 = vpow.pop %v1357
      %v1359 = vmul.f32 %v1352, 1.442695
      %v1360 = vpow.pop %v1359
      %v1361 = vsel %vm860, %v1354, 0.0
      %1362 = vadd.xlane.f32.xlu0 %v1361
      %v1363 = vpop.xlane.xlu0 %1362
      %v1364 = vsel %vm860, %v1356, 0.0
      %1365 = vadd.xlane.f32.xlu0 %v1364
      %v1366 = vpop.xlane.xlu0 %1365
      %v1367 = vsel %vm860, %v1358, 0.0
      %1368 = vadd.xlane.f32.xlu0 %v1367
      %v1369 = vpop.xlane.xlu0 %1368
      %v1370 = vsel %vm860, %v1360, 0.0
      %1371 = vadd.xlane.f32.xlu0 %v1370
      %v1372 = vpop.xlane.xlu0 %1371
      %v1373 = vrcp.pop %v1363
      %v1374 = vrcp.pop %v1366
      %v1375 = vrcp.pop %v1369
      %v1376 = vrcp.pop %v1372
      %v1377 = vmul.f32 %v1354, %v1373
      %v1378 = vmul.f32 %v1356, %v1374
      %v1379 = vmul.f32 %v1358, %v1375
      %v1380 = vmul.f32 %v1360, %v1376
      %v1381 = vpack.c.bf16 %v1378, %v1377
      %v1382 = vpack.c.bf16 %v1380, %v1379
      %1383 = vrot.lane.b32.xlu0 %v907, 96
      %v1384 = vpop.permute.xlu0 %1383
      %1385 = vrot.lane.b32.xlu0 %v908, 96
      %v1386 = vpop.permute.xlu0 %1385
      %v1390 = vsel %vm860, %v1381, 0
      %v1393 = vsel %vm860, %v1382, 0
      %1395 = vmatprep.subr.bf16.mxu0 0
      %1396 = vmatpush1.bf16.msra.mxu0 %v1384
      %1397 = vmatprep.subr.bf16.mxu0 0
      %1398 = vmatpush1.bf16.msra.mxu0 %v1386
      %1399 = vmatprep.subr.bf16.mxu0 0
      %1400 = vmatpush1.bf16.msra.mxu0 0
      %1401 = vmatprep.subr.bf16.mxu0 0
      %1402 = vmatpush1.bf16.msra.mxu0 0
      %1403 = vmatprep.subr.bf16.mxu0 0
      %1404 = vmatpush1.bf16.msra.mxu0 0
      %1405 = vmatprep.subr.bf16.mxu0 0
      %1406 = vmatpush1.bf16.msra.mxu0 0
      %1407 = vmatprep.subr.bf16.mxu0 0
      %1408 = vmatpush1.bf16.msra.mxu0 0
      %1409 = vmatprep.subr.bf16.mxu0 0
      %1410 = vmatpush1.bf16.msra.mxu0 0
      %1411 = vmatprep.subr.bf16.mxu0 0
      %1412 = vmatpush1.bf16.msra.mxu0 0
      %1413 = vmatprep.subr.bf16.mxu0 0
      %1414 = vmatpush1.bf16.msra.mxu0 0
      %1415 = vmatprep.subr.bf16.mxu0 0
      %1416 = vmatpush1.bf16.msra.mxu0 0
      %1417 = vmatprep.subr.bf16.mxu0 0
      %1418 = vmatpush1.bf16.msra.mxu0 0
      %1419 = vmatprep.subr.bf16.mxu0 0
      %1420 = vmatpush1.bf16.msra.mxu0 0
      %1421 = vmatprep.subr.bf16.mxu0 0
      %1422 = vmatpush1.bf16.msra.mxu0 0
      %1423 = vmatprep.subr.bf16.mxu0 0
      %1424 = vmatpush1.bf16.msra.mxu0 0
      %1425 = vmatprep.subr.bf16.mxu0 0
      %1426 = vmatpush1.bf16.msra.mxu0 0
      %1427 = vmatprep.mubr.bf16.mxu0 0
      %1428 = vmatmul.mubr.bf16.gmra.mrb[0].mxu0 %v1390
      %v1429 = vpop.f32.mrb[0].mxu0
      %v1430 = vadd.f32 0.0, %v1429
      %v1431 = vpop.f32.mrb[0].mxu0
      %v1432 = vpop.f32.mrb[0].mxu0
      %v1433 = vadd.f32 0.0, %v1432
      %v1434 = vpop.f32.mrb[0].mxu0
      %1435 = vmatprep.mubr.bf16.mxu0 0
      %1436 = vmatmul.mubr.bf16.gmra.mrb[0].mxu0 %v1393
      %v1437 = vpop.f32.mrb[0].mxu0
      %v1438 = vadd.f32 0.0, %v1437
      %v1439 = vpop.f32.mrb[0].mxu0
      %v1440 = vpop.f32.mrb[0].mxu0
      %v1441 = vadd.f32 0.0, %v1440
      %v1442 = vpop.f32.mrb[0].mxu0
      %1443 = vdwg.mxu0
      %v1444 = vpack.c.bf16 %v1433, %v1430
      %v1445 = vpack.c.bf16 %v1441, %v1438
      %v1448 = vunpack.c.l.b16 %v547
      %v1449 = vunpack.c.l.b16 %v548
      %v1450 = vpack.c.b16 %v1449, %v1448
      %v1453 = vsel %vm796, %v1444, 0
      %v1456 = vsel %vm796, %v1445, 0
      %1458 = vmatprep.subr.bf16.mxu0 0
      %1459 = vmatpush1.bf16.msra.mxu0 %v1450
      %1460 = vmatprep.subr.bf16.mxu0 0
      %1461 = vmatpush1.bf16.msra.mxu0 0
      %1462 = vmatprep.subr.bf16.mxu0 0
      %1463 = vmatpush1.bf16.msra.mxu0 0
      %1464 = vmatprep.subr.bf16.mxu0 0
      %1465 = vmatpush1.bf16.msra.mxu0 0
      %1466 = vmatprep.subr.bf16.mxu0 0
      %1467 = vmatpush1.bf16.msra.mxu0 0
      %1468 = vmatprep.subr.bf16.mxu0 0
      %1469 = vmatpush1.bf16.msra.mxu0 0
      %1470 = vmatprep.subr.bf16.mxu0 0
      %1471 = vmatpush1.bf16.msra.mxu0 0
      %1472 = vmatprep.subr.bf16.mxu0 0
      %1473 = vmatpush1.bf16.msra.mxu0 0
      %1474 = vmatprep.subr.bf16.mxu0 0
      %1475 = vmatpush1.bf16.msra.mxu0 0
      %1476 = vmatprep.subr.bf16.mxu0 0
      %1477 = vmatpush1.bf16.msra.mxu0 0
      %1478 = vmatprep.subr.bf16.mxu0 0
      %1479 = vmatpush1.bf16.msra.mxu0 0
      %1480 = vmatprep.subr.bf16.mxu0 0
      %1481 = vmatpush1.bf16.msra.mxu0 0
      %1482 = vmatprep.subr.bf16.mxu0 0
      %1483 = vmatpush1.bf16.msra.mxu0 0
      %1484 = vmatprep.subr.bf16.mxu0 0
      %1485 = vmatpush1.bf16.msra.mxu0 0
      %1486 = vmatprep.subr.bf16.mxu0 0
      %1487 = vmatpush1.bf16.msra.mxu0 0
      %1488 = vmatprep.subr.bf16.mxu0 0
      %1489 = vmatpush1.bf16.msra.mxu0 0
      %1490 = vmatprep.mubr.bf16.mxu0 0
      %1491 = vmatmul.mubr.bf16.gmra.mrb[0].mxu0 %v1453
      %v1492 = vpop.f32.mrb[0].mxu0
      %v1493 = vadd.f32 0.0, %v1492
      %v1494 = vpop.f32.mrb[0].mxu0
      %v1495 = vpop.f32.mrb[0].mxu0
      %v1496 = vadd.f32 0.0, %v1495
      %v1497 = vpop.f32.mrb[0].mxu0
      %1498 = vmatprep.mubr.bf16.mxu0 0
      %1499 = vmatmul.mubr.bf16.gmra.mrb[0].mxu0 %v1456
      %v1500 = vpop.f32.mrb[0].mxu0
      %v1501 = vadd.f32 0.0, %v1500
      %v1502 = vpop.f32.mrb[0].mxu0
      %v1503 = vpop.f32.mrb[0].mxu0
      %v1504 = vadd.f32 0.0, %v1503
      %v1505 = vpop.f32.mrb[0].mxu0
      %1506 = vdwg.mxu0
      %v1507 = vadd.f32 %v1255, %v1493
      %v1508 = vadd.f32 %v1258, %v1496
      %v1509 = vadd.f32 %v1263, %v1501
      %v1510 = vadd.f32 %v1266, %v1504
      %v1511 = vpack.c.bf16 %v784, %v783
      %1512 = vrot.lane.b32.xlu0 %v793, 80
      %v1513 = vpop.permute.xlu0 %1512
      %1514 = vrot.lane.b32.xlu0 %v794, 80
      %v1515 = vpop.permute.xlu0 %1514
      %v1517 = vsel %vm796, %v1513, 0
      %v1520 = vsel %vm796, %v1515, 0
      %1522 = vmatprep.subr.bf16.mxu0 0
      %1523 = vmatpush1.bf16.msra.mxu0 %v1511
      %1524 = vmatprep.subr.bf16.mxu0 0
      %1525 = vmatpush1.bf16.msra.mxu0 0
      %1526 = vmatprep.subr.bf16.mxu0 0
      %1527 = vmatpush1.bf16.msra.mxu0 0
      %1528 = vmatprep.subr.bf16.mxu0 0
      %1529 = vmatpush1.bf16.msra.mxu0 0
      %1530 = vmatprep.subr.bf16.mxu0 0
      %1531 = vmatpush1.bf16.msra.mxu0 0
      %1532 = vmatprep.subr.bf16.mxu0 0
      %1533 = vmatpush1.bf16.msra.mxu0 0
      %1534 = vmatprep.subr.bf16.mxu0 0
      %1535 = vmatpush1.bf16.msra.mxu0 0
      %1536 = vmatprep.subr.bf16.mxu0 0
      %1537 = vmatpush1.bf16.msra.mxu0 0
      %1538 = vmatprep.subr.bf16.mxu0 0
      %1539 = vmatpush1.bf16.msra.mxu0 0
      %1540 = vmatprep.subr.bf16.mxu0 0
      %1541 = vmatpush1.bf16.msra.mxu0 0
      %1542 = vmatprep.subr.bf16.mxu0 0
      %1543 = vmatpush1.bf16.msra.mxu0 0
      %1544 = vmatprep.subr.bf16.mxu0 0
      %1545 = vmatpush1.bf16.msra.mxu0 0
      %1546 = vmatprep.subr.bf16.mxu0 0
      %1547 = vmatpush1.bf16.msra.mxu0 0
      %1548 = vmatprep.subr.bf16.mxu0 0
      %1549 = vmatpush1.bf16.msra.mxu0 0
      %1550 = vmatprep.subr.bf16.mxu0 0
      %1551 = vmatpush1.bf16.msra.mxu0 0
      %1552 = vmatprep.subr.bf16.mxu0 0
      %1553 = vmatpush1.bf16.msra.mxu0 0
      %1554 = vmatprep.mubr.bf16.mxu0 0
      %1555 = vmatmul.mubr.bf16.gmra.mrb[0].mxu0 %v1517
      %v1556 = vpop.f32.mrb[0].mxu0
      %v1557 = vadd.f32 0.0, %v1556
      %v1558 = vpop.f32.mrb[0].mxu0
      %v1559 = vpop.f32.mrb[0].mxu0
      %v1560 = vadd.f32 0.0, %v1559
      %v1561 = vpop.f32.mrb[0].mxu0
      %1562 = vmatprep.mubr.bf16.mxu0 0
      %1563 = vmatmul.mubr.bf16.gmra.mrb[0].mxu0 %v1520
      %v1564 = vpop.f32.mrb[0].mxu0
      %v1565 = vadd.f32 0.0, %v1564
      %v1566 = vpop.f32.mrb[0].mxu0
      %v1567 = vpop.f32.mrb[0].mxu0
      %v1568 = vadd.f32 0.0, %v1567
      %v1569 = vpop.f32.mrb[0].mxu0
      %1570 = vdwg.mxu0
      %v1571 = vmul.f32 %v1557, 0.25
      %v1572 = vmul.f32 %v1560, 0.25
      %v1573 = vmul.f32 %v1565, 0.25
      %v1574 = vmul.f32 %v1568, 0.25
      %v1575 = vadd.f32 %v1571, %v540
      %v1576 = vadd.f32 %v1572, %v540
      %v1577 = vadd.f32 %v1573, %v540
      %v1578 = vadd.f32 %v1574, %v540
      %v1579 = vsel %vm860, %v1575, -inf
      %1580 = vmax.xlane.f32.xlu0 %v1579
      %v1581 = vpop.xlane.xlu0 %1580
      %v1582 = vsel %vm860, %v1576, -inf
      %1583 = vmax.xlane.f32.xlu0 %v1582
      %v1584 = vpop.xlane.xlu0 %1583
      %v1585 = vsel %vm860, %v1577, -inf
      %1586 = vmax.xlane.f32.xlu0 %v1585
      %v1587 = vpop.xlane.xlu0 %1586
      %v1588 = vsel %vm860, %v1578, -inf
      %1589 = vmax.xlane.f32.xlu0 %v1588
      %v1590 = vpop.xlane.xlu0 %1589
      %v1591 = vsub.f32 %v1575, %v1581
      %v1592 = vsub.f32 %v1576, %v1584
      %v1593 = vsub.f32 %v1577, %v1587
      %v1594 = vsub.f32 %v1578, %v1590
      %v1595 = vmul.f32 %v1591, 1.442695
      %v1596 = vpow.pop %v1595
      %v1597 = vmul.f32 %v1592, 1.442695
      %v1598 = vpow.pop %v1597
      %v1599 = vmul.f32 %v1593, 1.442695
      %v1600 = vpow.pop %v1599
      %v1601 = vmul.f32 %v1594, 1.442695
      %v1602 = vpow.pop %v1601
      %v1603 = vsel %vm860, %v1596, 0.0
      %1604 = vadd.xlane.f32.xlu0 %v1603
      %v1605 = vpop.xlane.xlu0 %1604
      %v1606 = vsel %vm860, %v1598, 0.0
      %1607 = vadd.xlane.f32.xlu0 %v1606
      %v1608 = vpop.xlane.xlu0 %1607
      %v1609 = vsel %vm860, %v1600, 0.0
      %1610 = vadd.xlane.f32.xlu0 %v1609
      %v1611 = vpop.xlane.xlu0 %1610
      %v1612 = vsel %vm860, %v1602, 0.0
      %1613 = vadd.xlane.f32.xlu0 %v1612
      %v1614 = vpop.xlane.xlu0 %1613
      %v1615 = vrcp.pop %v1605
      %v1616 = vrcp.pop %v1608
      %v1617 = vrcp.pop %v1611
      %v1618 = vrcp.pop %v1614
      %v1619 = vmul.f32 %v1596, %v1615
      %v1620 = vmul.f32 %v1598, %v1616
      %v1621 = vmul.f32 %v1600, %v1617
      %v1622 = vmul.f32 %v1602, %v1618
      %v1623 = vpack.c.bf16 %v1620, %v1619
      %v1624 = vpack.c.bf16 %v1622, %v1621
      %1625 = vrot.lane.b32.xlu0 %v907, 80
      %v1626 = vpop.permute.xlu0 %1625
      %1627 = vrot.lane.b32.xlu0 %v908, 80
      %v1628 = vpop.permute.xlu0 %1627
      %v1632 = vsel %vm860, %v1623, 0
      %v1635 = vsel %vm860, %v1624, 0
      %1637 = vmatprep.subr.bf16.mxu0 0
      %1638 = vmatpush1.bf16.msra.mxu0 %v1626
      %1639 = vmatprep.subr.bf16.mxu0 0
      %1640 = vmatpush1.bf16.msra.mxu0 %v1628
      %1641 = vmatprep.subr.bf16.mxu0 0
      %1642 = vmatpush1.bf16.msra.mxu0 0
      %1643 = vmatprep.subr.bf16.mxu0 0
      %1644 = vmatpush1.bf16.msra.mxu0 0
      %1645 = vmatprep.subr.bf16.mxu0 0
      %1646 = vmatpush1.bf16.msra.mxu0 0
      %1647 = vmatprep.subr.bf16.mxu0 0
      %1648 = vmatpush1.bf16.msra.mxu0 0
      %1649 = vmatprep.subr.bf16.mxu0 0
      %1650 = vmatpush1.bf16.msra.mxu0 0
      %1651 = vmatprep.subr.bf16.mxu0 0
      %1652 = vmatpush1.bf16.msra.mxu0 0
      %1653 = vmatprep.subr.bf16.mxu0 0
      %1654 = vmatpush1.bf16.msra.mxu0 0
      %1655 = vmatprep.subr.bf16.mxu0 0
      %1656 = vmatpush1.bf16.msra.mxu0 0
      %1657 = vmatprep.subr.bf16.mxu0 0
      %1658 = vmatpush1.bf16.msra.mxu0 0
      %1659 = vmatprep.subr.bf16.mxu0 0
      %1660 = vmatpush1.bf16.msra.mxu0 0
      %1661 = vmatprep.subr.bf16.mxu0 0
      %1662 = vmatpush1.bf16.msra.mxu0 0
      %1663 = vmatprep.subr.bf16.mxu0 0
      %1664 = vmatpush1.bf16.msra.mxu0 0
      %1665 = vmatprep.subr.bf16.mxu0 0
      %1666 = vmatpush1.bf16.msra.mxu0 0
      %1667 = vmatprep.subr.bf16.mxu0 0
      %1668 = vmatpush1.bf16.msra.mxu0 0
      %1669 = vmatprep.mubr.bf16.mxu0 0
      %1670 = vmatmul.mubr.bf16.gmra.mrb[0].mxu0 %v1632
      %v1671 = vpop.f32.mrb[0].mxu0
      %v1672 = vadd.f32 0.0, %v1671
      %v1673 = vpop.f32.mrb[0].mxu0
      %v1674 = vpop.f32.mrb[0].mxu0
      %v1675 = vadd.f32 0.0, %v1674
      %v1676 = vpop.f32.mrb[0].mxu0
      %1677 = vmatprep.mubr.bf16.mxu0 0
      %1678 = vmatmul.mubr.bf16.gmra.mrb[0].mxu0 %v1635
      %v1679 = vpop.f32.mrb[0].mxu0
      %v1680 = vadd.f32 0.0, %v1679
      %v1681 = vpop.f32.mrb[0].mxu0
      %v1682 = vpop.f32.mrb[0].mxu0
      %v1683 = vadd.f32 0.0, %v1682
      %v1684 = vpop.f32.mrb[0].mxu0
      %1685 = vdwg.mxu0
      %v1686 = vpack.c.bf16 %v1675, %v1672
      %v1687 = vpack.c.bf16 %v1683, %v1680
      %v1690 = vunpack.c.l.b16 %v549
      %v1691 = vunpack.c.l.b16 %v550
      %v1692 = vpack.c.b16 %v1691, %v1690
      %v1695 = vsel %vm796, %v1686, 0
      %v1698 = vsel %vm796, %v1687, 0
      %1700 = vmatprep.subr.bf16.mxu0 0
      %1701 = vmatpush1.bf16.msra.mxu0 %v1692
      %1702 = vmatprep.subr.bf16.mxu0 0
      %1703 = vmatpush1.bf16.msra.mxu0 0
      %1704 = vmatprep.subr.bf16.mxu0 0
      %1705 = vmatpush1.bf16.msra.mxu0 0
      %1706 = vmatprep.subr.bf16.mxu0 0
      %1707 = vmatpush1.bf16.msra.mxu0 0
      %1708 = vmatprep.subr.bf16.mxu0 0
      %1709 = vmatpush1.bf16.msra.mxu0 0
      %1710 = vmatprep.subr.bf16.mxu0 0
      %1711 = vmatpush1.bf16.msra.mxu0 0
      %1712 = vmatprep.subr.bf16.mxu0 0
      %1713 = vmatpush1.bf16.msra.mxu0 0
      %1714 = vmatprep.subr.bf16.mxu0 0
      %1715 = vmatpush1.bf16.msra.mxu0 0
      %1716 = vmatprep.subr.bf16.mxu0 0
      %1717 = vmatpush1.bf16.msra.mxu0 0
      %1718 = vmatprep.subr.bf16.mxu0 0
      %1719 = vmatpush1.bf16.msra.mxu0 0
      %1720 = vmatprep.subr.bf16.mxu0 0
      %1721 = vmatpush1.bf16.msra.mxu0 0
      %1722 = vmatprep.subr.bf16.mxu0 0
      %1723 = vmatpush1.bf16.msra.mxu0 0
      %1724 = vmatprep.subr.bf16.mxu0 0
      %1725 = vmatpush1.bf16.msra.mxu0 0
      %1726 = vmatprep.subr.bf16.mxu0 0
      %1727 = vmatpush1.bf16.msra.mxu0 0
      %1728 = vmatprep.subr.bf16.mxu0 0
      %1729 = vmatpush1.bf16.msra.mxu0 0
      %1730 = vmatprep.subr.bf16.mxu0 0
      %1731 = vmatpush1.bf16.msra.mxu0 0
      %1732 = vmatprep.mubr.bf16.mxu0 0
      %1733 = vmatmul.mubr.bf16.gmra.mrb[0].mxu0 %v1695
      %v1734 = vpop.f32.mrb[0].mxu0
      %v1735 = vadd.f32 0.0, %v1734
      %v1736 = vpop.f32.mrb[0].mxu0
      %v1737 = vpop.f32.mrb[0].mxu0
      %v1738 = vadd.f32 0.0, %v1737
      %v1739 = vpop.f32.mrb[0].mxu0
      %1740 = vmatprep.mubr.bf16.mxu0 0
      %1741 = vmatmul.mubr.bf16.gmra.mrb[0].mxu0 %v1698
      %v1742 = vpop.f32.mrb[0].mxu0
      %v1743 = vadd.f32 0.0, %v1742
      %v1744 = vpop.f32.mrb[0].mxu0
      %v1745 = vpop.f32.mrb[0].mxu0
      %v1746 = vadd.f32 0.0, %v1745
      %v1747 = vpop.f32.mrb[0].mxu0
      %1748 = vdwg.mxu0
      %v1749 = vadd.f32 %v1507, %v1735
      %v1750 = vadd.f32 %v1508, %v1738
      %v1751 = vadd.f32 %v1509, %v1743
      %v1752 = vadd.f32 %v1510, %v1746
      %v1753 = vadd.f32 %v523, %v1749
      %v1754 = vadd.f32 %v526, %v1750
      %v1755 = vadd.f32 %v531, %v1751
      %v1756 = vadd.f32 %v534, %v1752
      %v1757 = vlaneseq
      %v1758 = vshrl.u32 %v1757, 7
      %v1759 = vsub.s32 3, %v1758
      %v1760 = vrot.slane %v541, %v1759
      %v1761 = vadd.f32 %v1753, %v1760
      %v1762 = vadd.f32 %v1754, %v1760
      %v1763 = vadd.f32 %v1755, %v1760
      %v1764 = vadd.f32 %v1756, %v1760
      %v1765 = vsel %vm481, %v1761, 0.0
      %1766 = vadd.xlane.f32.xlu0 %v1765
      %v1767 = vpop.xlane.xlu0 %1766
      %v1768 = vsel %vm481, %v1762, 0.0
      %1769 = vadd.xlane.f32.xlu0 %v1768
      %v1770 = vpop.xlane.xlu0 %1769
      %v1771 = vsel %vm481, %v1763, 0.0
      %1772 = vadd.xlane.f32.xlu0 %v1771
      %v1773 = vpop.xlane.xlu0 %1772
      %v1774 = vsel %vm481, %v1764, 0.0
      %1775 = vadd.xlane.f32.xlu0 %v1774
      %v1776 = vpop.xlane.xlu0 %1775
      %v1777 = vmul.f32 %v1767, %v563
      %v1778 = vmul.f32 %v1770, %v563
      %v1779 = vmul.f32 %v1773, %v563
      %v1780 = vmul.f32 %v1776, %v563
      %v1781 = vmul.f32 %v1761, %v1761
      %v1782 = vmul.f32 %v1762, %v1762
      %v1783 = vmul.f32 %v1763, %v1763
      %v1784 = vmul.f32 %v1764, %v1764
      %v1785 = vsel %vm481, %v1781, 0.0
      %1786 = vadd.xlane.f32.xlu0 %v1785
      %v1787 = vpop.xlane.xlu0 %1786
      %v1788 = vsel %vm481, %v1782, 0.0
      %1789 = vadd.xlane.f32.xlu0 %v1788
      %v1790 = vpop.xlane.xlu0 %1789
      %v1791 = vsel %vm481, %v1783, 0.0
      %1792 = vadd.xlane.f32.xlu0 %v1791
      %v1793 = vpop.xlane.xlu0 %1792
      %v1794 = vsel %vm481, %v1784, 0.0
      %1795 = vadd.xlane.f32.xlu0 %v1794
      %v1796 = vpop.xlane.xlu0 %1795
      %v1797 = vmul.f32 %v1787, %v563
      %v1798 = vmul.f32 %v1790, %v563
      %v1799 = vmul.f32 %v1793, %v563
      %v1800 = vmul.f32 %v1796, %v563
      %v1801 = vsub.f32 %v1761, %v1777
      %v1802 = vsub.f32 %v1762, %v1778
      %v1803 = vsub.f32 %v1763, %v1779
      %v1804 = vsub.f32 %v1764, %v1780
      %v1805 = vmul.f32 %v1777, %v1777
      %v1806 = vmul.f32 %v1778, %v1778
      %v1807 = vmul.f32 %v1779, %v1779
      %v1808 = vmul.f32 %v1780, %v1780
      %v1809 = vsub.f32 %v1797, %v1805
      %v1810 = vsub.f32 %v1798, %v1806
      %v1811 = vsub.f32 %v1799, %v1807
      %v1812 = vsub.f32 %v1800, %v1808
      %v1813 = vadd.f32 %v1809, 1e-06
      %v1814 = vadd.f32 %v1810, 1e-06
      %v1815 = vadd.f32 %v1811, 1e-06
      %v1816 = vadd.f32 %v1812, 1e-06
      %v1817 = vrsqrt.pop %v1813
      %v1818 = vrsqrt.pop %v1814
      %v1819 = vrsqrt.pop %v1815
      %v1820 = vrsqrt.pop %v1816
      %v1821 = vmul.f32 %v1801, %v1817
      %v1822 = vmul.f32 %v1802, %v1818
      %v1823 = vmul.f32 %v1803, %v1819
      %v1824 = vmul.f32 %v1804, %v1820
      %v1825 = vlaneseq
      %v1826 = vshrl.u32 %v1825, 7
      %v1827 = vsub.s32 4, %v1826
      %v1828 = vrot.slane %v541, %v1827
      %v1829 = vmul.f32 %v1821, %v1828
      %v1830 = vmul.f32 %v1822, %v1828
      %v1831 = vmul.f32 %v1823, %v1828
      %v1832 = vmul.f32 %v1824, %v1828
      %v1833 = vlaneseq
      %v1834 = vshrl.u32 %v1833, 7
      %v1835 = vsub.s32 5, %v1834
      %v1836 = vrot.slane %v541, %v1835
      %v1837 = vadd.f32 %v1829, %v1836
      %v1838 = vadd.f32 %v1830, %v1836
      %v1839 = vadd.f32 %v1831, %v1836
      %v1840 = vadd.f32 %v1832, %v1836
      %v1841 = vld [vmem:[%s6] sm:$0xff]
      %v1842 = vld [vmem:[%s6 + $0x8] sm:$0xff]
      %v1843 = vld [vmem:[%s6 + $0x10] sm:$0xff]
      %v1844 = vld [vmem:[%s6 + $0x18] sm:$0xff]
      %v1845 = vld [vmem:[%s6 + $0x20] sm:$0xff]
      %v1846 = vld [vmem:[%s6 + $0x28] sm:$0xff]
      %v1847 = vld [vmem:[%s6 + $0x30] sm:$0xff]
      %v1848 = vld [vmem:[%s6 + $0x38] sm:$0xff]
      %v1849 = vpack.c.bf16 %v1838, %v1837
      %v1850 = vpack.c.bf16 %v1840, %v1839
      %v1851 = vlaneseq
      %v1852 = vshrl.u32 %v1851, 7
      %v1853 = vsub.s32 6, %v1852
      %v1854 = vrot.slane %v541, %v1853
      %v1855 = vlaneseq
      %v1856 = vshrl.u32 %v1855, 7
      %v1857 = vsub.s32 6, %v1856
      %v1858 = vrot.slane %v542, %v1857
      %v1867 = vunpack.c.l.b16 %v1841
      %v1868 = vunpack.c.h.b16 %v1841
      %v1869 = vunpack.c.l.b16 %v1842
      %v1870 = vunpack.c.h.b16 %v1842
      %v1871 = vunpack.c.l.b16 %v1843
      %v1872 = vunpack.c.h.b16 %v1843
      %v1873 = vunpack.c.l.b16 %v1844
      %v1874 = vunpack.c.h.b16 %v1844
      %v1875 = vunpack.c.l.b16 %v1845
      %v1876 = vunpack.c.h.b16 %v1845
      %v1877 = vunpack.c.l.b16 %v1846
      %v1878 = vunpack.c.h.b16 %v1846
      %v1879 = vunpack.c.l.b16 %v1847
      %v1880 = vunpack.c.h.b16 %v1847
      %v1881 = vunpack.c.l.b16 %v1848
      %v1882 = vunpack.c.h.b16 %v1848
      %v1883 = vpack.c.b16 %v1869, %v1867
      %v1884 = vpack.c.b16 %v1870, %v1868
      %v1885 = vpack.c.b16 %v1873, %v1871
      %v1886 = vpack.c.b16 %v1874, %v1872
      %v1887 = vpack.c.b16 %v1877, %v1875
      %v1888 = vpack.c.b16 %v1878, %v1876
      %v1889 = vpack.c.b16 %v1881, %v1879
      %v1890 = vpack.c.b16 %v1882, %v1880
      %v1900 = vsel %vm481, %v1849, 0
      %v1903 = vsel %vm481, %v1850, 0
      %1905 = vmatprep.subr.bf16.mxu0 %v1884
      %1906 = vmatpush1.bf16.msra.mxu0 %v1883
      %1907 = vmatprep.subr.bf16.mxu0 %v1886
      %1908 = vmatpush1.bf16.msra.mxu0 %v1885
      %1909 = vmatprep.subr.bf16.mxu0 %v1888
      %1910 = vmatpush1.bf16.msra.mxu0 %v1887
      %1911 = vmatprep.subr.bf16.mxu0 %v1890
      %1912 = vmatpush1.bf16.msra.mxu0 %v1889
      %1913 = vmatprep.subr.bf16.mxu0 0
      %1914 = vmatpush1.bf16.msra.mxu0 0
      %1915 = vmatprep.subr.bf16.mxu0 0
      %1916 = vmatpush1.bf16.msra.mxu0 0
      %1917 = vmatprep.subr.bf16.mxu0 0
      %1918 = vmatpush1.bf16.msra.mxu0 0
      %1919 = vmatprep.subr.bf16.mxu0 0
      %1920 = vmatpush1.bf16.msra.mxu0 0
      %1921 = vmatprep.subr.bf16.mxu0 0
      %1922 = vmatpush1.bf16.msra.mxu0 0
      %1923 = vmatprep.subr.bf16.mxu0 0
      %1924 = vmatpush1.bf16.msra.mxu0 0
      %1925 = vmatprep.subr.bf16.mxu0 0
      %1926 = vmatpush1.bf16.msra.mxu0 0
      %1927 = vmatprep.subr.bf16.mxu0 0
      %1928 = vmatpush1.bf16.msra.mxu0 0
      %1929 = vmatprep.subr.bf16.mxu0 0
      %1930 = vmatpush1.bf16.msra.mxu0 0
      %1931 = vmatprep.subr.bf16.mxu0 0
      %1932 = vmatpush1.bf16.msra.mxu0 0
      %1933 = vmatprep.subr.bf16.mxu0 0
      %1934 = vmatpush1.bf16.msra.mxu0 0
      %1935 = vmatprep.subr.bf16.mxu0 0
      %1936 = vmatpush1.bf16.msra.mxu0 0
      %1937 = vmatprep.mubr.bf16.mxu0 0
      %1938 = vmatmul.mubr.bf16.gmra.mrb[0].mxu0 %v1900
      %v1939 = vpop.f32.mrb[0].mxu0
      %v1940 = vadd.f32 %v1854, %v1939
      %v1941 = vpop.f32.mrb[0].mxu0
      %v1942 = vadd.f32 %v1858, %v1941
      %v1943 = vpop.f32.mrb[0].mxu0
      %v1944 = vadd.f32 %v1854, %v1943
      %v1945 = vpop.f32.mrb[0].mxu0
      %v1946 = vadd.f32 %v1858, %v1945
      %1947 = vmatprep.mubr.bf16.mxu0 0
      %1948 = vmatmul.mubr.bf16.gmra.mrb[0].mxu0 %v1903
      %v1949 = vpop.f32.mrb[0].mxu0
      %v1950 = vadd.f32 %v1854, %v1949
      %v1951 = vpop.f32.mrb[0].mxu0
      %v1952 = vadd.f32 %v1858, %v1951
      %v1953 = vpop.f32.mrb[0].mxu0
      %v1954 = vadd.f32 %v1854, %v1953
      %v1955 = vpop.f32.mrb[0].mxu0
      %v1956 = vadd.f32 %v1858, %v1955
      %1957 = vdwg.mxu0
      %v1958 = vmul.f32 %v1940, %v1940
      %v1959 = vmul.f32 %v1942, %v1942
      %v1960 = vmul.f32 %v1944, %v1944
      %v1961 = vmul.f32 %v1946, %v1946
      %v1962 = vmul.f32 %v1950, %v1950
      %v1963 = vmul.f32 %v1952, %v1952
      %v1964 = vmul.f32 %v1954, %v1954
      %v1965 = vmul.f32 %v1956, %v1956
      %v1966 = vmul.f32 %v1940, %v1958
      %v1967 = vmul.f32 %v1942, %v1959
      %v1968 = vmul.f32 %v1944, %v1960
      %v1969 = vmul.f32 %v1946, %v1961
      %v1970 = vmul.f32 %v1950, %v1962
      %v1971 = vmul.f32 %v1952, %v1963
      %v1972 = vmul.f32 %v1954, %v1964
      %v1973 = vmul.f32 %v1956, %v1965
      %v1974 = vmul.f32 %v1966, 0.044715
      %v1975 = vmul.f32 %v1967, 0.044715
      %v1976 = vmul.f32 %v1968, 0.044715
      %v1977 = vmul.f32 %v1969, 0.044715
      %v1978 = vmul.f32 %v1970, 0.044715
      %v1979 = vmul.f32 %v1971, 0.044715
      %v1980 = vmul.f32 %v1972, 0.044715
      %v1981 = vmul.f32 %v1973, 0.044715
      %v1982 = vadd.f32 %v1940, %v1974
      %v1983 = vadd.f32 %v1942, %v1975
      %v1984 = vadd.f32 %v1944, %v1976
      %v1985 = vadd.f32 %v1946, %v1977
      %v1986 = vadd.f32 %v1950, %v1978
      %v1987 = vadd.f32 %v1952, %v1979
      %v1988 = vadd.f32 %v1954, %v1980
      %v1989 = vadd.f32 %v1956, %v1981
      %v1990 = vmul.f32 %v1982, 0.7978846
      %v1991 = vmul.f32 %v1983, 0.7978846
      %v1992 = vmul.f32 %v1984, 0.7978846
      %v1993 = vmul.f32 %v1985, 0.7978846
      %v1994 = vmul.f32 %v1986, 0.7978846
      %v1995 = vmul.f32 %v1987, 0.7978846
      %v1996 = vmul.f32 %v1988, 0.7978846
      %v1997 = vmul.f32 %v1989, 0.7978846
      %v1998 = vtanh.pop %v1990
      %v1999 = vtanh.pop %v1991
      %v2000 = vtanh.pop %v1992
      %v2001 = vtanh.pop %v1993
      %v2002 = vtanh.pop %v1994
      %v2003 = vtanh.pop %v1995
      %v2004 = vtanh.pop %v1996
      %v2005 = vtanh.pop %v1997
      %v2006 = vadd.f32 %v1998, 1.0
      %v2007 = vadd.f32 %v1999, 1.0
      %v2008 = vadd.f32 %v2000, 1.0
      %v2009 = vadd.f32 %v2001, 1.0
      %v2010 = vadd.f32 %v2002, 1.0
      %v2011 = vadd.f32 %v2003, 1.0
      %v2012 = vadd.f32 %v2004, 1.0
      %v2013 = vadd.f32 %v2005, 1.0
      %v2014 = vmul.f32 %v2006, 0.5
      %v2015 = vmul.f32 %v2007, 0.5
      %v2016 = vmul.f32 %v2008, 0.5
      %v2017 = vmul.f32 %v2009, 0.5
      %v2018 = vmul.f32 %v2010, 0.5
      %v2019 = vmul.f32 %v2011, 0.5
      %v2020 = vmul.f32 %v2012, 0.5
      %v2021 = vmul.f32 %v2013, 0.5
      %v2022 = vmul.f32 %v1940, %v2014
      %v2023 = vmul.f32 %v1942, %v2015
      %v2024 = vmul.f32 %v1944, %v2016
      %v2025 = vmul.f32 %v1946, %v2017
      %v2026 = vmul.f32 %v1950, %v2018
      %v2027 = vmul.f32 %v1952, %v2019
      %v2028 = vmul.f32 %v1954, %v2020
      %v2029 = vmul.f32 %v1956, %v2021
      %v2030 = vld [vmem:[%s7] sm:$0xf]
      %v2031 = vld [vmem:[%s7 + $0x4] sm:$0xf]
      %v2032 = vld [vmem:[%s7 + $0x8] sm:$0xf]
      %v2033 = vld [vmem:[%s7 + $0xc] sm:$0xf]
      %v2034 = vld [vmem:[%s7 + $0x10] sm:$0xf]
      %v2035 = vld [vmem:[%s7 + $0x14] sm:$0xf]
      %v2036 = vld [vmem:[%s7 + $0x18] sm:$0xf]
      %v2037 = vld [vmem:[%s7 + $0x1c] sm:$0xf]
      %v2038 = vld [vmem:[%s7 + $0x20] sm:$0xf]
      %v2039 = vld [vmem:[%s7 + $0x24] sm:$0xf]
      %v2040 = vld [vmem:[%s7 + $0x28] sm:$0xf]
      %v2041 = vld [vmem:[%s7 + $0x2c] sm:$0xf]
      %v2042 = vld [vmem:[%s7 + $0x30] sm:$0xf]
      %v2043 = vld [vmem:[%s7 + $0x34] sm:$0xf]
      %v2044 = vld [vmem:[%s7 + $0x38] sm:$0xf]
      %v2045 = vld [vmem:[%s7 + $0x3c] sm:$0xf]
      %v2046 = vld [vmem:[%s7 + $0x40] sm:$0xf]
      %v2047 = vld [vmem:[%s7 + $0x44] sm:$0xf]
      %v2048 = vld [vmem:[%s7 + $0x48] sm:$0xf]
      %v2049 = vld [vmem:[%s7 + $0x4c] sm:$0xf]
      %v2050 = vld [vmem:[%s7 + $0x50] sm:$0xf]
      %v2051 = vld [vmem:[%s7 + $0x54] sm:$0xf]
      %v2052 = vld [vmem:[%s7 + $0x58] sm:$0xf]
      %v2053 = vld [vmem:[%s7 + $0x5c] sm:$0xf]
      %v2054 = vld [vmem:[%s7 + $0x60] sm:$0xf]
      %v2055 = vld [vmem:[%s7 + $0x64] sm:$0xf]
      %v2056 = vld [vmem:[%s7 + $0x68] sm:$0xf]
      %v2057 = vld [vmem:[%s7 + $0x6c] sm:$0xf]
      %v2058 = vld [vmem:[%s7 + $0x70] sm:$0xf]
      %v2059 = vld [vmem:[%s7 + $0x74] sm:$0xf]
      %v2060 = vld [vmem:[%s7 + $0x78] sm:$0xf]
      %v2061 = vld [vmem:[%s7 + $0x7c] sm:$0xf]
      %v2062 = vpack.c.bf16 %v2024, %v2022
      %v2063 = vpack.c.bf16 %v2025, %v2023
      %v2064 = vpack.c.bf16 %v2028, %v2026
      %v2065 = vpack.c.bf16 %v2029, %v2027
      %v2098 = vunpack.c.l.b16 %v2030
      %v2099 = vunpack.c.l.b16 %v2031
      %v2100 = vunpack.c.l.b16 %v2032
      %v2101 = vunpack.c.l.b16 %v2033
      %v2102 = vunpack.c.l.b16 %v2034
      %v2103 = vunpack.c.l.b16 %v2035
      %v2104 = vunpack.c.l.b16 %v2036
      %v2105 = vunpack.c.l.b16 %v2037
      %v2106 = vunpack.c.l.b16 %v2038
      %v2107 = vunpack.c.l.b16 %v2039
      %v2108 = vunpack.c.l.b16 %v2040
      %v2109 = vunpack.c.l.b16 %v2041
      %v2110 = vunpack.c.l.b16 %v2042
      %v2111 = vunpack.c.l.b16 %v2043
      %v2112 = vunpack.c.l.b16 %v2044
      %v2113 = vunpack.c.l.b16 %v2045
      %v2114 = vunpack.c.l.b16 %v2046
      %v2115 = vunpack.c.l.b16 %v2047
      %v2116 = vunpack.c.l.b16 %v2048
      %v2117 = vunpack.c.l.b16 %v2049
      %v2118 = vunpack.c.l.b16 %v2050
      %v2119 = vunpack.c.l.b16 %v2051
      %v2120 = vunpack.c.l.b16 %v2052
      %v2121 = vunpack.c.l.b16 %v2053
      %v2122 = vunpack.c.l.b16 %v2054
      %v2123 = vunpack.c.l.b16 %v2055
      %v2124 = vunpack.c.l.b16 %v2056
      %v2125 = vunpack.c.l.b16 %v2057
      %v2126 = vunpack.c.l.b16 %v2058
      %v2127 = vunpack.c.l.b16 %v2059
      %v2128 = vunpack.c.l.b16 %v2060
      %v2129 = vunpack.c.l.b16 %v2061
      %v2130 = vpack.c.b16 %v2099, %v2098
      %v2131 = vpack.c.b16 %v2101, %v2100
      %v2132 = vpack.c.b16 %v2103, %v2102
      %v2133 = vpack.c.b16 %v2105, %v2104
      %v2134 = vpack.c.b16 %v2107, %v2106
      %v2135 = vpack.c.b16 %v2109, %v2108
      %v2136 = vpack.c.b16 %v2111, %v2110
      %v2137 = vpack.c.b16 %v2113, %v2112
      %v2138 = vpack.c.b16 %v2115, %v2114
      %v2139 = vpack.c.b16 %v2117, %v2116
      %v2140 = vpack.c.b16 %v2119, %v2118
      %v2141 = vpack.c.b16 %v2121, %v2120
      %v2142 = vpack.c.b16 %v2123, %v2122
      %v2143 = vpack.c.b16 %v2125, %v2124
      %v2144 = vpack.c.b16 %v2127, %v2126
      %v2145 = vpack.c.b16 %v2129, %v2128
      %2162 = vmatprep.subr.bf16.mxu0 0
      %2163 = vmatpush1.bf16.msra.mxu0 %v2130
      %2164 = vmatprep.subr.bf16.mxu0 0
      %2165 = vmatpush1.bf16.msra.mxu0 %v2131
      %2166 = vmatprep.subr.bf16.mxu0 0
      %2167 = vmatpush1.bf16.msra.mxu0 %v2132
      %2168 = vmatprep.subr.bf16.mxu0 0
      %2169 = vmatpush1.bf16.msra.mxu0 %v2133
      %2170 = vmatprep.subr.bf16.mxu0 0
      %2171 = vmatpush1.bf16.msra.mxu0 %v2134
      %2172 = vmatprep.subr.bf16.mxu0 0
      %2173 = vmatpush1.bf16.msra.mxu0 %v2135
      %2174 = vmatprep.subr.bf16.mxu0 0
      %2175 = vmatpush1.bf16.msra.mxu0 %v2136
      %2176 = vmatprep.subr.bf16.mxu0 0
      %2177 = vmatpush1.bf16.msra.mxu0 %v2137
      %2178 = vmatprep.subr.bf16.mxu0 0
      %2179 = vmatpush1.bf16.msra.mxu0 %v2138
      %2180 = vmatprep.subr.bf16.mxu0 0
      %2181 = vmatpush1.bf16.msra.mxu0 %v2139
      %2182 = vmatprep.subr.bf16.mxu0 0
      %2183 = vmatpush1.bf16.msra.mxu0 %v2140
      %2184 = vmatprep.subr.bf16.mxu0 0
      %2185 = vmatpush1.bf16.msra.mxu0 %v2141
      %2186 = vmatprep.subr.bf16.mxu0 0
      %2187 = vmatpush1.bf16.msra.mxu0 %v2142
      %2188 = vmatprep.subr.bf16.mxu0 0
      %2189 = vmatpush1.bf16.msra.mxu0 %v2143
      %2190 = vmatprep.subr.bf16.mxu0 0
      %2191 = vmatpush1.bf16.msra.mxu0 %v2144
      %2192 = vmatprep.subr.bf16.mxu0 0
      %2193 = vmatpush1.bf16.msra.mxu0 %v2145
      %2194 = vmatprep.mubr.bf16.mxu0 %v2063
      %2195 = vmatmul.mubr.bf16.gmra.mrb[0].mxu0 %v2062
      %v2196 = vpop.f32.mrb[0].mxu0
      %v2197 = vadd.f32 0.0, %v2196
      %v2198 = vpop.f32.mrb[0].mxu0
      %v2199 = vpop.f32.mrb[0].mxu0
      %v2200 = vadd.f32 0.0, %v2199
      %v2201 = vpop.f32.mrb[0].mxu0
      %2202 = vmatprep.mubr.bf16.mxu0 %v2065
      %2203 = vmatmul.mubr.bf16.gmra.mrb[0].mxu0 %v2064
      %v2204 = vpop.f32.mrb[0].mxu0
      %v2205 = vadd.f32 0.0, %v2204
      %v2206 = vpop.f32.mrb[0].mxu0
      %v2207 = vpop.f32.mrb[0].mxu0
      %v2208 = vadd.f32 0.0, %v2207
      %v2209 = vpop.f32.mrb[0].mxu0
      %2210 = vdwg.mxu0
      %v2211 = vadd.f32 %v1761, %v2197
      %v2212 = vadd.f32 %v1762, %v2200
      %v2213 = vadd.f32 %v1763, %v2205
      %v2214 = vadd.f32 %v1764, %v2208
      %v2215 = vlaneseq
      %v2216 = vshrl.u32 %v2215, 7
      %v2217 = vsub.s32 7, %v2216
      %v2218 = vrot.slane %v541, %v2217
      %v2219 = vadd.f32 %v2211, %v2218
      %v2220 = vadd.f32 %v2212, %v2218
      %v2221 = vadd.f32 %v2213, %v2218
      %v2222 = vadd.f32 %v2214, %v2218
      %s2223 = scalar_lea.vmem %s3, 16
      %v2224 = vld [vmem:[%s2223] sm:$0xff]
      %v2225 = vld [vmem:[%s2223 + $0x8] sm:$0xff]
      %s2226 = scalar_lea.vmem %s5, 32
      %v2227 = vld [vmem:[%s2226] sm:$0xf]
      %v2228 = vld [vmem:[%s2226 + $0x4] sm:$0xf]
      %v2229 = vld [vmem:[%s2226 + $0x8] sm:$0xf]
      %v2230 = vld [vmem:[%s2226 + $0xc] sm:$0xf]
      %v2231 = vld [vmem:[%s2226 + $0x10] sm:$0xf]
      %v2232 = vld [vmem:[%s2226 + $0x14] sm:$0xf]
      %v2233 = vld [vmem:[%s2226 + $0x18] sm:$0xf]
      %v2234 = vld [vmem:[%s2226 + $0x1c] sm:$0xf]
      %v2235 = vsel %vm481, %v2219, 0.0
      %2236 = vadd.xlane.f32.xlu0 %v2235
      %v2237 = vpop.xlane.xlu0 %2236
      %v2238 = vsel %vm481, %v2220, 0.0
      %2239 = vadd.xlane.f32.xlu0 %v2238
      %v2240 = vpop.xlane.xlu0 %2239
      %v2241 = vsel %vm481, %v2221, 0.0
      %2242 = vadd.xlane.f32.xlu0 %v2241
      %v2243 = vpop.xlane.xlu0 %2242
      %v2244 = vsel %vm481, %v2222, 0.0
      %2245 = vadd.xlane.f32.xlu0 %v2244
      %v2246 = vpop.xlane.xlu0 %2245
      %v2247 = vmul.f32 %v2237, %v563
      %v2248 = vmul.f32 %v2240, %v563
      %v2249 = vmul.f32 %v2243, %v563
      %v2250 = vmul.f32 %v2246, %v563
      %v2251 = vmul.f32 %v2219, %v2219
      %v2252 = vmul.f32 %v2220, %v2220
      %v2253 = vmul.f32 %v2221, %v2221
      %v2254 = vmul.f32 %v2222, %v2222
      %v2255 = vsel %vm481, %v2251, 0.0
      %2256 = vadd.xlane.f32.xlu0 %v2255
      %v2257 = vpop.xlane.xlu0 %2256
      %v2258 = vsel %vm481, %v2252, 0.0
      %2259 = vadd.xlane.f32.xlu0 %v2258
      %v2260 = vpop.xlane.xlu0 %2259
      %v2261 = vsel %vm481, %v2253, 0.0
      %2262 = vadd.xlane.f32.xlu0 %v2261
      %v2263 = vpop.xlane.xlu0 %2262
      %v2264 = vsel %vm481, %v2254, 0.0
      %2265 = vadd.xlane.f32.xlu0 %v2264
      %v2266 = vpop.xlane.xlu0 %2265
      %v2267 = vmul.f32 %v2257, %v563
      %v2268 = vmul.f32 %v2260, %v563
      %v2269 = vmul.f32 %v2263, %v563
      %v2270 = vmul.f32 %v2266, %v563
      %v2271 = vsub.f32 %v2219, %v2247
      %v2272 = vsub.f32 %v2220, %v2248
      %v2273 = vsub.f32 %v2221, %v2249
      %v2274 = vsub.f32 %v2222, %v2250
      %v2275 = vmul.f32 %v2247, %v2247
      %v2276 = vmul.f32 %v2248, %v2248
      %v2277 = vmul.f32 %v2249, %v2249
      %v2278 = vmul.f32 %v2250, %v2250
      %v2279 = vsub.f32 %v2267, %v2275
      %v2280 = vsub.f32 %v2268, %v2276
      %v2281 = vsub.f32 %v2269, %v2277
      %v2282 = vsub.f32 %v2270, %v2278
      %v2283 = vadd.f32 %v2279, 1e-06
      %v2284 = vadd.f32 %v2280, 1e-06
      %v2285 = vadd.f32 %v2281, 1e-06
      %v2286 = vadd.f32 %v2282, 1e-06
      %v2287 = vrsqrt.pop %v2283
      %v2288 = vrsqrt.pop %v2284
      %v2289 = vrsqrt.pop %v2285
      %v2290 = vrsqrt.pop %v2286
      %v2291 = vmul.f32 %v2271, %v2287
      %v2292 = vmul.f32 %v2272, %v2288
      %v2293 = vmul.f32 %v2273, %v2289
      %v2294 = vmul.f32 %v2274, %v2290
      %v2295 = vlaneseq
      %v2296 = vshrl.u32 %v2295, 7
      %v2297 = vsub.s32 0, %v2296
      %v2298 = vrot.slane %v2224, %v2297
      %v2299 = vmul.f32 %v2291, %v2298
      %v2300 = vmul.f32 %v2292, %v2298
      %v2301 = vmul.f32 %v2293, %v2298
      %v2302 = vmul.f32 %v2294, %v2298
      %v2303 = vlaneseq
      %v2304 = vshrl.u32 %v2303, 7
      %v2305 = vsub.s32 1, %v2304
      %v2306 = vrot.slane %v2224, %v2305
      %v2307 = vadd.f32 %v2299, %v2306
      %v2308 = vadd.f32 %v2300, %v2306
      %v2309 = vadd.f32 %v2301, %v2306
      %v2310 = vadd.f32 %v2302, %v2306
      %s2311 = scalar_lea.vmem %s4, 64
      %v2312 = vld [vmem:[%s2311] sm:$0xff]
      %v2313 = vld [vmem:[%s2311 + $0x8] sm:$0xff]
      %v2314 = vld [vmem:[%s2311 + $0x10] sm:$0xff]
      %v2315 = vld [vmem:[%s2311 + $0x18] sm:$0xff]
      %v2316 = vld [vmem:[%s2311 + $0x20] sm:$0xff]
      %v2317 = vld [vmem:[%s2311 + $0x28] sm:$0xff]
      %v2318 = vld [vmem:[%s2311 + $0x30] sm:$0xff]
      %v2319 = vld [vmem:[%s2311 + $0x38] sm:$0xff]
      %v2320 = vpack.c.bf16 %v2308, %v2307
      %v2321 = vpack.c.bf16 %v2310, %v2309
      %v2322 = vlaneseq
      %v2323 = vshrl.u32 %v2322, 7
      %v2324 = vsub.s32 2, %v2323
      %v2325 = vrot.slane %v2224, %v2324
      %v2326 = vlaneseq
      %v2327 = vshrl.u32 %v2326, 7
      %v2328 = vsub.s32 2, %v2327
      %v2329 = vrot.slane %v2225, %v2328
      %v2338 = vunpack.c.l.b16 %v2312
      %v2339 = vunpack.c.h.b16 %v2312
      %v2340 = vunpack.c.l.b16 %v2313
      %v2341 = vunpack.c.h.b16 %v2313
      %v2342 = vunpack.c.l.b16 %v2314
      %v2343 = vunpack.c.h.b16 %v2314
      %v2344 = vunpack.c.l.b16 %v2315
      %v2345 = vunpack.c.h.b16 %v2315
      %v2346 = vunpack.c.l.b16 %v2316
      %v2347 = vunpack.c.h.b16 %v2316
      %v2348 = vunpack.c.l.b16 %v2317
      %v2349 = vunpack.c.h.b16 %v2317
      %v2350 = vunpack.c.l.b16 %v2318
      %v2351 = vunpack.c.h.b16 %v2318
      %v2352 = vunpack.c.l.b16 %v2319
      %v2353 = vunpack.c.h.b16 %v2319
      %v2354 = vpack.c.b16 %v2340, %v2338
      %v2355 = vpack.c.b16 %v2341, %v2339
      %v2356 = vpack.c.b16 %v2344, %v2342
      %v2357 = vpack.c.b16 %v2345, %v2343
      %v2358 = vpack.c.b16 %v2348, %v2346
      %v2359 = vpack.c.b16 %v2349, %v2347
      %v2360 = vpack.c.b16 %v2352, %v2350
      %v2361 = vpack.c.b16 %v2353, %v2351
      %v2371 = vsel %vm481, %v2320, 0
      %v2374 = vsel %vm481, %v2321, 0
      %2376 = vmatprep.subr.bf16.mxu0 %v2355
      %2377 = vmatpush1.bf16.msra.mxu0 %v2354
      %2378 = vmatprep.subr.bf16.mxu0 %v2357
      %2379 = vmatpush1.bf16.msra.mxu0 %v2356
      %2380 = vmatprep.subr.bf16.mxu0 %v2359
      %2381 = vmatpush1.bf16.msra.mxu0 %v2358
      %2382 = vmatprep.subr.bf16.mxu0 %v2361
      %2383 = vmatpush1.bf16.msra.mxu0 %v2360
      %2384 = vmatprep.subr.bf16.mxu0 0
      %2385 = vmatpush1.bf16.msra.mxu0 0
      %2386 = vmatprep.subr.bf16.mxu0 0
      %2387 = vmatpush1.bf16.msra.mxu0 0
      %2388 = vmatprep.subr.bf16.mxu0 0
      %2389 = vmatpush1.bf16.msra.mxu0 0
      %2390 = vmatprep.subr.bf16.mxu0 0
      %2391 = vmatpush1.bf16.msra.mxu0 0
      %2392 = vmatprep.subr.bf16.mxu0 0
      %2393 = vmatpush1.bf16.msra.mxu0 0
      %2394 = vmatprep.subr.bf16.mxu0 0
      %2395 = vmatpush1.bf16.msra.mxu0 0
      %2396 = vmatprep.subr.bf16.mxu0 0
      %2397 = vmatpush1.bf16.msra.mxu0 0
      %2398 = vmatprep.subr.bf16.mxu0 0
      %2399 = vmatpush1.bf16.msra.mxu0 0
      %2400 = vmatprep.subr.bf16.mxu0 0
      %2401 = vmatpush1.bf16.msra.mxu0 0
      %2402 = vmatprep.subr.bf16.mxu0 0
      %2403 = vmatpush1.bf16.msra.mxu0 0
      %2404 = vmatprep.subr.bf16.mxu0 0
      %2405 = vmatpush1.bf16.msra.mxu0 0
      %2406 = vmatprep.subr.bf16.mxu0 0
      %2407 = vmatpush1.bf16.msra.mxu0 0
      %2408 = vmatprep.mubr.bf16.mxu0 0
      %2409 = vmatmul.mubr.bf16.gmra.mrb[0].mxu0 %v2371
      %v2410 = vpop.f32.mrb[0].mxu0
      %v2411 = vadd.f32 %v2325, %v2410
      %v2412 = vpop.f32.mrb[0].mxu0
      %v2413 = vadd.f32 %v2329, %v2412
      %v2414 = vpop.f32.mrb[0].mxu0
      %v2415 = vadd.f32 %v2325, %v2414
      %v2416 = vpop.f32.mrb[0].mxu0
      %v2417 = vadd.f32 %v2329, %v2416
      %2418 = vmatprep.mubr.bf16.mxu0 0
      %2419 = vmatmul.mubr.bf16.gmra.mrb[0].mxu0 %v2374
      %v2420 = vpop.f32.mrb[0].mxu0
      %v2421 = vadd.f32 %v2325, %v2420
      %v2422 = vpop.f32.mrb[0].mxu0
      %v2423 = vadd.f32 %v2329, %v2422
      %v2424 = vpop.f32.mrb[0].mxu0
      %v2425 = vadd.f32 %v2325, %v2424
      %v2426 = vpop.f32.mrb[0].mxu0
      %v2427 = vadd.f32 %v2329, %v2426
      %2428 = vdwg.mxu0
      %2433 = vrot.lane.b32.xlu0 %v2411, 64
      %v2434 = vpop.permute.xlu0 %2433
      %2435 = vrot.lane.b32.xlu0 %v2415, 64
      %v2436 = vpop.permute.xlu0 %2435
      %2437 = vrot.lane.b32.xlu0 %v2421, 64
      %v2438 = vpop.permute.xlu0 %2437
      %2439 = vrot.lane.b32.xlu0 %v2425, 64
      %v2440 = vpop.permute.xlu0 %2439
      %2445 = vxpose.xlu0.b32.start [1/16] %v2434, 128
      %2446 = vxpose.xlu0.b32.cont [2/16] %v2436, 128
      %2447 = vxpose.xlu0.b32.cont [3/16] %v2438, 128
      %2448 = vxpose.xlu0.b32.cont [4/16] %v2440, 128
      %2449 = vxpose.xlu0.b32.cont [5/16] 0.0, 128
      %2450 = vxpose.xlu0.b32.cont [6/16] 0.0, 128
      %2451 = vxpose.xlu0.b32.cont [7/16] 0.0, 128
      %2452 = vxpose.xlu0.b32.cont [8/16] 0.0, 128
      %2453 = vxpose.xlu0.b32.cont [9/16] 0.0, 128
      %2454 = vxpose.xlu0.b32.cont [10/16] 0.0, 128
      %2455 = vxpose.xlu0.b32.cont [11/16] 0.0, 128
      %2456 = vxpose.xlu0.b32.cont [12/16] 0.0, 128
      %2457 = vxpose.xlu0.b32.cont [13/16] 0.0, 128
      %2458 = vxpose.xlu0.b32.cont [14/16] 0.0, 128
      %2459 = vxpose.xlu0.b32.cont [15/16] 0.0, 128
      %2460 = vxpose.xlu0.b32.end [16/16] 0.0, 128
      %v2461 = vpop.trf.xlu0
      %v2462 = vpop.trf.xlu0
      %v2463 = vpop.trf.xlu0
      %v2464 = vpop.trf.xlu0
      %v2465 = vpop.trf.xlu0
      %v2466 = vpop.trf.xlu0
      %v2467 = vpop.trf.xlu0
      %v2468 = vpop.trf.xlu0
      %v2469 = vpop.trf.xlu0
      %v2470 = vpop.trf.xlu0
      %v2471 = vpop.trf.xlu0
      %v2472 = vpop.trf.xlu0
      %v2473 = vpop.trf.xlu0
      %v2474 = vpop.trf.xlu0
      %v2475 = vpop.trf.xlu0
      %v2476 = vpop.trf.xlu0
      %v2477 = vpack.c.bf16 %v2415, %v2411
      %v2478 = vpack.c.bf16 %v2425, %v2421
      %v2479 = vpack.c.bf16 %v2462, %v2461
      %v2481 = vsel %vm796, %v2477, 0
      %v2484 = vsel %vm796, %v2478, 0
      %2486 = vmatprep.subr.bf16.mxu0 0
      %2487 = vmatpush1.bf16.msra.mxu0 %v2479
      %2488 = vmatprep.subr.bf16.mxu0 0
      %2489 = vmatpush1.bf16.msra.mxu0 0
      %2490 = vmatprep.subr.bf16.mxu0 0
      %2491 = vmatpush1.bf16.msra.mxu0 0
      %2492 = vmatprep.subr.bf16.mxu0 0
      %2493 = vmatpush1.bf16.msra.mxu0 0
      %2494 = vmatprep.subr.bf16.mxu0 0
      %2495 = vmatpush1.bf16.msra.mxu0 0
      %2496 = vmatprep.subr.bf16.mxu0 0
      %2497 = vmatpush1.bf16.msra.mxu0 0
      %2498 = vmatprep.subr.bf16.mxu0 0
      %2499 = vmatpush1.bf16.msra.mxu0 0
      %2500 = vmatprep.subr.bf16.mxu0 0
      %2501 = vmatpush1.bf16.msra.mxu0 0
      %2502 = vmatprep.subr.bf16.mxu0 0
      %2503 = vmatpush1.bf16.msra.mxu0 0
      %2504 = vmatprep.subr.bf16.mxu0 0
      %2505 = vmatpush1.bf16.msra.mxu0 0
      %2506 = vmatprep.subr.bf16.mxu0 0
      %2507 = vmatpush1.bf16.msra.mxu0 0
      %2508 = vmatprep.subr.bf16.mxu0 0
      %2509 = vmatpush1.bf16.msra.mxu0 0
      %2510 = vmatprep.subr.bf16.mxu0 0
      %2511 = vmatpush1.bf16.msra.mxu0 0
      %2512 = vmatprep.subr.bf16.mxu0 0
      %2513 = vmatpush1.bf16.msra.mxu0 0
      %2514 = vmatprep.subr.bf16.mxu0 0
      %2515 = vmatpush1.bf16.msra.mxu0 0
      %2516 = vmatprep.subr.bf16.mxu0 0
      %2517 = vmatpush1.bf16.msra.mxu0 0
      %2518 = vmatprep.mubr.bf16.mxu0 0
      %2519 = vmatmul.mubr.bf16.gmra.mrb[0].mxu0 %v2481
      %v2520 = vpop.f32.mrb[0].mxu0
      %v2521 = vadd.f32 0.0, %v2520
      %v2522 = vpop.f32.mrb[0].mxu0
      %v2523 = vpop.f32.mrb[0].mxu0
      %v2524 = vadd.f32 0.0, %v2523
      %v2525 = vpop.f32.mrb[0].mxu0
      %2526 = vmatprep.mubr.bf16.mxu0 0
      %2527 = vmatmul.mubr.bf16.gmra.mrb[0].mxu0 %v2484
      %v2528 = vpop.f32.mrb[0].mxu0
      %v2529 = vadd.f32 0.0, %v2528
      %v2530 = vpop.f32.mrb[0].mxu0
      %v2531 = vpop.f32.mrb[0].mxu0
      %v2532 = vadd.f32 0.0, %v2531
      %v2533 = vpop.f32.mrb[0].mxu0
      %2534 = vdwg.mxu0
      %v2535 = vmul.f32 %v2521, 0.25
      %v2536 = vmul.f32 %v2524, 0.25
      %v2537 = vmul.f32 %v2529, 0.25
      %v2538 = vmul.f32 %v2532, 0.25
      %v2539 = vadd.f32 %v2535, %v540
      %v2540 = vadd.f32 %v2536, %v540
      %v2541 = vadd.f32 %v2537, %v540
      %v2542 = vadd.f32 %v2538, %v540
      %v2543 = vsel %vm860, %v2539, -inf
      %2544 = vmax.xlane.f32.xlu0 %v2543
      %v2545 = vpop.xlane.xlu0 %2544
      %v2546 = vsel %vm860, %v2540, -inf
      %2547 = vmax.xlane.f32.xlu0 %v2546
      %v2548 = vpop.xlane.xlu0 %2547
      %v2549 = vsel %vm860, %v2541, -inf
      %2550 = vmax.xlane.f32.xlu0 %v2549
      %v2551 = vpop.xlane.xlu0 %2550
      %v2552 = vsel %vm860, %v2542, -inf
      %2553 = vmax.xlane.f32.xlu0 %v2552
      %v2554 = vpop.xlane.xlu0 %2553
      %v2555 = vsub.f32 %v2539, %v2545
      %v2556 = vsub.f32 %v2540, %v2548
      %v2557 = vsub.f32 %v2541, %v2551
      %v2558 = vsub.f32 %v2542, %v2554
      %v2559 = vmul.f32 %v2555, 1.442695
      %v2560 = vpow.pop %v2559
      %v2561 = vmul.f32 %v2556, 1.442695
      %v2562 = vpow.pop %v2561
      %v2563 = vmul.f32 %v2557, 1.442695
      %v2564 = vpow.pop %v2563
      %v2565 = vmul.f32 %v2558, 1.442695
      %v2566 = vpow.pop %v2565
      %v2567 = vsel %vm860, %v2560, 0.0
      %2568 = vadd.xlane.f32.xlu0 %v2567
      %v2569 = vpop.xlane.xlu0 %2568
      %v2570 = vsel %vm860, %v2562, 0.0
      %2571 = vadd.xlane.f32.xlu0 %v2570
      %v2572 = vpop.xlane.xlu0 %2571
      %v2573 = vsel %vm860, %v2564, 0.0
      %2574 = vadd.xlane.f32.xlu0 %v2573
      %v2575 = vpop.xlane.xlu0 %2574
      %v2576 = vsel %vm860, %v2566, 0.0
      %2577 = vadd.xlane.f32.xlu0 %v2576
      %v2578 = vpop.xlane.xlu0 %2577
      %v2579 = vrcp.pop %v2569
      %v2580 = vrcp.pop %v2572
      %v2581 = vrcp.pop %v2575
      %v2582 = vrcp.pop %v2578
      %v2583 = vmul.f32 %v2560, %v2579
      %v2584 = vmul.f32 %v2562, %v2580
      %v2585 = vmul.f32 %v2564, %v2581
      %v2586 = vmul.f32 %v2566, %v2582
      %v2587 = vpack.c.bf16 %v2584, %v2583
      %v2588 = vpack.c.bf16 %v2586, %v2585
      %v2589 = vpack.c.bf16 %v2417, %v2413
      %v2590 = vpack.c.bf16 %v2427, %v2423
      %v2592 = vsel %vm860, %v2587, 0
      %v2595 = vsel %vm860, %v2588, 0
      %2597 = vmatprep.subr.bf16.mxu0 0
      %2598 = vmatpush1.bf16.msra.mxu0 %v2589
      %2599 = vmatprep.subr.bf16.mxu0 0
      %2600 = vmatpush1.bf16.msra.mxu0 %v2590
      %2601 = vmatprep.subr.bf16.mxu0 0
      %2602 = vmatpush1.bf16.msra.mxu0 0
      %2603 = vmatprep.subr.bf16.mxu0 0
      %2604 = vmatpush1.bf16.msra.mxu0 0
      %2605 = vmatprep.subr.bf16.mxu0 0
      %2606 = vmatpush1.bf16.msra.mxu0 0
      %2607 = vmatprep.subr.bf16.mxu0 0
      %2608 = vmatpush1.bf16.msra.mxu0 0
      %2609 = vmatprep.subr.bf16.mxu0 0
      %2610 = vmatpush1.bf16.msra.mxu0 0
      %2611 = vmatprep.subr.bf16.mxu0 0
      %2612 = vmatpush1.bf16.msra.mxu0 0
      %2613 = vmatprep.subr.bf16.mxu0 0
      %2614 = vmatpush1.bf16.msra.mxu0 0
      %2615 = vmatprep.subr.bf16.mxu0 0
      %2616 = vmatpush1.bf16.msra.mxu0 0
      %2617 = vmatprep.subr.bf16.mxu0 0
      %2618 = vmatpush1.bf16.msra.mxu0 0
      %2619 = vmatprep.subr.bf16.mxu0 0
      %2620 = vmatpush1.bf16.msra.mxu0 0
      %2621 = vmatprep.subr.bf16.mxu0 0
      %2622 = vmatpush1.bf16.msra.mxu0 0
      %2623 = vmatprep.subr.bf16.mxu0 0
      %2624 = vmatpush1.bf16.msra.mxu0 0
      %2625 = vmatprep.subr.bf16.mxu0 0
      %2626 = vmatpush1.bf16.msra.mxu0 0
      %2627 = vmatprep.subr.bf16.mxu0 0
      %2628 = vmatpush1.bf16.msra.mxu0 0
      %2629 = vmatprep.mubr.bf16.mxu0 0
      %2630 = vmatmul.mubr.bf16.gmra.mrb[0].mxu0 %v2592
      %v2631 = vpop.f32.mrb[0].mxu0
      %v2632 = vadd.f32 0.0, %v2631
      %v2633 = vpop.f32.mrb[0].mxu0
      %v2634 = vpop.f32.mrb[0].mxu0
      %v2635 = vadd.f32 0.0, %v2634
      %v2636 = vpop.f32.mrb[0].mxu0
      %2637 = vmatprep.mubr.bf16.mxu0 0
      %2638 = vmatmul.mubr.bf16.gmra.mrb[0].mxu0 %v2595
      %v2639 = vpop.f32.mrb[0].mxu0
      %v2640 = vadd.f32 0.0, %v2639
      %v2641 = vpop.f32.mrb[0].mxu0
      %v2642 = vpop.f32.mrb[0].mxu0
      %v2643 = vadd.f32 0.0, %v2642
      %v2644 = vpop.f32.mrb[0].mxu0
      %2645 = vdwg.mxu0
      %v2646 = vpack.c.bf16 %v2635, %v2632
      %v2647 = vpack.c.bf16 %v2643, %v2640
      %v2648 = vpack.c.bf16 %v2464, %v2463
      %2651 = vrot.lane.b32.xlu0 %v2477, 112
      %v2652 = vpop.permute.xlu0 %2651
      %2653 = vrot.lane.b32.xlu0 %v2478, 112
      %v2654 = vpop.permute.xlu0 %2653
      %v2656 = vsel %vm796, %v2652, 0
      %v2659 = vsel %vm796, %v2654, 0
      %2661 = vmatprep.subr.bf16.mxu0 0
      %2662 = vmatpush1.bf16.msra.mxu0 %v2648
      %2663 = vmatprep.subr.bf16.mxu0 0
      %2664 = vmatpush1.bf16.msra.mxu0 0
      %2665 = vmatprep.subr.bf16.mxu0 0
      %2666 = vmatpush1.bf16.msra.mxu0 0
      %2667 = vmatprep.subr.bf16.mxu0 0
      %2668 = vmatpush1.bf16.msra.mxu0 0
      %2669 = vmatprep.subr.bf16.mxu0 0
      %2670 = vmatpush1.bf16.msra.mxu0 0
      %2671 = vmatprep.subr.bf16.mxu0 0
      %2672 = vmatpush1.bf16.msra.mxu0 0
      %2673 = vmatprep.subr.bf16.mxu0 0
      %2674 = vmatpush1.bf16.msra.mxu0 0
      %2675 = vmatprep.subr.bf16.mxu0 0
      %2676 = vmatpush1.bf16.msra.mxu0 0
      %2677 = vmatprep.subr.bf16.mxu0 0
      %2678 = vmatpush1.bf16.msra.mxu0 0
      %2679 = vmatprep.subr.bf16.mxu0 0
      %2680 = vmatpush1.bf16.msra.mxu0 0
      %2681 = vmatprep.subr.bf16.mxu0 0
      %2682 = vmatpush1.bf16.msra.mxu0 0
      %2683 = vmatprep.subr.bf16.mxu0 0
      %2684 = vmatpush1.bf16.msra.mxu0 0
      %2685 = vmatprep.subr.bf16.mxu0 0
      %2686 = vmatpush1.bf16.msra.mxu0 0
      %2687 = vmatprep.subr.bf16.mxu0 0
      %2688 = vmatpush1.bf16.msra.mxu0 0
      %2689 = vmatprep.subr.bf16.mxu0 0
      %2690 = vmatpush1.bf16.msra.mxu0 0
      %2691 = vmatprep.subr.bf16.mxu0 0
      %2692 = vmatpush1.bf16.msra.mxu0 0
      %2693 = vmatprep.mubr.bf16.mxu0 0
      %2694 = vmatmul.mubr.bf16.gmra.mrb[0].mxu0 %v2656
      %v2695 = vpop.f32.mrb[0].mxu0
      %v2696 = vadd.f32 0.0, %v2695
      %v2697 = vpop.f32.mrb[0].mxu0
      %v2698 = vpop.f32.mrb[0].mxu0
      %v2699 = vadd.f32 0.0, %v2698
      %v2700 = vpop.f32.mrb[0].mxu0
      %2701 = vmatprep.mubr.bf16.mxu0 0
      %2702 = vmatmul.mubr.bf16.gmra.mrb[0].mxu0 %v2659
      %v2703 = vpop.f32.mrb[0].mxu0
      %v2704 = vadd.f32 0.0, %v2703
      %v2705 = vpop.f32.mrb[0].mxu0
      %v2706 = vpop.f32.mrb[0].mxu0
      %v2707 = vadd.f32 0.0, %v2706
      %v2708 = vpop.f32.mrb[0].mxu0
      %2709 = vdwg.mxu0
      %v2710 = vmul.f32 %v2696, 0.25
      %v2711 = vmul.f32 %v2699, 0.25
      %v2712 = vmul.f32 %v2704, 0.25
      %v2713 = vmul.f32 %v2707, 0.25
      %v2714 = vadd.f32 %v2710, %v540
      %v2715 = vadd.f32 %v2711, %v540
      %v2716 = vadd.f32 %v2712, %v540
      %v2717 = vadd.f32 %v2713, %v540
      %v2718 = vsel %vm860, %v2714, -inf
      %2719 = vmax.xlane.f32.xlu0 %v2718
      %v2720 = vpop.xlane.xlu0 %2719
      %v2721 = vsel %vm860, %v2715, -inf
      %2722 = vmax.xlane.f32.xlu0 %v2721
      %v2723 = vpop.xlane.xlu0 %2722
      %v2724 = vsel %vm860, %v2716, -inf
      %2725 = vmax.xlane.f32.xlu0 %v2724
      %v2726 = vpop.xlane.xlu0 %2725
      %v2727 = vsel %vm860, %v2717, -inf
      %2728 = vmax.xlane.f32.xlu0 %v2727
      %v2729 = vpop.xlane.xlu0 %2728
      %v2730 = vsub.f32 %v2714, %v2720
      %v2731 = vsub.f32 %v2715, %v2723
      %v2732 = vsub.f32 %v2716, %v2726
      %v2733 = vsub.f32 %v2717, %v2729
      %v2734 = vmul.f32 %v2730, 1.442695
      %v2735 = vpow.pop %v2734
      %v2736 = vmul.f32 %v2731, 1.442695
      %v2737 = vpow.pop %v2736
      %v2738 = vmul.f32 %v2732, 1.442695
      %v2739 = vpow.pop %v2738
      %v2740 = vmul.f32 %v2733, 1.442695
      %v2741 = vpow.pop %v2740
      %v2742 = vsel %vm860, %v2735, 0.0
      %2743 = vadd.xlane.f32.xlu0 %v2742
      %v2744 = vpop.xlane.xlu0 %2743
      %v2745 = vsel %vm860, %v2737, 0.0
      %2746 = vadd.xlane.f32.xlu0 %v2745
      %v2747 = vpop.xlane.xlu0 %2746
      %v2748 = vsel %vm860, %v2739, 0.0
      %2749 = vadd.xlane.f32.xlu0 %v2748
      %v2750 = vpop.xlane.xlu0 %2749
      %v2751 = vsel %vm860, %v2741, 0.0
      %2752 = vadd.xlane.f32.xlu0 %v2751
      %v2753 = vpop.xlane.xlu0 %2752
      %v2754 = vrcp.pop %v2744
      %v2755 = vrcp.pop %v2747
      %v2756 = vrcp.pop %v2750
      %v2757 = vrcp.pop %v2753
      %v2758 = vmul.f32 %v2735, %v2754
      %v2759 = vmul.f32 %v2737, %v2755
      %v2760 = vmul.f32 %v2739, %v2756
      %v2761 = vmul.f32 %v2741, %v2757
      %v2762 = vpack.c.bf16 %v2759, %v2758
      %v2763 = vpack.c.bf16 %v2761, %v2760
      %2766 = vrot.lane.b32.xlu0 %v2589, 112
      %v2767 = vpop.permute.xlu0 %2766
      %2768 = vrot.lane.b32.xlu0 %v2590, 112
      %v2769 = vpop.permute.xlu0 %2768
      %v2773 = vsel %vm860, %v2762, 0
      %v2776 = vsel %vm860, %v2763, 0
      %2778 = vmatprep.subr.bf16.mxu0 0
      %2779 = vmatpush1.bf16.msra.mxu0 %v2767
      %2780 = vmatprep.subr.bf16.mxu0 0
      %2781 = vmatpush1.bf16.msra.mxu0 %v2769
      %2782 = vmatprep.subr.bf16.mxu0 0
      %2783 = vmatpush1.bf16.msra.mxu0 0
      %2784 = vmatprep.subr.bf16.mxu0 0
      %2785 = vmatpush1.bf16.msra.mxu0 0
      %2786 = vmatprep.subr.bf16.mxu0 0
      %2787 = vmatpush1.bf16.msra.mxu0 0
      %2788 = vmatprep.subr.bf16.mxu0 0
      %2789 = vmatpush1.bf16.msra.mxu0 0
      %2790 = vmatprep.subr.bf16.mxu0 0
      %2791 = vmatpush1.bf16.msra.mxu0 0
      %2792 = vmatprep.subr.bf16.mxu0 0
      %2793 = vmatpush1.bf16.msra.mxu0 0
      %2794 = vmatprep.subr.bf16.mxu0 0
      %2795 = vmatpush1.bf16.msra.mxu0 0
      %2796 = vmatprep.subr.bf16.mxu0 0
      %2797 = vmatpush1.bf16.msra.mxu0 0
      %2798 = vmatprep.subr.bf16.mxu0 0
      %2799 = vmatpush1.bf16.msra.mxu0 0
      %2800 = vmatprep.subr.bf16.mxu0 0
      %2801 = vmatpush1.bf16.msra.mxu0 0
      %2802 = vmatprep.subr.bf16.mxu0 0
      %2803 = vmatpush1.bf16.msra.mxu0 0
      %2804 = vmatprep.subr.bf16.mxu0 0
      %2805 = vmatpush1.bf16.msra.mxu0 0
      %2806 = vmatprep.subr.bf16.mxu0 0
      %2807 = vmatpush1.bf16.msra.mxu0 0
      %2808 = vmatprep.subr.bf16.mxu0 0
      %2809 = vmatpush1.bf16.msra.mxu0 0
      %2810 = vmatprep.mubr.bf16.mxu0 0
      %2811 = vmatmul.mubr.bf16.gmra.mrb[0].mxu0 %v2773
      %v2812 = vpop.f32.mrb[0].mxu0
      %v2813 = vadd.f32 0.0, %v2812
      %v2814 = vpop.f32.mrb[0].mxu0
      %v2815 = vpop.f32.mrb[0].mxu0
      %v2816 = vadd.f32 0.0, %v2815
      %v2817 = vpop.f32.mrb[0].mxu0
      %2818 = vmatprep.mubr.bf16.mxu0 0
      %2819 = vmatmul.mubr.bf16.gmra.mrb[0].mxu0 %v2776
      %v2820 = vpop.f32.mrb[0].mxu0
      %v2821 = vadd.f32 0.0, %v2820
      %v2822 = vpop.f32.mrb[0].mxu0
      %v2823 = vpop.f32.mrb[0].mxu0
      %v2824 = vadd.f32 0.0, %v2823
      %v2825 = vpop.f32.mrb[0].mxu0
      %2826 = vdwg.mxu0
      %v2827 = vpack.c.bf16 %v2816, %v2813
      %v2828 = vpack.c.bf16 %v2824, %v2821
      %v2831 = vunpack.c.l.b16 %v2229
      %v2832 = vunpack.c.l.b16 %v2230
      %v2833 = vpack.c.b16 %v2832, %v2831
      %v2836 = vsel %vm796, %v2827, 0
      %v2839 = vsel %vm796, %v2828, 0
      %2841 = vmatprep.subr.bf16.mxu0 0
      %2842 = vmatpush1.bf16.msra.mxu0 %v2833
      %2843 = vmatprep.subr.bf16.mxu0 0
      %2844 = vmatpush1.bf16.msra.mxu0 0
      %2845 = vmatprep.subr.bf16.mxu0 0
      %2846 = vmatpush1.bf16.msra.mxu0 0
      %2847 = vmatprep.subr.bf16.mxu0 0
      %2848 = vmatpush1.bf16.msra.mxu0 0
      %2849 = vmatprep.subr.bf16.mxu0 0
      %2850 = vmatpush1.bf16.msra.mxu0 0
      %2851 = vmatprep.subr.bf16.mxu0 0
      %2852 = vmatpush1.bf16.msra.mxu0 0
      %2853 = vmatprep.subr.bf16.mxu0 0
      %2854 = vmatpush1.bf16.msra.mxu0 0
      %2855 = vmatprep.subr.bf16.mxu0 0
      %2856 = vmatpush1.bf16.msra.mxu0 0
      %2857 = vmatprep.subr.bf16.mxu0 0
      %2858 = vmatpush1.bf16.msra.mxu0 0
      %2859 = vmatprep.subr.bf16.mxu0 0
      %2860 = vmatpush1.bf16.msra.mxu0 0
      %2861 = vmatprep.subr.bf16.mxu0 0
      %2862 = vmatpush1.bf16.msra.mxu0 0
      %2863 = vmatprep.subr.bf16.mxu0 0
      %2864 = vmatpush1.bf16.msra.mxu0 0
      %2865 = vmatprep.subr.bf16.mxu0 0
      %2866 = vmatpush1.bf16.msra.mxu0 0
      %2867 = vmatprep.subr.bf16.mxu0 0
      %2868 = vmatpush1.bf16.msra.mxu0 0
      %2869 = vmatprep.subr.bf16.mxu0 0
      %2870 = vmatpush1.bf16.msra.mxu0 0
      %2871 = vmatprep.subr.bf16.mxu0 0
      %2872 = vmatpush1.bf16.msra.mxu0 0
      %2873 = vmatprep.mubr.bf16.mxu0 0
      %2874 = vmatmul.mubr.bf16.gmra.mrb[0].mxu0 %v2836
      %v2875 = vpop.f32.mrb[0].mxu0
      %v2876 = vadd.f32 0.0, %v2875
      %v2877 = vpop.f32.mrb[0].mxu0
      %v2878 = vpop.f32.mrb[0].mxu0
      %v2879 = vadd.f32 0.0, %v2878
      %v2880 = vpop.f32.mrb[0].mxu0
      %2881 = vmatprep.mubr.bf16.mxu0 0
      %2882 = vmatmul.mubr.bf16.gmra.mrb[0].mxu0 %v2839
      %v2883 = vpop.f32.mrb[0].mxu0
      %v2884 = vadd.f32 0.0, %v2883
      %v2885 = vpop.f32.mrb[0].mxu0
      %v2886 = vpop.f32.mrb[0].mxu0
      %v2887 = vadd.f32 0.0, %v2886
      %v2888 = vpop.f32.mrb[0].mxu0
      %2889 = vdwg.mxu0
      %v2892 = vunpack.c.l.b16 %v2227
      %v2893 = vunpack.c.l.b16 %v2228
      %v2894 = vpack.c.b16 %v2893, %v2892
      %v2897 = vsel %vm796, %v2646, 0
      %v2900 = vsel %vm796, %v2647, 0
      %2902 = vmatprep.subr.bf16.mxu0 0
      %2903 = vmatpush1.bf16.msra.mxu0 %v2894
      %2904 = vmatprep.subr.bf16.mxu0 0
      %2905 = vmatpush1.bf16.msra.mxu0 0
      %2906 = vmatprep.subr.bf16.mxu0 0
      %2907 = vmatpush1.bf16.msra.mxu0 0
      %2908 = vmatprep.subr.bf16.mxu0 0
      %2909 = vmatpush1.bf16.msra.mxu0 0
      %2910 = vmatprep.subr.bf16.mxu0 0
      %2911 = vmatpush1.bf16.msra.mxu0 0
      %2912 = vmatprep.subr.bf16.mxu0 0
      %2913 = vmatpush1.bf16.msra.mxu0 0
      %2914 = vmatprep.subr.bf16.mxu0 0
      %2915 = vmatpush1.bf16.msra.mxu0 0
      %2916 = vmatprep.subr.bf16.mxu0 0
      %2917 = vmatpush1.bf16.msra.mxu0 0
      %2918 = vmatprep.subr.bf16.mxu0 0
      %2919 = vmatpush1.bf16.msra.mxu0 0
      %2920 = vmatprep.subr.bf16.mxu0 0
      %2921 = vmatpush1.bf16.msra.mxu0 0
      %2922 = vmatprep.subr.bf16.mxu0 0
      %2923 = vmatpush1.bf16.msra.mxu0 0
      %2924 = vmatprep.subr.bf16.mxu0 0
      %2925 = vmatpush1.bf16.msra.mxu0 0
      %2926 = vmatprep.subr.bf16.mxu0 0
      %2927 = vmatpush1.bf16.msra.mxu0 0
      %2928 = vmatprep.subr.bf16.mxu0 0
      %2929 = vmatpush1.bf16.msra.mxu0 0
      %2930 = vmatprep.subr.bf16.mxu0 0
      %2931 = vmatpush1.bf16.msra.mxu0 0
      %2932 = vmatprep.subr.bf16.mxu0 0
      %2933 = vmatpush1.bf16.msra.mxu0 0
      %2934 = vmatprep.mubr.bf16.mxu0 0
      %2935 = vmatmul.mubr.bf16.gmra.mrb[0].mxu0 %v2897
      %v2936 = vpop.f32.mrb[0].mxu0
      %v2937 = vadd.f32 %v2876, %v2936
      %v2938 = vpop.f32.mrb[0].mxu0
      %v2939 = vpop.f32.mrb[0].mxu0
      %v2940 = vadd.f32 %v2879, %v2939
      %v2941 = vpop.f32.mrb[0].mxu0
      %2942 = vmatprep.mubr.bf16.mxu0 0
      %2943 = vmatmul.mubr.bf16.gmra.mrb[0].mxu0 %v2900
      %v2944 = vpop.f32.mrb[0].mxu0
      %v2945 = vadd.f32 %v2884, %v2944
      %v2946 = vpop.f32.mrb[0].mxu0
      %v2947 = vpop.f32.mrb[0].mxu0
      %v2948 = vadd.f32 %v2887, %v2947
      %v2949 = vpop.f32.mrb[0].mxu0
      %2950 = vdwg.mxu0
      %v2951 = vpack.c.bf16 %v2466, %v2465
      %2952 = vrot.lane.b32.xlu0 %v2477, 96
      %v2953 = vpop.permute.xlu0 %2952
      %2954 = vrot.lane.b32.xlu0 %v2478, 96
      %v2955 = vpop.permute.xlu0 %2954
      %v2957 = vsel %vm796, %v2953, 0
      %v2960 = vsel %vm796, %v2955, 0
      %2962 = vmatprep.subr.bf16.mxu0 0
      %2963 = vmatpush1.bf16.msra.mxu0 %v2951
      %2964 = vmatprep.subr.bf16.mxu0 0
      %2965 = vmatpush1.bf16.msra.mxu0 0
      %2966 = vmatprep.subr.bf16.mxu0 0
      %2967 = vmatpush1.bf16.msra.mxu0 0
      %2968 = vmatprep.subr.bf16.mxu0 0
      %2969 = vmatpush1.bf16.msra.mxu0 0
      %2970 = vmatprep.subr.bf16.mxu0 0
      %2971 = vmatpush1.bf16.msra.mxu0 0
      %2972 = vmatprep.subr.bf16.mxu0 0
      %2973 = vmatpush1.bf16.msra.mxu0 0
      %2974 = vmatprep.subr.bf16.mxu0 0
      %2975 = vmatpush1.bf16.msra.mxu0 0
      %2976 = vmatprep.subr.bf16.mxu0 0
      %2977 = vmatpush1.bf16.msra.mxu0 0
      %2978 = vmatprep.subr.bf16.mxu0 0
      %2979 = vmatpush1.bf16.msra.mxu0 0
      %2980 = vmatprep.subr.bf16.mxu0 0
      %2981 = vmatpush1.bf16.msra.mxu0 0
      %2982 = vmatprep.subr.bf16.mxu0 0
      %2983 = vmatpush1.bf16.msra.mxu0 0
      %2984 = vmatprep.subr.bf16.mxu0 0
      %2985 = vmatpush1.bf16.msra.mxu0 0
      %2986 = vmatprep.subr.bf16.mxu0 0
      %2987 = vmatpush1.bf16.msra.mxu0 0
      %2988 = vmatprep.subr.bf16.mxu0 0
      %2989 = vmatpush1.bf16.msra.mxu0 0
      %2990 = vmatprep.subr.bf16.mxu0 0
      %2991 = vmatpush1.bf16.msra.mxu0 0
      %2992 = vmatprep.subr.bf16.mxu0 0
      %2993 = vmatpush1.bf16.msra.mxu0 0
      %2994 = vmatprep.mubr.bf16.mxu0 0
      %2995 = vmatmul.mubr.bf16.gmra.mrb[0].mxu0 %v2957
      %v2996 = vpop.f32.mrb[0].mxu0
      %v2997 = vadd.f32 0.0, %v2996
      %v2998 = vpop.f32.mrb[0].mxu0
      %v2999 = vpop.f32.mrb[0].mxu0
      %v3000 = vadd.f32 0.0, %v2999
      %v3001 = vpop.f32.mrb[0].mxu0
      %3002 = vmatprep.mubr.bf16.mxu0 0
      %3003 = vmatmul.mubr.bf16.gmra.mrb[0].mxu0 %v2960
      %v3004 = vpop.f32.mrb[0].mxu0
      %v3005 = vadd.f32 0.0, %v3004
      %v3006 = vpop.f32.mrb[0].mxu0
      %v3007 = vpop.f32.mrb[0].mxu0
      %v3008 = vadd.f32 0.0, %v3007
      %v3009 = vpop.f32.mrb[0].mxu0
      %3010 = vdwg.mxu0
      %v3011 = vmul.f32 %v2997, 0.25
      %v3012 = vmul.f32 %v3000, 0.25
      %v3013 = vmul.f32 %v3005, 0.25
      %v3014 = vmul.f32 %v3008, 0.25
      %v3015 = vadd.f32 %v3011, %v540
      %v3016 = vadd.f32 %v3012, %v540
      %v3017 = vadd.f32 %v3013, %v540
      %v3018 = vadd.f32 %v3014, %v540
      %v3019 = vsel %vm860, %v3015, -inf
      %3020 = vmax.xlane.f32.xlu0 %v3019
      %v3021 = vpop.xlane.xlu0 %3020
      %v3022 = vsel %vm860, %v3016, -inf
      %3023 = vmax.xlane.f32.xlu0 %v3022
      %v3024 = vpop.xlane.xlu0 %3023
      %v3025 = vsel %vm860, %v3017, -inf
      %3026 = vmax.xlane.f32.xlu0 %v3025
      %v3027 = vpop.xlane.xlu0 %3026
      %v3028 = vsel %vm860, %v3018, -inf
      %3029 = vmax.xlane.f32.xlu0 %v3028
      %v3030 = vpop.xlane.xlu0 %3029
      %v3031 = vsub.f32 %v3015, %v3021
      %v3032 = vsub.f32 %v3016, %v3024
      %v3033 = vsub.f32 %v3017, %v3027
      %v3034 = vsub.f32 %v3018, %v3030
      %v3035 = vmul.f32 %v3031, 1.442695
      %v3036 = vpow.pop %v3035
      %v3037 = vmul.f32 %v3032, 1.442695
      %v3038 = vpow.pop %v3037
      %v3039 = vmul.f32 %v3033, 1.442695
      %v3040 = vpow.pop %v3039
      %v3041 = vmul.f32 %v3034, 1.442695
      %v3042 = vpow.pop %v3041
      %v3043 = vsel %vm860, %v3036, 0.0
      %3044 = vadd.xlane.f32.xlu0 %v3043
      %v3045 = vpop.xlane.xlu0 %3044
      %v3046 = vsel %vm860, %v3038, 0.0
      %3047 = vadd.xlane.f32.xlu0 %v3046
      %v3048 = vpop.xlane.xlu0 %3047
      %v3049 = vsel %vm860, %v3040, 0.0
      %3050 = vadd.xlane.f32.xlu0 %v3049
      %v3051 = vpop.xlane.xlu0 %3050
      %v3052 = vsel %vm860, %v3042, 0.0
      %3053 = vadd.xlane.f32.xlu0 %v3052
      %v3054 = vpop.xlane.xlu0 %3053
      %v3055 = vrcp.pop %v3045
      %v3056 = vrcp.pop %v3048
      %v3057 = vrcp.pop %v3051
      %v3058 = vrcp.pop %v3054
      %v3059 = vmul.f32 %v3036, %v3055
      %v3060 = vmul.f32 %v3038, %v3056
      %v3061 = vmul.f32 %v3040, %v3057
      %v3062 = vmul.f32 %v3042, %v3058
      %v3063 = vpack.c.bf16 %v3060, %v3059
      %v3064 = vpack.c.bf16 %v3062, %v3061
      %3065 = vrot.lane.b32.xlu0 %v2589, 96
      %v3066 = vpop.permute.xlu0 %3065
      %3067 = vrot.lane.b32.xlu0 %v2590, 96
      %v3068 = vpop.permute.xlu0 %3067
      %v3072 = vsel %vm860, %v3063, 0
      %v3075 = vsel %vm860, %v3064, 0
      %3077 = vmatprep.subr.bf16.mxu0 0
      %3078 = vmatpush1.bf16.msra.mxu0 %v3066
      %3079 = vmatprep.subr.bf16.mxu0 0
      %3080 = vmatpush1.bf16.msra.mxu0 %v3068
      %3081 = vmatprep.subr.bf16.mxu0 0
      %3082 = vmatpush1.bf16.msra.mxu0 0
      %3083 = vmatprep.subr.bf16.mxu0 0
      %3084 = vmatpush1.bf16.msra.mxu0 0
      %3085 = vmatprep.subr.bf16.mxu0 0
      %3086 = vmatpush1.bf16.msra.mxu0 0
      %3087 = vmatprep.subr.bf16.mxu0 0
      %3088 = vmatpush1.bf16.msra.mxu0 0
      %3089 = vmatprep.subr.bf16.mxu0 0
      %3090 = vmatpush1.bf16.msra.mxu0 0
      %3091 = vmatprep.subr.bf16.mxu0 0
      %3092 = vmatpush1.bf16.msra.mxu0 0
      %3093 = vmatprep.subr.bf16.mxu0 0
      %3094 = vmatpush1.bf16.msra.mxu0 0
      %3095 = vmatprep.subr.bf16.mxu0 0
      %3096 = vmatpush1.bf16.msra.mxu0 0
      %3097 = vmatprep.subr.bf16.mxu0 0
      %3098 = vmatpush1.bf16.msra.mxu0 0
      %3099 = vmatprep.subr.bf16.mxu0 0
      %3100 = vmatpush1.bf16.msra.mxu0 0
      %3101 = vmatprep.subr.bf16.mxu0 0
      %3102 = vmatpush1.bf16.msra.mxu0 0
      %3103 = vmatprep.subr.bf16.mxu0 0
      %3104 = vmatpush1.bf16.msra.mxu0 0
      %3105 = vmatprep.subr.bf16.mxu0 0
      %3106 = vmatpush1.bf16.msra.mxu0 0
      %3107 = vmatprep.subr.bf16.mxu0 0
      %3108 = vmatpush1.bf16.msra.mxu0 0
      %3109 = vmatprep.mubr.bf16.mxu0 0
      %3110 = vmatmul.mubr.bf16.gmra.mrb[0].mxu0 %v3072
      %v3111 = vpop.f32.mrb[0].mxu0
      %v3112 = vadd.f32 0.0, %v3111
      %v3113 = vpop.f32.mrb[0].mxu0
      %v3114 = vpop.f32.mrb[0].mxu0
      %v3115 = vadd.f32 0.0, %v3114
      %v3116 = vpop.f32.mrb[0].mxu0
      %3117 = vmatprep.mubr.bf16.mxu0 0
      %3118 = vmatmul.mubr.bf16.gmra.mrb[0].mxu0 %v3075
      %v3119 = vpop.f32.mrb[0].mxu0
      %v3120 = vadd.f32 0.0, %v3119
      %v3121 = vpop.f32.mrb[0].mxu0
      %v3122 = vpop.f32.mrb[0].mxu0
      %v3123 = vadd.f32 0.0, %v3122
      %v3124 = vpop.f32.mrb[0].mxu0
      %3125 = vdwg.mxu0
      %v3126 = vpack.c.bf16 %v3115, %v3112
      %v3127 = vpack.c.bf16 %v3123, %v3120
      %v3130 = vunpack.c.l.b16 %v2231
      %v3131 = vunpack.c.l.b16 %v2232
      %v3132 = vpack.c.b16 %v3131, %v3130
      %v3135 = vsel %vm796, %v3126, 0
      %v3138 = vsel %vm796, %v3127, 0
      %3140 = vmatprep.subr.bf16.mxu0 0
      %3141 = vmatpush1.bf16.msra.mxu0 %v3132
      %3142 = vmatprep.subr.bf16.mxu0 0
      %3143 = vmatpush1.bf16.msra.mxu0 0
      %3144 = vmatprep.subr.bf16.mxu0 0
      %3145 = vmatpush1.bf16.msra.mxu0 0
      %3146 = vmatprep.subr.bf16.mxu0 0
      %3147 = vmatpush1.bf16.msra.mxu0 0
      %3148 = vmatprep.subr.bf16.mxu0 0
      %3149 = vmatpush1.bf16.msra.mxu0 0
      %3150 = vmatprep.subr.bf16.mxu0 0
      %3151 = vmatpush1.bf16.msra.mxu0 0
      %3152 = vmatprep.subr.bf16.mxu0 0
      %3153 = vmatpush1.bf16.msra.mxu0 0
      %3154 = vmatprep.subr.bf16.mxu0 0
      %3155 = vmatpush1.bf16.msra.mxu0 0
      %3156 = vmatprep.subr.bf16.mxu0 0
      %3157 = vmatpush1.bf16.msra.mxu0 0
      %3158 = vmatprep.subr.bf16.mxu0 0
      %3159 = vmatpush1.bf16.msra.mxu0 0
      %3160 = vmatprep.subr.bf16.mxu0 0
      %3161 = vmatpush1.bf16.msra.mxu0 0
      %3162 = vmatprep.subr.bf16.mxu0 0
      %3163 = vmatpush1.bf16.msra.mxu0 0
      %3164 = vmatprep.subr.bf16.mxu0 0
      %3165 = vmatpush1.bf16.msra.mxu0 0
      %3166 = vmatprep.subr.bf16.mxu0 0
      %3167 = vmatpush1.bf16.msra.mxu0 0
      %3168 = vmatprep.subr.bf16.mxu0 0
      %3169 = vmatpush1.bf16.msra.mxu0 0
      %3170 = vmatprep.subr.bf16.mxu0 0
      %3171 = vmatpush1.bf16.msra.mxu0 0
      %3172 = vmatprep.mubr.bf16.mxu0 0
      %3173 = vmatmul.mubr.bf16.gmra.mrb[0].mxu0 %v3135
      %v3174 = vpop.f32.mrb[0].mxu0
      %v3175 = vadd.f32 0.0, %v3174
      %v3176 = vpop.f32.mrb[0].mxu0
      %v3177 = vpop.f32.mrb[0].mxu0
      %v3178 = vadd.f32 0.0, %v3177
      %v3179 = vpop.f32.mrb[0].mxu0
      %3180 = vmatprep.mubr.bf16.mxu0 0
      %3181 = vmatmul.mubr.bf16.gmra.mrb[0].mxu0 %v3138
      %v3182 = vpop.f32.mrb[0].mxu0
      %v3183 = vadd.f32 0.0, %v3182
      %v3184 = vpop.f32.mrb[0].mxu0
      %v3185 = vpop.f32.mrb[0].mxu0
      %v3186 = vadd.f32 0.0, %v3185
      %v3187 = vpop.f32.mrb[0].mxu0
      %3188 = vdwg.mxu0
      %v3189 = vadd.f32 %v2937, %v3175
      %v3190 = vadd.f32 %v2940, %v3178
      %v3191 = vadd.f32 %v2945, %v3183
      %v3192 = vadd.f32 %v2948, %v3186
      %v3193 = vpack.c.bf16 %v2468, %v2467
      %3194 = vrot.lane.b32.xlu0 %v2477, 80
      %v3195 = vpop.permute.xlu0 %3194
      %3196 = vrot.lane.b32.xlu0 %v2478, 80
      %v3197 = vpop.permute.xlu0 %3196
      %v3199 = vsel %vm796, %v3195, 0
      %v3202 = vsel %vm796, %v3197, 0
      %3204 = vmatprep.subr.bf16.mxu0 0
      %3205 = vmatpush1.bf16.msra.mxu0 %v3193
      %3206 = vmatprep.subr.bf16.mxu0 0
      %3207 = vmatpush1.bf16.msra.mxu0 0
      %3208 = vmatprep.subr.bf16.mxu0 0
      %3209 = vmatpush1.bf16.msra.mxu0 0
      %3210 = vmatprep.subr.bf16.mxu0 0
      %3211 = vmatpush1.bf16.msra.mxu0 0
      %3212 = vmatprep.subr.bf16.mxu0 0
      %3213 = vmatpush1.bf16.msra.mxu0 0
      %3214 = vmatprep.subr.bf16.mxu0 0
      %3215 = vmatpush1.bf16.msra.mxu0 0
      %3216 = vmatprep.subr.bf16.mxu0 0
      %3217 = vmatpush1.bf16.msra.mxu0 0
      %3218 = vmatprep.subr.bf16.mxu0 0
      %3219 = vmatpush1.bf16.msra.mxu0 0
      %3220 = vmatprep.subr.bf16.mxu0 0
      %3221 = vmatpush1.bf16.msra.mxu0 0
      %3222 = vmatprep.subr.bf16.mxu0 0
      %3223 = vmatpush1.bf16.msra.mxu0 0
      %3224 = vmatprep.subr.bf16.mxu0 0
      %3225 = vmatpush1.bf16.msra.mxu0 0
      %3226 = vmatprep.subr.bf16.mxu0 0
      %3227 = vmatpush1.bf16.msra.mxu0 0
      %3228 = vmatprep.subr.bf16.mxu0 0
      %3229 = vmatpush1.bf16.msra.mxu0 0
      %3230 = vmatprep.subr.bf16.mxu0 0
      %3231 = vmatpush1.bf16.msra.mxu0 0
      %3232 = vmatprep.subr.bf16.mxu0 0
      %3233 = vmatpush1.bf16.msra.mxu0 0
      %3234 = vmatprep.subr.bf16.mxu0 0
      %3235 = vmatpush1.bf16.msra.mxu0 0
      %3236 = vmatprep.mubr.bf16.mxu0 0
      %3237 = vmatmul.mubr.bf16.gmra.mrb[0].mxu0 %v3199
      %v3238 = vpop.f32.mrb[0].mxu0
      %v3239 = vadd.f32 0.0, %v3238
      %v3240 = vpop.f32.mrb[0].mxu0
      %v3241 = vpop.f32.mrb[0].mxu0
      %v3242 = vadd.f32 0.0, %v3241
      %v3243 = vpop.f32.mrb[0].mxu0
      %3244 = vmatprep.mubr.bf16.mxu0 0
      %3245 = vmatmul.mubr.bf16.gmra.mrb[0].mxu0 %v3202
      %v3246 = vpop.f32.mrb[0].mxu0
      %v3247 = vadd.f32 0.0, %v3246
      %v3248 = vpop.f32.mrb[0].mxu0
      %v3249 = vpop.f32.mrb[0].mxu0
      %v3250 = vadd.f32 0.0, %v3249
      %v3251 = vpop.f32.mrb[0].mxu0
      %3252 = vdwg.mxu0
      %v3253 = vmul.f32 %v3239, 0.25
      %v3254 = vmul.f32 %v3242, 0.25
      %v3255 = vmul.f32 %v3247, 0.25
      %v3256 = vmul.f32 %v3250, 0.25
      %v3257 = vadd.f32 %v3253, %v540
      %v3258 = vadd.f32 %v3254, %v540
      %v3259 = vadd.f32 %v3255, %v540
      %v3260 = vadd.f32 %v3256, %v540
      %v3261 = vsel %vm860, %v3257, -inf
      %3262 = vmax.xlane.f32.xlu0 %v3261
      %v3263 = vpop.xlane.xlu0 %3262
      %v3264 = vsel %vm860, %v3258, -inf
      %3265 = vmax.xlane.f32.xlu0 %v3264
      %v3266 = vpop.xlane.xlu0 %3265
      %v3267 = vsel %vm860, %v3259, -inf
      %3268 = vmax.xlane.f32.xlu0 %v3267
      %v3269 = vpop.xlane.xlu0 %3268
      %v3270 = vsel %vm860, %v3260, -inf
      %3271 = vmax.xlane.f32.xlu0 %v3270
      %v3272 = vpop.xlane.xlu0 %3271
      %v3273 = vsub.f32 %v3257, %v3263
      %v3274 = vsub.f32 %v3258, %v3266
      %v3275 = vsub.f32 %v3259, %v3269
      %v3276 = vsub.f32 %v3260, %v3272
      %v3277 = vmul.f32 %v3273, 1.442695
      %v3278 = vpow.pop %v3277
      %v3279 = vmul.f32 %v3274, 1.442695
      %v3280 = vpow.pop %v3279
      %v3281 = vmul.f32 %v3275, 1.442695
      %v3282 = vpow.pop %v3281
      %v3283 = vmul.f32 %v3276, 1.442695
      %v3284 = vpow.pop %v3283
      %v3285 = vsel %vm860, %v3278, 0.0
      %3286 = vadd.xlane.f32.xlu0 %v3285
      %v3287 = vpop.xlane.xlu0 %3286
      %v3288 = vsel %vm860, %v3280, 0.0
      %3289 = vadd.xlane.f32.xlu0 %v3288
      %v3290 = vpop.xlane.xlu0 %3289
      %v3291 = vsel %vm860, %v3282, 0.0
      %3292 = vadd.xlane.f32.xlu0 %v3291
      %v3293 = vpop.xlane.xlu0 %3292
      %v3294 = vsel %vm860, %v3284, 0.0
      %3295 = vadd.xlane.f32.xlu0 %v3294
      %v3296 = vpop.xlane.xlu0 %3295
      %v3297 = vrcp.pop %v3287
      %v3298 = vrcp.pop %v3290
      %v3299 = vrcp.pop %v3293
      %v3300 = vrcp.pop %v3296
      %v3301 = vmul.f32 %v3278, %v3297
      %v3302 = vmul.f32 %v3280, %v3298
      %v3303 = vmul.f32 %v3282, %v3299
      %v3304 = vmul.f32 %v3284, %v3300
      %v3305 = vpack.c.bf16 %v3302, %v3301
      %v3306 = vpack.c.bf16 %v3304, %v3303
      %3307 = vrot.lane.b32.xlu0 %v2589, 80
      %v3308 = vpop.permute.xlu0 %3307
      %3309 = vrot.lane.b32.xlu0 %v2590, 80
      %v3310 = vpop.permute.xlu0 %3309
      %v3314 = vsel %vm860, %v3305, 0
      %v3317 = vsel %vm860, %v3306, 0
      %3319 = vmatprep.subr.bf16.mxu0 0
      %3320 = vmatpush1.bf16.msra.mxu0 %v3308
      %3321 = vmatprep.subr.bf16.mxu0 0
      %3322 = vmatpush1.bf16.msra.mxu0 %v3310
      %3323 = vmatprep.subr.bf16.mxu0 0
      %3324 = vmatpush1.bf16.msra.mxu0 0
      %3325 = vmatprep.subr.bf16.mxu0 0
      %3326 = vmatpush1.bf16.msra.mxu0 0
      %3327 = vmatprep.subr.bf16.mxu0 0
      %3328 = vmatpush1.bf16.msra.mxu0 0
      %3329 = vmatprep.subr.bf16.mxu0 0
      %3330 = vmatpush1.bf16.msra.mxu0 0
      %3331 = vmatprep.subr.bf16.mxu0 0
      %3332 = vmatpush1.bf16.msra.mxu0 0
      %3333 = vmatprep.subr.bf16.mxu0 0
      %3334 = vmatpush1.bf16.msra.mxu0 0
      %3335 = vmatprep.subr.bf16.mxu0 0
      %3336 = vmatpush1.bf16.msra.mxu0 0
      %3337 = vmatprep.subr.bf16.mxu0 0
      %3338 = vmatpush1.bf16.msra.mxu0 0
      %3339 = vmatprep.subr.bf16.mxu0 0
      %3340 = vmatpush1.bf16.msra.mxu0 0
      %3341 = vmatprep.subr.bf16.mxu0 0
      %3342 = vmatpush1.bf16.msra.mxu0 0
      %3343 = vmatprep.subr.bf16.mxu0 0
      %3344 = vmatpush1.bf16.msra.mxu0 0
      %3345 = vmatprep.subr.bf16.mxu0 0
      %3346 = vmatpush1.bf16.msra.mxu0 0
      %3347 = vmatprep.subr.bf16.mxu0 0
      %3348 = vmatpush1.bf16.msra.mxu0 0
      %3349 = vmatprep.subr.bf16.mxu0 0
      %3350 = vmatpush1.bf16.msra.mxu0 0
      %3351 = vmatprep.mubr.bf16.mxu0 0
      %3352 = vmatmul.mubr.bf16.gmra.mrb[0].mxu0 %v3314
      %v3353 = vpop.f32.mrb[0].mxu0
      %v3354 = vadd.f32 0.0, %v3353
      %v3355 = vpop.f32.mrb[0].mxu0
      %v3356 = vpop.f32.mrb[0].mxu0
      %v3357 = vadd.f32 0.0, %v3356
      %v3358 = vpop.f32.mrb[0].mxu0
      %3359 = vmatprep.mubr.bf16.mxu0 0
      %3360 = vmatmul.mubr.bf16.gmra.mrb[0].mxu0 %v3317
      %v3361 = vpop.f32.mrb[0].mxu0
      %v3362 = vadd.f32 0.0, %v3361
      %v3363 = vpop.f32.mrb[0].mxu0
      %v3364 = vpop.f32.mrb[0].mxu0
      %v3365 = vadd.f32 0.0, %v3364
      %v3366 = vpop.f32.mrb[0].mxu0
      %3367 = vdwg.mxu0
      %v3368 = vpack.c.bf16 %v3357, %v3354
      %v3369 = vpack.c.bf16 %v3365, %v3362
      %v3372 = vunpack.c.l.b16 %v2233
      %v3373 = vunpack.c.l.b16 %v2234
      %v3374 = vpack.c.b16 %v3373, %v3372
      %v3377 = vsel %vm796, %v3368, 0
      %v3380 = vsel %vm796, %v3369, 0
      %3382 = vmatprep.subr.bf16.mxu0 0
      %3383 = vmatpush1.bf16.msra.mxu0 %v3374
      %3384 = vmatprep.subr.bf16.mxu0 0
      %3385 = vmatpush1.bf16.msra.mxu0 0
      %3386 = vmatprep.subr.bf16.mxu0 0
      %3387 = vmatpush1.bf16.msra.mxu0 0
      %3388 = vmatprep.subr.bf16.mxu0 0
      %3389 = vmatpush1.bf16.msra.mxu0 0
      %3390 = vmatprep.subr.bf16.mxu0 0
      %3391 = vmatpush1.bf16.msra.mxu0 0
      %3392 = vmatprep.subr.bf16.mxu0 0
      %3393 = vmatpush1.bf16.msra.mxu0 0
      %3394 = vmatprep.subr.bf16.mxu0 0
      %3395 = vmatpush1.bf16.msra.mxu0 0
      %3396 = vmatprep.subr.bf16.mxu0 0
      %3397 = vmatpush1.bf16.msra.mxu0 0
      %3398 = vmatprep.subr.bf16.mxu0 0
      %3399 = vmatpush1.bf16.msra.mxu0 0
      %3400 = vmatprep.subr.bf16.mxu0 0
      %3401 = vmatpush1.bf16.msra.mxu0 0
      %3402 = vmatprep.subr.bf16.mxu0 0
      %3403 = vmatpush1.bf16.msra.mxu0 0
      %3404 = vmatprep.subr.bf16.mxu0 0
      %3405 = vmatpush1.bf16.msra.mxu0 0
      %3406 = vmatprep.subr.bf16.mxu0 0
      %3407 = vmatpush1.bf16.msra.mxu0 0
      %3408 = vmatprep.subr.bf16.mxu0 0
      %3409 = vmatpush1.bf16.msra.mxu0 0
      %3410 = vmatprep.subr.bf16.mxu0 0
      %3411 = vmatpush1.bf16.msra.mxu0 0
      %3412 = vmatprep.subr.bf16.mxu0 0
      %3413 = vmatpush1.bf16.msra.mxu0 0
      %3414 = vmatprep.mubr.bf16.mxu0 0
      %3415 = vmatmul.mubr.bf16.gmra.mrb[0].mxu0 %v3377
      %v3416 = vpop.f32.mrb[0].mxu0
      %v3417 = vadd.f32 0.0, %v3416
      %v3418 = vpop.f32.mrb[0].mxu0
      %v3419 = vpop.f32.mrb[0].mxu0
      %v3420 = vadd.f32 0.0, %v3419
      %v3421 = vpop.f32.mrb[0].mxu0
      %3422 = vmatprep.mubr.bf16.mxu0 0
      %3423 = vmatmul.mubr.bf16.gmra.mrb[0].mxu0 %v3380
      %v3424 = vpop.f32.mrb[0].mxu0
      %v3425 = vadd.f32 0.0, %v3424
      %v3426 = vpop.f32.mrb[0].mxu0
      %v3427 = vpop.f32.mrb[0].mxu0
      %v3428 = vadd.f32 0.0, %v3427
      %v3429 = vpop.f32.mrb[0].mxu0
      %3430 = vdwg.mxu0
      %v3431 = vadd.f32 %v3189, %v3417
      %v3432 = vadd.f32 %v3190, %v3420
      %v3433 = vadd.f32 %v3191, %v3425
      %v3434 = vadd.f32 %v3192, %v3428
      %v3435 = vadd.f32 %v2219, %v3431
      %v3436 = vadd.f32 %v2220, %v3432
      %v3437 = vadd.f32 %v2221, %v3433
      %v3438 = vadd.f32 %v2222, %v3434
      %v3439 = vlaneseq
      %v3440 = vshrl.u32 %v3439, 7
      %v3441 = vsub.s32 3, %v3440
      %v3442 = vrot.slane %v2224, %v3441
      %v3443 = vadd.f32 %v3435, %v3442
      %v3444 = vadd.f32 %v3436, %v3442
      %v3445 = vadd.f32 %v3437, %v3442
      %v3446 = vadd.f32 %v3438, %v3442
      %v3447 = vsel %vm481, %v3443, 0.0
      %3448 = vadd.xlane.f32.xlu0 %v3447
      %v3449 = vpop.xlane.xlu0 %3448
      %v3450 = vsel %vm481, %v3444, 0.0
      %3451 = vadd.xlane.f32.xlu0 %v3450
      %v3452 = vpop.xlane.xlu0 %3451
      %v3453 = vsel %vm481, %v3445, 0.0
      %3454 = vadd.xlane.f32.xlu0 %v3453
      %v3455 = vpop.xlane.xlu0 %3454
      %v3456 = vsel %vm481, %v3446, 0.0
      %3457 = vadd.xlane.f32.xlu0 %v3456
      %v3458 = vpop.xlane.xlu0 %3457
      %v3459 = vmul.f32 %v3449, %v563
      %v3460 = vmul.f32 %v3452, %v563
      %v3461 = vmul.f32 %v3455, %v563
      %v3462 = vmul.f32 %v3458, %v563
      %v3463 = vmul.f32 %v3443, %v3443
      %v3464 = vmul.f32 %v3444, %v3444
      %v3465 = vmul.f32 %v3445, %v3445
      %v3466 = vmul.f32 %v3446, %v3446
      %v3467 = vsel %vm481, %v3463, 0.0
      %3468 = vadd.xlane.f32.xlu0 %v3467
      %v3469 = vpop.xlane.xlu0 %3468
      %v3470 = vsel %vm481, %v3464, 0.0
      %3471 = vadd.xlane.f32.xlu0 %v3470
      %v3472 = vpop.xlane.xlu0 %3471
      %v3473 = vsel %vm481, %v3465, 0.0
      %3474 = vadd.xlane.f32.xlu0 %v3473
      %v3475 = vpop.xlane.xlu0 %3474
      %v3476 = vsel %vm481, %v3466, 0.0
      %3477 = vadd.xlane.f32.xlu0 %v3476
      %v3478 = vpop.xlane.xlu0 %3477
      %v3479 = vmul.f32 %v3469, %v563
      %v3480 = vmul.f32 %v3472, %v563
      %v3481 = vmul.f32 %v3475, %v563
      %v3482 = vmul.f32 %v3478, %v563
      %v3483 = vsub.f32 %v3443, %v3459
      %v3484 = vsub.f32 %v3444, %v3460
      %v3485 = vsub.f32 %v3445, %v3461
      %v3486 = vsub.f32 %v3446, %v3462
      %v3487 = vmul.f32 %v3459, %v3459
      %v3488 = vmul.f32 %v3460, %v3460
      %v3489 = vmul.f32 %v3461, %v3461
      %v3490 = vmul.f32 %v3462, %v3462
      %v3491 = vsub.f32 %v3479, %v3487
      %v3492 = vsub.f32 %v3480, %v3488
      %v3493 = vsub.f32 %v3481, %v3489
      %v3494 = vsub.f32 %v3482, %v3490
      %v3495 = vadd.f32 %v3491, 1e-06
      %v3496 = vadd.f32 %v3492, 1e-06
      %v3497 = vadd.f32 %v3493, 1e-06
      %v3498 = vadd.f32 %v3494, 1e-06
      %v3499 = vrsqrt.pop %v3495
      %v3500 = vrsqrt.pop %v3496
      %v3501 = vrsqrt.pop %v3497
      %v3502 = vrsqrt.pop %v3498
      %v3503 = vmul.f32 %v3483, %v3499
      %v3504 = vmul.f32 %v3484, %v3500
      %v3505 = vmul.f32 %v3485, %v3501
      %v3506 = vmul.f32 %v3486, %v3502
      %v3507 = vlaneseq
      %v3508 = vshrl.u32 %v3507, 7
      %v3509 = vsub.s32 4, %v3508
      %v3510 = vrot.slane %v2224, %v3509
      %v3511 = vmul.f32 %v3503, %v3510
      %v3512 = vmul.f32 %v3504, %v3510
      %v3513 = vmul.f32 %v3505, %v3510
      %v3514 = vmul.f32 %v3506, %v3510
      %v3515 = vlaneseq
      %v3516 = vshrl.u32 %v3515, 7
      %v3517 = vsub.s32 5, %v3516
      %v3518 = vrot.slane %v2224, %v3517
      %v3519 = vadd.f32 %v3511, %v3518
      %v3520 = vadd.f32 %v3512, %v3518
      %v3521 = vadd.f32 %v3513, %v3518
      %v3522 = vadd.f32 %v3514, %v3518
      %s3523 = scalar_lea.vmem %s6, 64
      %v3524 = vld [vmem:[%s3523] sm:$0xff]
      %v3525 = vld [vmem:[%s3523 + $0x8] sm:$0xff]
      %v3526 = vld [vmem:[%s3523 + $0x10] sm:$0xff]
      %v3527 = vld [vmem:[%s3523 + $0x18] sm:$0xff]
      %v3528 = vld [vmem:[%s3523 + $0x20] sm:$0xff]
      %v3529 = vld [vmem:[%s3523 + $0x28] sm:$0xff]
      %v3530 = vld [vmem:[%s3523 + $0x30] sm:$0xff]
      %v3531 = vld [vmem:[%s3523 + $0x38] sm:$0xff]
      %v3532 = vpack.c.bf16 %v3520, %v3519
      %v3533 = vpack.c.bf16 %v3522, %v3521
      %v3534 = vlaneseq
      %v3535 = vshrl.u32 %v3534, 7
      %v3536 = vsub.s32 6, %v3535
      %v3537 = vrot.slane %v2224, %v3536
      %v3538 = vlaneseq
      %v3539 = vshrl.u32 %v3538, 7
      %v3540 = vsub.s32 6, %v3539
      %v3541 = vrot.slane %v2225, %v3540
      %v3550 = vunpack.c.l.b16 %v3524
      %v3551 = vunpack.c.h.b16 %v3524
      %v3552 = vunpack.c.l.b16 %v3525
      %v3553 = vunpack.c.h.b16 %v3525
      %v3554 = vunpack.c.l.b16 %v3526
      %v3555 = vunpack.c.h.b16 %v3526
      %v3556 = vunpack.c.l.b16 %v3527
      %v3557 = vunpack.c.h.b16 %v3527
      %v3558 = vunpack.c.l.b16 %v3528
      %v3559 = vunpack.c.h.b16 %v3528
      %v3560 = vunpack.c.l.b16 %v3529
      %v3561 = vunpack.c.h.b16 %v3529
      %v3562 = vunpack.c.l.b16 %v3530
      %v3563 = vunpack.c.h.b16 %v3530
      %v3564 = vunpack.c.l.b16 %v3531
      %v3565 = vunpack.c.h.b16 %v3531
      %v3566 = vpack.c.b16 %v3552, %v3550
      %v3567 = vpack.c.b16 %v3553, %v3551
      %v3568 = vpack.c.b16 %v3556, %v3554
      %v3569 = vpack.c.b16 %v3557, %v3555
      %v3570 = vpack.c.b16 %v3560, %v3558
      %v3571 = vpack.c.b16 %v3561, %v3559
      %v3572 = vpack.c.b16 %v3564, %v3562
      %v3573 = vpack.c.b16 %v3565, %v3563
      %v3583 = vsel %vm481, %v3532, 0
      %v3586 = vsel %vm481, %v3533, 0
      %3588 = vmatprep.subr.bf16.mxu0 %v3567
      %3589 = vmatpush1.bf16.msra.mxu0 %v3566
      %3590 = vmatprep.subr.bf16.mxu0 %v3569
      %3591 = vmatpush1.bf16.msra.mxu0 %v3568
      %3592 = vmatprep.subr.bf16.mxu0 %v3571
      %3593 = vmatpush1.bf16.msra.mxu0 %v3570
      %3594 = vmatprep.subr.bf16.mxu0 %v3573
      %3595 = vmatpush1.bf16.msra.mxu0 %v3572
      %3596 = vmatprep.subr.bf16.mxu0 0
      %3597 = vmatpush1.bf16.msra.mxu0 0
      %3598 = vmatprep.subr.bf16.mxu0 0
      %3599 = vmatpush1.bf16.msra.mxu0 0
      %3600 = vmatprep.subr.bf16.mxu0 0
      %3601 = vmatpush1.bf16.msra.mxu0 0
      %3602 = vmatprep.subr.bf16.mxu0 0
      %3603 = vmatpush1.bf16.msra.mxu0 0
      %3604 = vmatprep.subr.bf16.mxu0 0
      %3605 = vmatpush1.bf16.msra.mxu0 0
      %3606 = vmatprep.subr.bf16.mxu0 0
      %3607 = vmatpush1.bf16.msra.mxu0 0
      %3608 = vmatprep.subr.bf16.mxu0 0
      %3609 = vmatpush1.bf16.msra.mxu0 0
      %3610 = vmatprep.subr.bf16.mxu0 0
      %3611 = vmatpush1.bf16.msra.mxu0 0
      %3612 = vmatprep.subr.bf16.mxu0 0
      %3613 = vmatpush1.bf16.msra.mxu0 0
      %3614 = vmatprep.subr.bf16.mxu0 0
      %3615 = vmatpush1.bf16.msra.mxu0 0
      %3616 = vmatprep.subr.bf16.mxu0 0
      %3617 = vmatpush1.bf16.msra.mxu0 0
      %3618 = vmatprep.subr.bf16.mxu0 0
      %3619 = vmatpush1.bf16.msra.mxu0 0
      %3620 = vmatprep.mubr.bf16.mxu0 0
      %3621 = vmatmul.mubr.bf16.gmra.mrb[0].mxu0 %v3583
      %v3622 = vpop.f32.mrb[0].mxu0
      %v3623 = vadd.f32 %v3537, %v3622
      %v3624 = vpop.f32.mrb[0].mxu0
      %v3625 = vadd.f32 %v3541, %v3624
      %v3626 = vpop.f32.mrb[0].mxu0
      %v3627 = vadd.f32 %v3537, %v3626
      %v3628 = vpop.f32.mrb[0].mxu0
      %v3629 = vadd.f32 %v3541, %v3628
      %3630 = vmatprep.mubr.bf16.mxu0 0
      %3631 = vmatmul.mubr.bf16.gmra.mrb[0].mxu0 %v3586
      %v3632 = vpop.f32.mrb[0].mxu0
      %v3633 = vadd.f32 %v3537, %v3632
      %v3634 = vpop.f32.mrb[0].mxu0
      %v3635 = vadd.f32 %v3541, %v3634
      %v3636 = vpop.f32.mrb[0].mxu0
      %v3637 = vadd.f32 %v3537, %v3636
      %v3638 = vpop.f32.mrb[0].mxu0
      %v3639 = vadd.f32 %v3541, %v3638
      %3640 = vdwg.mxu0
      %v3641 = vmul.f32 %v3623, %v3623
      %v3642 = vmul.f32 %v3625, %v3625
      %v3643 = vmul.f32 %v3627, %v3627
      %v3644 = vmul.f32 %v3629, %v3629
      %v3645 = vmul.f32 %v3633, %v3633
      %v3646 = vmul.f32 %v3635, %v3635
      %v3647 = vmul.f32 %v3637, %v3637
      %v3648 = vmul.f32 %v3639, %v3639
      %v3649 = vmul.f32 %v3623, %v3641
      %v3650 = vmul.f32 %v3625, %v3642
      %v3651 = vmul.f32 %v3627, %v3643
      %v3652 = vmul.f32 %v3629, %v3644
      %v3653 = vmul.f32 %v3633, %v3645
      %v3654 = vmul.f32 %v3635, %v3646
      %v3655 = vmul.f32 %v3637, %v3647
      %v3656 = vmul.f32 %v3639, %v3648
      %v3657 = vmul.f32 %v3649, 0.044715
      %v3658 = vmul.f32 %v3650, 0.044715
      %v3659 = vmul.f32 %v3651, 0.044715
      %v3660 = vmul.f32 %v3652, 0.044715
      %v3661 = vmul.f32 %v3653, 0.044715
      %v3662 = vmul.f32 %v3654, 0.044715
      %v3663 = vmul.f32 %v3655, 0.044715
      %v3664 = vmul.f32 %v3656, 0.044715
      %v3665 = vadd.f32 %v3623, %v3657
      %v3666 = vadd.f32 %v3625, %v3658
      %v3667 = vadd.f32 %v3627, %v3659
      %v3668 = vadd.f32 %v3629, %v3660
      %v3669 = vadd.f32 %v3633, %v3661
      %v3670 = vadd.f32 %v3635, %v3662
      %v3671 = vadd.f32 %v3637, %v3663
      %v3672 = vadd.f32 %v3639, %v3664
      %v3673 = vmul.f32 %v3665, 0.7978846
      %v3674 = vmul.f32 %v3666, 0.7978846
      %v3675 = vmul.f32 %v3667, 0.7978846
      %v3676 = vmul.f32 %v3668, 0.7978846
      %v3677 = vmul.f32 %v3669, 0.7978846
      %v3678 = vmul.f32 %v3670, 0.7978846
      %v3679 = vmul.f32 %v3671, 0.7978846
      %v3680 = vmul.f32 %v3672, 0.7978846
      %v3681 = vtanh.pop %v3673
      %v3682 = vtanh.pop %v3674
      %v3683 = vtanh.pop %v3675
      %v3684 = vtanh.pop %v3676
      %v3685 = vtanh.pop %v3677
      %v3686 = vtanh.pop %v3678
      %v3687 = vtanh.pop %v3679
      %v3688 = vtanh.pop %v3680
      %v3689 = vadd.f32 %v3681, 1.0
      %v3690 = vadd.f32 %v3682, 1.0
      %v3691 = vadd.f32 %v3683, 1.0
      %v3692 = vadd.f32 %v3684, 1.0
      %v3693 = vadd.f32 %v3685, 1.0
      %v3694 = vadd.f32 %v3686, 1.0
      %v3695 = vadd.f32 %v3687, 1.0
      %v3696 = vadd.f32 %v3688, 1.0
      %v3697 = vmul.f32 %v3689, 0.5
      %v3698 = vmul.f32 %v3690, 0.5
      %v3699 = vmul.f32 %v3691, 0.5
      %v3700 = vmul.f32 %v3692, 0.5
      %v3701 = vmul.f32 %v3693, 0.5
      %v3702 = vmul.f32 %v3694, 0.5
      %v3703 = vmul.f32 %v3695, 0.5
      %v3704 = vmul.f32 %v3696, 0.5
      %v3705 = vmul.f32 %v3623, %v3697
      %v3706 = vmul.f32 %v3625, %v3698
      %v3707 = vmul.f32 %v3627, %v3699
      %v3708 = vmul.f32 %v3629, %v3700
      %v3709 = vmul.f32 %v3633, %v3701
      %v3710 = vmul.f32 %v3635, %v3702
      %v3711 = vmul.f32 %v3637, %v3703
      %v3712 = vmul.f32 %v3639, %v3704
      %s3713 = scalar_lea.vmem %s7, 128
      %v3714 = vld [vmem:[%s3713] sm:$0xf]
      %v3715 = vld [vmem:[%s3713 + $0x4] sm:$0xf]
      %v3716 = vld [vmem:[%s3713 + $0x8] sm:$0xf]
      %v3717 = vld [vmem:[%s3713 + $0xc] sm:$0xf]
      %v3718 = vld [vmem:[%s3713 + $0x10] sm:$0xf]
      %v3719 = vld [vmem:[%s3713 + $0x14] sm:$0xf]
      %v3720 = vld [vmem:[%s3713 + $0x18] sm:$0xf]
      %v3721 = vld [vmem:[%s3713 + $0x1c] sm:$0xf]
      %v3722 = vld [vmem:[%s3713 + $0x20] sm:$0xf]
      %v3723 = vld [vmem:[%s3713 + $0x24] sm:$0xf]
      %v3724 = vld [vmem:[%s3713 + $0x28] sm:$0xf]
      %v3725 = vld [vmem:[%s3713 + $0x2c] sm:$0xf]
      %v3726 = vld [vmem:[%s3713 + $0x30] sm:$0xf]
      %v3727 = vld [vmem:[%s3713 + $0x34] sm:$0xf]
      %v3728 = vld [vmem:[%s3713 + $0x38] sm:$0xf]
      %v3729 = vld [vmem:[%s3713 + $0x3c] sm:$0xf]
      %v3730 = vld [vmem:[%s3713 + $0x40] sm:$0xf]
      %v3731 = vld [vmem:[%s3713 + $0x44] sm:$0xf]
      %v3732 = vld [vmem:[%s3713 + $0x48] sm:$0xf]
      %v3733 = vld [vmem:[%s3713 + $0x4c] sm:$0xf]
      %v3734 = vld [vmem:[%s3713 + $0x50] sm:$0xf]
      %v3735 = vld [vmem:[%s3713 + $0x54] sm:$0xf]
      %v3736 = vld [vmem:[%s3713 + $0x58] sm:$0xf]
      %v3737 = vld [vmem:[%s3713 + $0x5c] sm:$0xf]
      %v3738 = vld [vmem:[%s3713 + $0x60] sm:$0xf]
      %v3739 = vld [vmem:[%s3713 + $0x64] sm:$0xf]
      %v3740 = vld [vmem:[%s3713 + $0x68] sm:$0xf]
      %v3741 = vld [vmem:[%s3713 + $0x6c] sm:$0xf]
      %v3742 = vld [vmem:[%s3713 + $0x70] sm:$0xf]
      %v3743 = vld [vmem:[%s3713 + $0x74] sm:$0xf]
      %v3744 = vld [vmem:[%s3713 + $0x78] sm:$0xf]
      %v3745 = vld [vmem:[%s3713 + $0x7c] sm:$0xf]
      %v3746 = vpack.c.bf16 %v3707, %v3705
      %v3747 = vpack.c.bf16 %v3708, %v3706
      %v3748 = vpack.c.bf16 %v3711, %v3709
      %v3749 = vpack.c.bf16 %v3712, %v3710
      %v3782 = vunpack.c.l.b16 %v3714
      %v3783 = vunpack.c.l.b16 %v3715
      %v3784 = vunpack.c.l.b16 %v3716
      %v3785 = vunpack.c.l.b16 %v3717
      %v3786 = vunpack.c.l.b16 %v3718
      %v3787 = vunpack.c.l.b16 %v3719
      %v3788 = vunpack.c.l.b16 %v3720
      %v3789 = vunpack.c.l.b16 %v3721
      %v3790 = vunpack.c.l.b16 %v3722
      %v3791 = vunpack.c.l.b16 %v3723
      %v3792 = vunpack.c.l.b16 %v3724
      %v3793 = vunpack.c.l.b16 %v3725
      %v3794 = vunpack.c.l.b16 %v3726
      %v3795 = vunpack.c.l.b16 %v3727
      %v3796 = vunpack.c.l.b16 %v3728
      %v3797 = vunpack.c.l.b16 %v3729
      %v3798 = vunpack.c.l.b16 %v3730
      %v3799 = vunpack.c.l.b16 %v3731
      %v3800 = vunpack.c.l.b16 %v3732
      %v3801 = vunpack.c.l.b16 %v3733
      %v3802 = vunpack.c.l.b16 %v3734
      %v3803 = vunpack.c.l.b16 %v3735
      %v3804 = vunpack.c.l.b16 %v3736
      %v3805 = vunpack.c.l.b16 %v3737
      %v3806 = vunpack.c.l.b16 %v3738
      %v3807 = vunpack.c.l.b16 %v3739
      %v3808 = vunpack.c.l.b16 %v3740
      %v3809 = vunpack.c.l.b16 %v3741
      %v3810 = vunpack.c.l.b16 %v3742
      %v3811 = vunpack.c.l.b16 %v3743
      %v3812 = vunpack.c.l.b16 %v3744
      %v3813 = vunpack.c.l.b16 %v3745
      %v3814 = vpack.c.b16 %v3783, %v3782
      %v3815 = vpack.c.b16 %v3785, %v3784
      %v3816 = vpack.c.b16 %v3787, %v3786
      %v3817 = vpack.c.b16 %v3789, %v3788
      %v3818 = vpack.c.b16 %v3791, %v3790
      %v3819 = vpack.c.b16 %v3793, %v3792
      %v3820 = vpack.c.b16 %v3795, %v3794
      %v3821 = vpack.c.b16 %v3797, %v3796
      %v3822 = vpack.c.b16 %v3799, %v3798
      %v3823 = vpack.c.b16 %v3801, %v3800
      %v3824 = vpack.c.b16 %v3803, %v3802
      %v3825 = vpack.c.b16 %v3805, %v3804
      %v3826 = vpack.c.b16 %v3807, %v3806
      %v3827 = vpack.c.b16 %v3809, %v3808
      %v3828 = vpack.c.b16 %v3811, %v3810
      %v3829 = vpack.c.b16 %v3813, %v3812
      %3846 = vmatprep.subr.bf16.mxu0 0
      %3847 = vmatpush1.bf16.msra.mxu0 %v3814
      %3848 = vmatprep.subr.bf16.mxu0 0
      %3849 = vmatpush1.bf16.msra.mxu0 %v3815
      %3850 = vmatprep.subr.bf16.mxu0 0
      %3851 = vmatpush1.bf16.msra.mxu0 %v3816
      %3852 = vmatprep.subr.bf16.mxu0 0
      %3853 = vmatpush1.bf16.msra.mxu0 %v3817
      %3854 = vmatprep.subr.bf16.mxu0 0
      %3855 = vmatpush1.bf16.msra.mxu0 %v3818
      %3856 = vmatprep.subr.bf16.mxu0 0
      %3857 = vmatpush1.bf16.msra.mxu0 %v3819
      %3858 = vmatprep.subr.bf16.mxu0 0
      %3859 = vmatpush1.bf16.msra.mxu0 %v3820
      %3860 = vmatprep.subr.bf16.mxu0 0
      %3861 = vmatpush1.bf16.msra.mxu0 %v3821
      %3862 = vmatprep.subr.bf16.mxu0 0
      %3863 = vmatpush1.bf16.msra.mxu0 %v3822
      %3864 = vmatprep.subr.bf16.mxu0 0
      %3865 = vmatpush1.bf16.msra.mxu0 %v3823
      %3866 = vmatprep.subr.bf16.mxu0 0
      %3867 = vmatpush1.bf16.msra.mxu0 %v3824
      %3868 = vmatprep.subr.bf16.mxu0 0
      %3869 = vmatpush1.bf16.msra.mxu0 %v3825
      %3870 = vmatprep.subr.bf16.mxu0 0
      %3871 = vmatpush1.bf16.msra.mxu0 %v3826
      %3872 = vmatprep.subr.bf16.mxu0 0
      %3873 = vmatpush1.bf16.msra.mxu0 %v3827
      %3874 = vmatprep.subr.bf16.mxu0 0
      %3875 = vmatpush1.bf16.msra.mxu0 %v3828
      %3876 = vmatprep.subr.bf16.mxu0 0
      %3877 = vmatpush1.bf16.msra.mxu0 %v3829
      %3878 = vmatprep.mubr.bf16.mxu0 %v3747
      %3879 = vmatmul.mubr.bf16.gmra.mrb[0].mxu0 %v3746
      %v3880 = vpop.f32.mrb[0].mxu0
      %v3881 = vadd.f32 0.0, %v3880
      %v3882 = vpop.f32.mrb[0].mxu0
      %v3883 = vpop.f32.mrb[0].mxu0
      %v3884 = vpop.f32.mrb[0].mxu0
      %3885 = vmatprep.mubr.bf16.mxu0 %v3749
      %3886 = vmatmul.mubr.bf16.gmra.mrb[0].mxu0 %v3748
      %v3887 = vpop.f32.mrb[0].mxu0
      %v3888 = vpop.f32.mrb[0].mxu0
      %v3889 = vpop.f32.mrb[0].mxu0
      %v3890 = vpop.f32.mrb[0].mxu0
      %3891 = vdwg.mxu0
      %v3892 = vadd.f32 %v3443, %v3881
      %v3893 = vlaneseq
      %v3894 = vshrl.u32 %v3893, 7
      %v3895 = vsub.s32 7, %v3894
      %v3896 = vrot.slane %v2224, %v3895
      %v3897 = vadd.f32 %v3892, %v3896
      %v3898 = vld [vmem:[%s8] sm:$0xff]
      %v3899 = vsel %vm481, %v3897, 0.0
      %3900 = vadd.xlane.f32.xlu0 %v3899
      %v3901 = vpop.xlane.xlu0 %3900
      %v3902 = vmul.f32 %v3901, %v563
      %v3903 = vmul.f32 %v3897, %v3897
      %v3904 = vsel %vm481, %v3903, 0.0
      %3905 = vadd.xlane.f32.xlu0 %v3904
      %v3906 = vpop.xlane.xlu0 %3905
      %v3907 = vmul.f32 %v3906, %v563
      %v3908 = vsub.f32 %v3897, %v3902
      %v3909 = vmul.f32 %v3902, %v3902
      %v3910 = vsub.f32 %v3907, %v3909
      %v3911 = vadd.f32 %v3910, 1e-06
      %v3912 = vrsqrt.pop %v3911
      %v3913 = vmul.f32 %v3908, %v3912
      %v3914 = vlaneseq
      %v3915 = vshrl.u32 %v3914, 7
      %v3916 = vsub.s32 0, %v3915
      %v3917 = vrot.slane %v3898, %v3916
      %v3918 = vmul.f32 %v3913, %v3917
      %v3919 = vlaneseq
      %v3920 = vshrl.u32 %v3919, 7
      %v3921 = vsub.s32 1, %v3920
      %v3922 = vrot.slane %v3898, %v3921
      %v3923 = vadd.f32 %v3918, %v3922
      %v3924 = vld [vmem:[%s9] sm:$0xf]
      %v3925 = vld [vmem:[%s9 + $0x4] sm:$0xf]
      %v3926 = vld [vmem:[%s9 + $0x8] sm:$0xf]
      %v3927 = vld [vmem:[%s9 + $0xc] sm:$0xf]
      %v3928 = vld [vmem:[%s9 + $0x10] sm:$0xf]
      %v3929 = vld [vmem:[%s9 + $0x14] sm:$0xf]
      %v3930 = vld [vmem:[%s9 + $0x18] sm:$0xf]
      %v3931 = vld [vmem:[%s9 + $0x1c] sm:$0xf]
      %v3932 = vpack.c.bf16 %v3923, %v3923
      %v3933 = vlaneseq
      %v3934 = vshrl.u32 %v3933, 7
      %v3935 = vsub.s32 2, %v3934
      %v3936 = vrot.slane %v3898, %v3935
      %v3945 = vunpack.c.l.b16 %v3924
      %v3946 = vunpack.c.l.b16 %v3925
      %v3947 = vunpack.c.l.b16 %v3926
      %v3948 = vunpack.c.l.b16 %v3927
      %v3949 = vunpack.c.l.b16 %v3928
      %v3950 = vunpack.c.l.b16 %v3929
      %v3951 = vunpack.c.l.b16 %v3930
      %v3952 = vunpack.c.l.b16 %v3931
      %v3953 = vpack.c.b16 %v3946, %v3945
      %v3954 = vpack.c.b16 %v3948, %v3947
      %v3955 = vpack.c.b16 %v3950, %v3949
      %v3956 = vpack.c.b16 %v3952, %v3951
      %v3962 = vsel %vm481, %v3932, 0
      %3964 = vmatprep.subr.bf16.mxu0 0
      %3965 = vmatpush1.bf16.msra.mxu0 %v3953
      %3966 = vmatprep.subr.bf16.mxu0 0
      %3967 = vmatpush1.bf16.msra.mxu0 %v3954
      %3968 = vmatprep.subr.bf16.mxu0 0
      %3969 = vmatpush1.bf16.msra.mxu0 %v3955
      %3970 = vmatprep.subr.bf16.mxu0 0
      %3971 = vmatpush1.bf16.msra.mxu0 %v3956
      %3972 = vmatprep.subr.bf16.mxu0 0
      %3973 = vmatpush1.bf16.msra.mxu0 0
      %3974 = vmatprep.subr.bf16.mxu0 0
      %3975 = vmatpush1.bf16.msra.mxu0 0
      %3976 = vmatprep.subr.bf16.mxu0 0
      %3977 = vmatpush1.bf16.msra.mxu0 0
      %3978 = vmatprep.subr.bf16.mxu0 0
      %3979 = vmatpush1.bf16.msra.mxu0 0
      %3980 = vmatprep.subr.bf16.mxu0 0
      %3981 = vmatpush1.bf16.msra.mxu0 0
      %3982 = vmatprep.subr.bf16.mxu0 0
      %3983 = vmatpush1.bf16.msra.mxu0 0
      %3984 = vmatprep.subr.bf16.mxu0 0
      %3985 = vmatpush1.bf16.msra.mxu0 0
      %3986 = vmatprep.subr.bf16.mxu0 0
      %3987 = vmatpush1.bf16.msra.mxu0 0
      %3988 = vmatprep.subr.bf16.mxu0 0
      %3989 = vmatpush1.bf16.msra.mxu0 0
      %3990 = vmatprep.subr.bf16.mxu0 0
      %3991 = vmatpush1.bf16.msra.mxu0 0
      %3992 = vmatprep.subr.bf16.mxu0 0
      %3993 = vmatpush1.bf16.msra.mxu0 0
      %3994 = vmatprep.subr.bf16.mxu0 0
      %3995 = vmatpush1.bf16.msra.mxu0 0
      %3996 = vmatprep.mubr.bf16.mxu0 0
      %3997 = vmatmul.mubr.bf16.gmra.mrb[0].mxu0 %v3962
      %v3998 = vpop.f32.mrb[0].mxu0
      %v3999 = vadd.f32 %v3936, %v3998
      %v4000 = vpop.f32.mrb[0].mxu0
      %v4001 = vpop.f32.mrb[0].mxu0
      %v4002 = vpop.f32.mrb[0].mxu0
      %4003 = vdwg.mxu0
      %4004 = vst [vmem:[%s357] sm:$0xff] %v3999
      %p4005 = scmp.lt.s32.totalorder %s21, 1
      %s4006 = scalar_select %p4005, %s21, 1
      %s4007 = smul.addr %s4006, 8
      %s4008 = scalar_lea.vmem %s10, %s4007
      // Predicated region
      $region61: #{lora_vit_forward.1} parent=59 // pred_check
        %p4009 = pneg %p254
      $region62: #{lora_vit_forward.1} parent=59 // pred_check_branch
        %4011 = sbr.rel (%p4009) target = $region64
      $region63: #{lora_vit_forward.1} parent=59 // pred_region
        _
      $region64: #{lora_vit_forward.1} parent=59 // pred_fallthru
        _
    $region60: #{lora_vit_forward.1} parent=5 // pred_fallthru
      _
    %p4012 = scmp.le.s32.totalorder 2, %s16
    // Predicated region
    $region65: #{lora_vit_forward.1} parent=5 // pred_check
      %p4013 = pneg %p4012
    $region66: #{lora_vit_forward.1} parent=5 // pred_check_branch
      %4015 = sbr.rel (%p4013) target = $region68
    $region67: #{lora_vit_forward.1} parent=5 // pred_region
      %s4016 = ssub.s32 %s16, 2
      // Predicated region
      $region69: #{lora_vit_forward.1} parent=67 // pred_check
        %p4017 = pneg %p260
      $region70: #{lora_vit_forward.1} parent=67 // pred_check_branch
        %4019 = sbr.rel (%p4017) target = $region72
      $region71: #{lora_vit_forward.1} parent=67 // pred_region
        %p4020 = scmp.lt.s32.totalorder %s22, 1
        %s4021 = scalar_select %p4020, %s22, 1
        %s4022 = smul.addr %s4021, 8
        %s4023 = scalar_lea.vmem %s10, %s4022
      $region72: #{lora_vit_forward.1} parent=67 // pred_fallthru
        _
    $region68: #{lora_vit_forward.1} parent=5 // pred_fallthru
      _
  $region6: #{lora_vit_forward.1} parent=0 // loop_footer
    %s20 = sadd.s32 1, %s16
  $region7: #{lora_vit_forward.1} parent=0 // loop_footer_branch
    %15 = sbr.rel target = $region3
  $region8: #{lora_vit_forward.1} parent=0 // loop_exit
    _

</llo_original>
